<compile_context>
chip_gen: v7x
topology: tpu7x:2x2x1
jax: 0.10.0
libtpu: 0.0.40
codegen_flags: <defaults>
</compile_context>

<pallas_src>
import jax
import jax.numpy as jnp
from jax import lax
from jax.experimental import pallas as pl
from jax.experimental.pallas import tpu as pltpu


# ConvTranspose2d(k=4, s=2, p=1): kernel taps contributing to each output parity, and the
# corresponding row/col slice starts into the zero-padded (by 1) decoder input.
_UP_KTAP = ((1, 3), (0, 2))    # [output_parity][tap] -> kernel index
_UP_START = ((1, 0), (2, 1))   # [output_parity][tap] -> slice start into padded h


# ------------------------------- Pallas kernel ---------------------------------

def _fused_unet_kernel(xpar_ref, wd_ref, wu_ref, o_ref, stat_ref):
    """leaky_relu(x) -> Conv2d(4,2,1) -> ReLU -> ConvTranspose2d(4,2,1) + skip concat.

    xpar_ref[s, 2*ph+pw, i, j, ci] = pad(leaky_relu(x), 1)[s, ci, 2i+ph, 2j+pw]
    (channels-last parity planes), so the stride-2 conv is ONE K=16*c_in matmul and the
    transposed conv is 4 output-parity matmuls with K=4*inner.  The kernel writes the
    skip slabs and the *raw* decoder output into the lane-dense concatenated buffer
    o[s, c, r*m + oi*wo + oj]   (r = 2*pi+pj output parity, m = ho*wo),
    plus per-step BatchNorm partial sums (sum / sum of squares of the raw output).
    """
    n_blk = xpar_ref.shape[0]
    ho = xpar_ref.shape[2] - 1
    wo = xpar_ref.shape[3] - 1
    c_in = xpar_ref.shape[4]
    inner = wd_ref.shape[1]
    c_out = wu_ref.shape[2]
    m = ho * wo
    mm = n_blk * m

    x = xpar_ref[...]                               # (n_blk, 4, ho+1, wo+1, c_in) f32

    # ---- down conv: one K-concatenated matmul (M = n_blk*m, K = 16*c_in, N = inner).
    slabs = []
    for q in range(4):                              # input parity plane 2*ph+pw
        plane = x[:, q]
        for a in range(2):
            for b in range(2):
                slabs.append(plane[:, a:a + ho, b:b + wo, :])
    lhs = jnp.concatenate(slabs, axis=-1).reshape(mm, 16 * c_in)
    h = jnp.dot(lhs.astype(jnp.bfloat16), wd_ref[...],
                preferred_element_type=jnp.float32)
    h = jnp.maximum(h, 0.0)                         # uprelu (ReLU), f32

    # ---- zero-pad the decoder map by 1 as a value (no scratch round-trip).
    h4 = h.reshape(n_blk, ho, wo, inner)
    zc = jnp.zeros((n_blk, ho, 1, inner), jnp.float32)
    hp = jnp.concatenate([zc, h4, zc], axis=2)      # (n_blk, ho, wo+2, inner)
    zr = jnp.zeros((n_blk, 1, wo + 2, inner), jnp.float32)
    hp = jnp.concatenate([zr, hp, zr], axis=1)      # (n_blk, ho+2, wo+2, inner)

    # ---- up conv (4 output parities, K=4*inner each) + skip + lane-dense layout.
    ssum = jnp.zeros((1, c_out), jnp.float32)
    ssq = jnp.zeros((1, c_out), jnp.float32)
    cols = [[] for _ in range(n_blk)]               # per-sample (c_in+c_out, m) blocks
    for pi in range(2):
        for pj in range(2):
            r = 2 * pi + pj                         # output parity
            taps = []
            for ai in range(2):
                for bi in range(2):
                    r0 = _UP_START[pi][ai]
                    c0 = _UP_START[pj][bi]
                    taps.append(hp[:, r0:r0 + ho, c0:c0 + wo, :])
            ulhs = jnp.concatenate(taps, axis=-1).reshape(mm, 4 * inner)
            y_r = jnp.dot(ulhs.astype(jnp.bfloat16), wu_ref[r],
                          preferred_element_type=jnp.float32)         # (mm, c_out)
            ssum = ssum + jnp.sum(y_r, axis=0, keepdims=True)
            ssq = ssq + jnp.sum(y_r * y_r, axis=0, keepdims=True)

            # Skip branch = leaky_relu(x) at the matching output pixels (exact f32).
            splane = x[:, 2 * (1 - pi) + (1 - pj)]
            skip_r = splane[:, pi:pi + ho, pj:pj + wo, :].reshape(mm, c_in)

            cat_t = jnp.concatenate([skip_r, y_r], axis=1).T          # (c_in+c_out, mm)
            for s in range(n_blk):
                cols[s].append(cat_t[:, s * m:(s + 1) * m])

    for s in range(n_blk):
        o_ref[s] = jnp.concatenate(cols[s], axis=1)                   # (c_in+c_out, 4*m)
    stat_ref[...] = jnp.concatenate([ssum, ssq], axis=0).reshape(1, 2, c_out)
    # TODO(synk): BatchNorm running_mean/running_var buffer updates are not materialized;
    # they do not affect the training-mode forward output.


# ------------------------------- wrapper ---------------------------------------

@jax.jit
def unet_innermost_forward(x_nchw, w_down, w_up, gamma, beta):
    n, c_in, h, w = x_nchw.shape
    inner = w_down.shape[0]
    c_out = w_up.shape[1]
    ho, wo = h // 2, w // 2
    m = ho * wo
    n_blk = 2 if n % 2 == 0 else 1                  # samples per grid step (M = n_blk*m)
    n_steps = n // n_blk

    x = x_nchw.astype(jnp.float32)

    # LeakyReLU hoisted here: XLA fuses it into the pad/transpose that builds xpar
    # (that copy already happens), and the skip branch must carry leaky_relu(x) anyway
    # because of the in-place mutation quirk.
    xa = jnp.where(x > 0, x, 0.2 * x)

    # Parity-split the 1-padded activation once (same bytes as x), channels-last:
    # xpar[s, 2*ph+pw, i, j, c] = pad(xa)[s, c, 2*i+ph, 2*j+pw]
    xp = jnp.pad(xa, ((0, 0), (0, 0), (1, 1), (1, 1)))
    xpar = xp.reshape(n, c_in, ho + 1, 2, wo + 1, 2)
    xpar = xpar.transpose(0, 3, 5, 2, 4, 1).reshape(n, 4, ho + 1, wo + 1, c_in)

    # Conv2d taps, K-concatenated: row (q*4 + 2a+b)*c_in + ci -> w_down[co, ci, 2a+ph, 2b+pw]
    wd_flat = (w_down.astype(jnp.float32)
               .reshape(inner, c_in, 2, 2, 2, 2)
               .transpose(3, 5, 2, 4, 1, 0)
               .reshape(16 * c_in, inner)
               .astype(jnp.bfloat16))

    # ConvTranspose2d taps per output parity, K-concatenated:
    # wu_flat[2*pi+pj, (2*ai+bi)*inner + ci, co] = w_up[ci, co, _UP_KTAP[pi][ai], _UP_KTAP[pj][bi]]
    wu_flat = jnp.stack([
        jnp.stack([w_up[:, :, _UP_KTAP[pi][ai], _UP_KTAP[pj][bi]]
                   for ai in range(2) for bi in range(2)], axis=0)
        for pi in range(2) for pj in range(2)], axis=0)
    wu_flat = wu_flat.reshape(4, 4 * inner, c_out).astype(jnp.bfloat16)

    out_k, stats = pl.pallas_call(
        _fused_unet_kernel,
        out_shape=(jax.ShapeDtypeStruct((n, c_in + c_out, 4 * m), jnp.float32),
                   jax.ShapeDtypeStruct((n_steps, 2, c_out), jnp.float32)),
        grid_spec=pltpu.PrefetchScalarGridSpec(
            num_scalar_prefetch=0,
            grid=(n_steps,),
            in_specs=[
                pl.BlockSpec((n_blk, 4, ho + 1, wo + 1, c_in),
                             lambda i: (i, 0, 0, 0, 0)),
                pl.BlockSpec((16 * c_in, inner), lambda i: (0, 0)),
                pl.BlockSpec((4, 4 * inner, c_out), lambda i: (0, 0, 0)),
            ],
            out_specs=[
                pl.BlockSpec((n_blk, c_in + c_out, 4 * m), lambda i: (i, 0, 0)),
                pl.BlockSpec((1, 2, c_out), lambda i: (i, 0, 0)),
            ],
        ),
        compiler_params=pltpu.CompilerParams(
            dimension_semantics=("parallel",),
            vmem_limit_bytes=32 * 1024 * 1024),
    )(xpar, wd_flat, wu_flat)

    # ---- BatchNorm2d training statistics (biased variance) from per-step partial sums.
    cnt = jnp.float32(n * h * w)
    mean = jnp.sum(stats[:, 0, :], axis=0) / cnt
    var = jnp.maximum(jnp.sum(stats[:, 1, :], axis=0) / cnt - mean * mean, 0.0)
    scale = gamma.astype(jnp.float32) * lax.rsqrt(var + 1e-5)
    shift = beta.astype(jnp.float32) - mean * scale

    # ---- BN affine on the decoder channels + single rearrangement back to NCHW
    # (XLA fuses the elementwise into the transpose; no second pallas_call).
    y_bn = out_k[:, c_in:, :] * scale[None, :, None] + shift[None, :, None]
    full = jnp.concatenate([out_k[:, :c_in, :], y_bn], axis=1)
    full = full.reshape(n, c_in + c_out, 2, 2, ho, wo)          # (.., pi, pj, oi, oj)
    out = full.transpose(0, 1, 4, 2, 5, 3).reshape(n, c_in + c_out, h, w)
    return out


# ------------------------------- reference -------------------------------------

def _reference_forward(x, w_down, w_up, gamma, beta):
    lrelu = lambda t: jnp.where(t > 0, t, 0.2 * t)
    xa = lrelu(x)                                               # in-place quirk
    hmap = lax.conv_general_dilated(
        xa, w_down, (2, 2), ((1, 1), (1, 1)),
        dimension_numbers=("NCHW", "OIHW", "NCHW"),
        precision=lax.Precision.HIGHEST)
    hmap = jnp.maximum(hmap, 0.0)
    w_conv = jnp.transpose(w_up, (1, 0, 2, 3))[:, :, ::-1, ::-1]
    y = lax.conv_general_dilated(
        hmap, w_conv, (1, 1), ((2, 2), (2, 2)), lhs_dilation=(2, 2),
        dimension_numbers=("NCHW", "OIHW", "NCHW"),
        precision=lax.Precision.HIGHEST)
    mean = jnp.mean(y, axis=(0, 2, 3), keepdims=True)
    var = jnp.mean((y - mean) ** 2, axis=(0, 2, 3), keepdims=True)
    bn = (y - mean) * lax.rsqrt(var + 1e-5) * gamma.reshape(1, -1, 1, 1) \
        + beta.reshape(1, -1, 1, 1)
    return jnp.concatenate([xa, bn], axis=1)


# --------------------------------- main -----------------------------------------

if __name__ == "__main__":
    # Small shapes: batch=2, outer_nc=input_nc=4, inner_nc=8, spatial=16.
    n, outer_nc, inner_nc, hw = 2, 4, 8, 16
    input_nc = outer_nc  # input_nc=None in the module -> input_nc = outer_nc

    key = jax.random.PRNGKey(0)
    kx, kd, ku = jax.random.split(key, 3)
    x = jax.random.normal(kx, (n, input_nc, hw, hw), jnp.float32)
    # Conv2d weight: (inner_nc, input_nc, 4, 4); ConvTranspose2d: (inner_nc, outer_nc, 4, 4)
    w_down = jax.random.normal(kd, (inner_nc, input_nc, 4, 4), jnp.float32) * 0.05
    w_up = jax.random.normal(ku, (inner_nc, outer_nc, 4, 4), jnp.float32) * 0.05
    gamma = jnp.ones((outer_nc,), jnp.float32)   # BatchNorm2d default affine init
    beta = jnp.zeros((outer_nc,), jnp.float32)

    out = jax.block_until_ready(unet_innermost_forward(x, w_down, w_up, gamma, beta))
    assert out.shape == (n, input_nc + outer_nc, hw, hw), out.shape

    ref = jax.block_until_ready(_reference_forward(x, w_down, w_up, gamma, beta))
    # Tolerance justification: MXU operands are bf16 (unit roundoff 2^-8) accumulated in
    # f32 over K=64 (down) and K=32-per-parity (up); BatchNorm amplifies absolute error
    # by 1/std(y) ~ 8x, giving expected max |err| ~ 1-2e-2 on O(1) outputs.  4e-2 abs +
    # 2e-2 rel leaves >2x margin; the skip branch is exact f32.
    if not jnp.allclose(out, ref, atol=4e-2, rtol=2e-2):
        raise AssertionError(
            f"kernel/reference mismatch, max abs err = {float(jnp.max(jnp.abs(out - ref)))}")

    print("KERNEL_OK")
</pallas_src>

<mosaic_0001>
module attributes {stable_mosaic.version = 11 : i64} {
  func.func @_fused_unet_kernel(%arg0: i32, %arg1: memref<2x4x9x9x4xf32, #tpu.memory_space<vmem>>, %arg2: memref<64x8xbf16, #tpu.memory_space<vmem>>, %arg3: memref<4x32x4xbf16, #tpu.memory_space<vmem>>, %arg4: memref<2x8x256xf32, #tpu.memory_space<vmem>>, %arg5: memref<1x2x4xf32, #tpu.memory_space<vmem>>) attributes {dimension_semantics = [#tpu.dimension_semantics<parallel>], iteration_bounds = array<i64: 1>, scalar_prefetch = 0 : i64, scratch_operands = 0 : i64, tpu.core_type = #tpu.core_type<tc>, window_params = [{transform_indices = @transform_0, window_bounds = array<i64: 2, 4, 9, 9, 4>}, {pipeline_mode = #tpu.pipeline_mode<synchronous>, transform_indices = @transform_1, window_bounds = array<i64: 64, 8>}, {pipeline_mode = #tpu.pipeline_mode<synchronous>, transform_indices = @transform_2, window_bounds = array<i64: 4, 32, 4>}, {transform_indices = @transform_3, window_bounds = array<i64: 2, 8, 256>}, {transform_indices = @transform_4, window_bounds = array<i64: 1, 2, 4>}]} {
    %c0 = arith.constant 0 : index
    %c0_0 = arith.constant 0 : index
    %c0_1 = arith.constant 0 : index
    %c0_2 = arith.constant 0 : index
    %c0_3 = arith.constant 0 : index
    %0 = vector.load %arg1[%c0, %c0_0, %c0_1, %c0_2, %c0_3] : memref<2x4x9x9x4xf32, #tpu.memory_space<vmem>>, vector<2x4x9x9x4xf32>
    %1 = vector.extract_strided_slice %0 {offsets = [0, 0, 0, 0, 0], sizes = [2, 1, 9, 9, 4], strides = [1, 1, 1, 1, 1]} : vector<2x4x9x9x4xf32> to vector<2x1x9x9x4xf32>
    %2 = vector.shape_cast %1 : vector<2x1x9x9x4xf32> to vector<2x9x9x4xf32>
    %3 = vector.extract_strided_slice %2 {offsets = [0, 0, 0, 0], sizes = [2, 8, 8, 4], strides = [1, 1, 1, 1]} : vector<2x9x9x4xf32> to vector<2x8x8x4xf32>
    %4 = vector.extract_strided_slice %2 {offsets = [0, 0, 1, 0], sizes = [2, 8, 8, 4], strides = [1, 1, 1, 1]} : vector<2x9x9x4xf32> to vector<2x8x8x4xf32>
    %5 = vector.extract_strided_slice %2 {offsets = [0, 1, 0, 0], sizes = [2, 8, 8, 4], strides = [1, 1, 1, 1]} : vector<2x9x9x4xf32> to vector<2x8x8x4xf32>
    %6 = vector.extract_strided_slice %2 {offsets = [0, 1, 1, 0], sizes = [2, 8, 8, 4], strides = [1, 1, 1, 1]} : vector<2x9x9x4xf32> to vector<2x8x8x4xf32>
    %7 = vector.extract_strided_slice %0 {offsets = [0, 1, 0, 0, 0], sizes = [2, 1, 9, 9, 4], strides = [1, 1, 1, 1, 1]} : vector<2x4x9x9x4xf32> to vector<2x1x9x9x4xf32>
    %8 = vector.shape_cast %7 : vector<2x1x9x9x4xf32> to vector<2x9x9x4xf32>
    %9 = vector.extract_strided_slice %8 {offsets = [0, 0, 0, 0], sizes = [2, 8, 8, 4], strides = [1, 1, 1, 1]} : vector<2x9x9x4xf32> to vector<2x8x8x4xf32>
    %10 = vector.extract_strided_slice %8 {offsets = [0, 0, 1, 0], sizes = [2, 8, 8, 4], strides = [1, 1, 1, 1]} : vector<2x9x9x4xf32> to vector<2x8x8x4xf32>
    %11 = vector.extract_strided_slice %8 {offsets = [0, 1, 0, 0], sizes = [2, 8, 8, 4], strides = [1, 1, 1, 1]} : vector<2x9x9x4xf32> to vector<2x8x8x4xf32>
    %12 = vector.extract_strided_slice %8 {offsets = [0, 1, 1, 0], sizes = [2, 8, 8, 4], strides = [1, 1, 1, 1]} : vector<2x9x9x4xf32> to vector<2x8x8x4xf32>
    %13 = vector.extract_strided_slice %0 {offsets = [0, 2, 0, 0, 0], sizes = [2, 1, 9, 9, 4], strides = [1, 1, 1, 1, 1]} : vector<2x4x9x9x4xf32> to vector<2x1x9x9x4xf32>
    %14 = vector.shape_cast %13 : vector<2x1x9x9x4xf32> to vector<2x9x9x4xf32>
    %15 = vector.extract_strided_slice %14 {offsets = [0, 0, 0, 0], sizes = [2, 8, 8, 4], strides = [1, 1, 1, 1]} : vector<2x9x9x4xf32> to vector<2x8x8x4xf32>
    %16 = vector.extract_strided_slice %14 {offsets = [0, 0, 1, 0], sizes = [2, 8, 8, 4], strides = [1, 1, 1, 1]} : vector<2x9x9x4xf32> to vector<2x8x8x4xf32>
    %17 = vector.extract_strided_slice %14 {offsets = [0, 1, 0, 0], sizes = [2, 8, 8, 4], strides = [1, 1, 1, 1]} : vector<2x9x9x4xf32> to vector<2x8x8x4xf32>
    %18 = vector.extract_strided_slice %14 {offsets = [0, 1, 1, 0], sizes = [2, 8, 8, 4], strides = [1, 1, 1, 1]} : vector<2x9x9x4xf32> to vector<2x8x8x4xf32>
    %19 = vector.extract_strided_slice %0 {offsets = [0, 3, 0, 0, 0], sizes = [2, 1, 9, 9, 4], strides = [1, 1, 1, 1, 1]} : vector<2x4x9x9x4xf32> to vector<2x1x9x9x4xf32>
    %20 = vector.shape_cast %19 : vector<2x1x9x9x4xf32> to vector<2x9x9x4xf32>
    %21 = vector.extract_strided_slice %20 {offsets = [0, 0, 0, 0], sizes = [2, 8, 8, 4], strides = [1, 1, 1, 1]} : vector<2x9x9x4xf32> to vector<2x8x8x4xf32>
    %22 = vector.extract_strided_slice %20 {offsets = [0, 0, 1, 0], sizes = [2, 8, 8, 4], strides = [1, 1, 1, 1]} : vector<2x9x9x4xf32> to vector<2x8x8x4xf32>
    %23 = vector.extract_strided_slice %20 {offsets = [0, 1, 0, 0], sizes = [2, 8, 8, 4], strides = [1, 1, 1, 1]} : vector<2x9x9x4xf32> to vector<2x8x8x4xf32>
    %24 = vector.extract_strided_slice %20 {offsets = [0, 1, 1, 0], sizes = [2, 8, 8, 4], strides = [1, 1, 1, 1]} : vector<2x9x9x4xf32> to vector<2x8x8x4xf32>
    %25 = tpu.concatenate %3, %4, %5, %6, %9, %10, %11, %12, %15, %16, %17, %18, %21, %22, %23, %24 in 3 : vector<2x8x8x4xf32>, vector<2x8x8x4xf32>, vector<2x8x8x4xf32>, vector<2x8x8x4xf32>, vector<2x8x8x4xf32>, vector<2x8x8x4xf32>, vector<2x8x8x4xf32>, vector<2x8x8x4xf32>, vector<2x8x8x4xf32>, vector<2x8x8x4xf32>, vector<2x8x8x4xf32>, vector<2x8x8x4xf32>, vector<2x8x8x4xf32>, vector<2x8x8x4xf32>, vector<2x8x8x4xf32>, vector<2x8x8x4xf32> -> vector<2x8x8x64xf32>
    %26 = vector.shape_cast %25 : vector<2x8x8x64xf32> to vector<128x64xf32>
    %27 = arith.truncf %26 : vector<128x64xf32> to vector<128x64xbf16>
    %c0_4 = arith.constant 0 : index
    %c0_5 = arith.constant 0 : index
    %28 = vector.load %arg2[%c0_4, %c0_5] : memref<64x8xbf16, #tpu.memory_space<vmem>>, vector<64x8xbf16>
    %cst = arith.constant dense<0.000000e+00> : vector<128x8xf32>
    %29 = tpu.matmul %27, %28, %cst {dimension_numbers = #tpu.dot_dimension_numbers<[1], [0], [0], [1], [0, 0, 1, 1], [], []>} : vector<128x64xbf16>, vector<64x8xbf16>, vector<128x8xf32> -> vector<128x8xf32>
    %cst_6 = arith.constant 0.000000e+00 : f32
    %30 = vector.broadcast %cst_6 : f32 to vector<128x8xf32>
    %31 = arith.maximumf %29, %30 : vector<128x8xf32>
    %32 = vector.shape_cast %31 : vector<128x8xf32> to vector<2x8x8x8xf32>
    %cst_7 = arith.constant 0.000000e+00 : f32
    %33 = vector.broadcast %cst_7 : f32 to vector<2x8x1x8xf32>
    %34 = tpu.concatenate %33, %32, %33 in 2 : vector<2x8x1x8xf32>, vector<2x8x8x8xf32>, vector<2x8x1x8xf32> -> vector<2x8x10x8xf32>
    %cst_8 = arith.constant 0.000000e+00 : f32
    %35 = vector.broadcast %cst_8 : f32 to vector<2x1x10x8xf32>
    %36 = tpu.concatenate %35, %34, %35 in 1 : vector<2x1x10x8xf32>, vector<2x8x10x8xf32>, vector<2x1x10x8xf32> -> vector<2x10x10x8xf32>
    %cst_9 = arith.constant 0.000000e+00 : f32
    %37 = vector.broadcast %cst_9 : f32 to vector<1x4xf32>
    %cst_10 = arith.constant 0.000000e+00 : f32
    %38 = vector.broadcast %cst_10 : f32 to vector<1x4xf32>
    %39 = vector.extract_strided_slice %36 {offsets = [0, 1, 1, 0], sizes = [2, 8, 8, 8], strides = [1, 1, 1, 1]} : vector<2x10x10x8xf32> to vector<2x8x8x8xf32>
    %40 = vector.extract_strided_slice %36 {offsets = [0, 1, 0, 0], sizes = [2, 8, 8, 8], strides = [1, 1, 1, 1]} : vector<2x10x10x8xf32> to vector<2x8x8x8xf32>
    %41 = vector.extract_strided_slice %36 {offsets = [0, 0, 1, 0], sizes = [2, 8, 8, 8], strides = [1, 1, 1, 1]} : vector<2x10x10x8xf32> to vector<2x8x8x8xf32>
    %42 = vector.extract_strided_slice %36 {offsets = [0, 0, 0, 0], sizes = [2, 8, 8, 8], strides = [1, 1, 1, 1]} : vector<2x10x10x8xf32> to vector<2x8x8x8xf32>
    %43 = tpu.concatenate %39, %40, %41, %42 in 3 : vector<2x8x8x8xf32>, vector<2x8x8x8xf32>, vector<2x8x8x8xf32>, vector<2x8x8x8xf32> -> vector<2x8x8x32xf32>
    %44 = vector.shape_cast %43 : vector<2x8x8x32xf32> to vector<128x32xf32>
    %45 = arith.truncf %44 : vector<128x32xf32> to vector<128x32xbf16>
    %c0_11 = arith.constant 0 : index
    %c0_12 = arith.constant 0 : index
    %c0_13 = arith.constant 0 : index
    %46 = vector.load %arg3[%c0_11, %c0_12, %c0_13] : memref<4x32x4xbf16, #tpu.memory_space<vmem>>, vector<1x32x4xbf16>
    %47 = vector.shape_cast %46 : vector<1x32x4xbf16> to vector<32x4xbf16>
    %cst_14 = arith.constant dense<0.000000e+00> : vector<128x4xf32>
    %48 = tpu.matmul %45, %47, %cst_14 {dimension_numbers = #tpu.dot_dimension_numbers<[1], [0], [0], [1], [0, 0, 1, 1], [], []>} : vector<128x32xbf16>, vector<32x4xbf16>, vector<128x4xf32> -> vector<128x4xf32>
    %cst_15 = arith.constant dense<0.000000e+00> : vector<4xf32>
    %49 = vector.multi_reduction <add>, %48, %cst_15 [0] : vector<128x4xf32> to vector<4xf32>
    %50 = vector.shape_cast %49 : vector<4xf32> to vector<1x4xf32>
    %51 = arith.addf %37, %50 : vector<1x4xf32>
    %52 = arith.mulf %48, %48 : vector<128x4xf32>
    %cst_16 = arith.constant dense<0.000000e+00> : vector<4xf32>
    %53 = vector.multi_reduction <add>, %52, %cst_16 [0] : vector<128x4xf32> to vector<4xf32>
    %54 = vector.shape_cast %53 : vector<4xf32> to vector<1x4xf32>
    %55 = arith.addf %38, %54 : vector<1x4xf32>
    %56 = vector.extract_strided_slice %0 {offsets = [0, 3, 0, 0, 0], sizes = [2, 1, 9, 9, 4], strides = [1, 1, 1, 1, 1]} : vector<2x4x9x9x4xf32> to vector<2x1x9x9x4xf32>
    %57 = vector.shape_cast %56 : vector<2x1x9x9x4xf32> to vector<2x9x9x4xf32>
    %58 = vector.extract_strided_slice %57 {offsets = [0, 0, 0, 0], sizes = [2, 8, 8, 4], strides = [1, 1, 1, 1]} : vector<2x9x9x4xf32> to vector<2x8x8x4xf32>
    %59 = vector.shape_cast %58 : vector<2x8x8x4xf32> to vector<128x4xf32>
    %60 = tpu.concatenate %59, %48 in 1 : vector<128x4xf32>, vector<128x4xf32> -> vector<128x8xf32>
    %61 = tpu.transpose %60, [1, 0] : vector<128x8xf32> -> vector<8x128xf32>
    %62 = vector.extract_strided_slice %61 {offsets = [0, 0], sizes = [8, 64], strides = [1, 1]} : vector<8x128xf32> to vector<8x64xf32>
    %63 = vector.extract_strided_slice %61 {offsets = [0, 64], sizes = [8, 64], strides = [1, 1]} : vector<8x128xf32> to vector<8x64xf32>
    %64 = vector.extract_strided_slice %36 {offsets = [0, 1, 2, 0], sizes = [2, 8, 8, 8], strides = [1, 1, 1, 1]} : vector<2x10x10x8xf32> to vector<2x8x8x8xf32>
    %65 = vector.extract_strided_slice %36 {offsets = [0, 1, 1, 0], sizes = [2, 8, 8, 8], strides = [1, 1, 1, 1]} : vector<2x10x10x8xf32> to vector<2x8x8x8xf32>
    %66 = vector.extract_strided_slice %36 {offsets = [0, 0, 2, 0], sizes = [2, 8, 8, 8], strides = [1, 1, 1, 1]} : vector<2x10x10x8xf32> to vector<2x8x8x8xf32>
    %67 = vector.extract_strided_slice %36 {offsets = [0, 0, 1, 0], sizes = [2, 8, 8, 8], strides = [1, 1, 1, 1]} : vector<2x10x10x8xf32> to vector<2x8x8x8xf32>
    %68 = tpu.concatenate %64, %65, %66, %67 in 3 : vector<2x8x8x8xf32>, vector<2x8x8x8xf32>, vector<2x8x8x8xf32>, vector<2x8x8x8xf32> -> vector<2x8x8x32xf32>
    %69 = vector.shape_cast %68 : vector<2x8x8x32xf32> to vector<128x32xf32>
    %70 = arith.truncf %69 : vector<128x32xf32> to vector<128x32xbf16>
    %c1 = arith.constant 1 : index
    %c0_17 = arith.constant 0 : index
    %c0_18 = arith.constant 0 : index
    %71 = vector.load %arg3[%c1, %c0_17, %c0_18] : memref<4x32x4xbf16, #tpu.memory_space<vmem>>, vector<1x32x4xbf16>
    %72 = vector.shape_cast %71 : vector<1x32x4xbf16> to vector<32x4xbf16>
    %cst_19 = arith.constant dense<0.000000e+00> : vector<128x4xf32>
    %73 = tpu.matmul %70, %72, %cst_19 {dimension_numbers = #tpu.dot_dimension_numbers<[1], [0], [0], [1], [0, 0, 1, 1], [], []>} : vector<128x32xbf16>, vector<32x4xbf16>, vector<128x4xf32> -> vector<128x4xf32>
    %cst_20 = arith.constant dense<0.000000e+00> : vector<4xf32>
    %74 = vector.multi_reduction <add>, %73, %cst_20 [0] : vector<128x4xf32> to vector<4xf32>
    %75 = vector.shape_cast %74 : vector<4xf32> to vector<1x4xf32>
    %76 = arith.addf %51, %75 : vector<1x4xf32>
    %77 = arith.mulf %73, %73 : vector<128x4xf32>
    %cst_21 = arith.constant dense<0.000000e+00> : vector<4xf32>
    %78 = vector.multi_reduction <add>, %77, %cst_21 [0] : vector<128x4xf32> to vector<4xf32>
    %79 = vector.shape_cast %78 : vector<4xf32> to vector<1x4xf32>
    %80 = arith.addf %55, %79 : vector<1x4xf32>
    %81 = vector.extract_strided_slice %0 {offsets = [0, 2, 0, 0, 0], sizes = [2, 1, 9, 9, 4], strides = [1, 1, 1, 1, 1]} : vector<2x4x9x9x4xf32> to vector<2x1x9x9x4xf32>
    %82 = vector.shape_cast %81 : vector<2x1x9x9x4xf32> to vector<2x9x9x4xf32>
    %83 = vector.extract_strided_slice %82 {offsets = [0, 0, 1, 0], sizes = [2, 8, 8, 4], strides = [1, 1, 1, 1]} : vector<2x9x9x4xf32> to vector<2x8x8x4xf32>
    %84 = vector.shape_cast %83 : vector<2x8x8x4xf32> to vector<128x4xf32>
    %85 = tpu.concatenate %84, %73 in 1 : vector<128x4xf32>, vector<128x4xf32> -> vector<128x8xf32>
    %86 = tpu.transpose %85, [1, 0] : vector<128x8xf32> -> vector<8x128xf32>
    %87 = vector.extract_strided_slice %86 {offsets = [0, 0], sizes = [8, 64], strides = [1, 1]} : vector<8x128xf32> to vector<8x64xf32>
    %88 = vector.extract_strided_slice %86 {offsets = [0, 64], sizes = [8, 64], strides = [1, 1]} : vector<8x128xf32> to vector<8x64xf32>
    %89 = vector.extract_strided_slice %36 {offsets = [0, 2, 1, 0], sizes = [2, 8, 8, 8], strides = [1, 1, 1, 1]} : vector<2x10x10x8xf32> to vector<2x8x8x8xf32>
    %90 = vector.extract_strided_slice %36 {offsets = [0, 2, 0, 0], sizes = [2, 8, 8, 8], strides = [1, 1, 1, 1]} : vector<2x10x10x8xf32> to vector<2x8x8x8xf32>
    %91 = vector.extract_strided_slice %36 {offsets = [0, 1, 1, 0], sizes = [2, 8, 8, 8], strides = [1, 1, 1, 1]} : vector<2x10x10x8xf32> to vector<2x8x8x8xf32>
    %92 = vector.extract_strided_slice %36 {offsets = [0, 1, 0, 0], sizes = [2, 8, 8, 8], strides = [1, 1, 1, 1]} : vector<2x10x10x8xf32> to vector<2x8x8x8xf32>
    %93 = tpu.concatenate %89, %90, %91, %92 in 3 : vector<2x8x8x8xf32>, vector<2x8x8x8xf32>, vector<2x8x8x8xf32>, vector<2x8x8x8xf32> -> vector<2x8x8x32xf32>
    %94 = vector.shape_cast %93 : vector<2x8x8x32xf32> to vector<128x32xf32>
    %95 = arith.truncf %94 : vector<128x32xf32> to vector<128x32xbf16>
    %c2 = arith.constant 2 : index
    %c0_22 = arith.constant 0 : index
    %c0_23 = arith.constant 0 : index
    %96 = vector.load %arg3[%c2, %c0_22, %c0_23] : memref<4x32x4xbf16, #tpu.memory_space<vmem>>, vector<1x32x4xbf16>
    %97 = vector.shape_cast %96 : vector<1x32x4xbf16> to vector<32x4xbf16>
    %cst_24 = arith.constant dense<0.000000e+00> : vector<128x4xf32>
    %98 = tpu.matmul %95, %97, %cst_24 {dimension_numbers = #tpu.dot_dimension_numbers<[1], [0], [0], [1], [0, 0, 1, 1], [], []>} : vector<128x32xbf16>, vector<32x4xbf16>, vector<128x4xf32> -> vector<128x4xf32>
    %cst_25 = arith.constant dense<0.000000e+00> : vector<4xf32>
    %99 = vector.multi_reduction <add>, %98, %cst_25 [0] : vector<128x4xf32> to vector<4xf32>
    %100 = vector.shape_cast %99 : vector<4xf32> to vector<1x4xf32>
    %101 = arith.addf %76, %100 : vector<1x4xf32>
    %102 = arith.mulf %98, %98 : vector<128x4xf32>
    %cst_26 = arith.constant dense<0.000000e+00> : vector<4xf32>
    %103 = vector.multi_reduction <add>, %102, %cst_26 [0] : vector<128x4xf32> to vector<4xf32>
    %104 = vector.shape_cast %103 : vector<4xf32> to vector<1x4xf32>
    %105 = arith.addf %80, %104 : vector<1x4xf32>
    %106 = vector.extract_strided_slice %0 {offsets = [0, 1, 0, 0, 0], sizes = [2, 1, 9, 9, 4], strides = [1, 1, 1, 1, 1]} : vector<2x4x9x9x4xf32> to vector<2x1x9x9x4xf32>
    %107 = vector.shape_cast %106 : vector<2x1x9x9x4xf32> to vector<2x9x9x4xf32>
    %108 = vector.extract_strided_slice %107 {offsets = [0, 1, 0, 0], sizes = [2, 8, 8, 4], strides = [1, 1, 1, 1]} : vector<2x9x9x4xf32> to vector<2x8x8x4xf32>
    %109 = vector.shape_cast %108 : vector<2x8x8x4xf32> to vector<128x4xf32>
    %110 = tpu.concatenate %109, %98 in 1 : vector<128x4xf32>, vector<128x4xf32> -> vector<128x8xf32>
    %111 = tpu.transpose %110, [1, 0] : vector<128x8xf32> -> vector<8x128xf32>
    %112 = vector.extract_strided_slice %111 {offsets = [0, 0], sizes = [8, 64], strides = [1, 1]} : vector<8x128xf32> to vector<8x64xf32>
    %113 = vector.extract_strided_slice %111 {offsets = [0, 64], sizes = [8, 64], strides = [1, 1]} : vector<8x128xf32> to vector<8x64xf32>
    %114 = vector.extract_strided_slice %36 {offsets = [0, 2, 2, 0], sizes = [2, 8, 8, 8], strides = [1, 1, 1, 1]} : vector<2x10x10x8xf32> to vector<2x8x8x8xf32>
    %115 = vector.extract_strided_slice %36 {offsets = [0, 2, 1, 0], sizes = [2, 8, 8, 8], strides = [1, 1, 1, 1]} : vector<2x10x10x8xf32> to vector<2x8x8x8xf32>
    %116 = vector.extract_strided_slice %36 {offsets = [0, 1, 2, 0], sizes = [2, 8, 8, 8], strides = [1, 1, 1, 1]} : vector<2x10x10x8xf32> to vector<2x8x8x8xf32>
    %117 = vector.extract_strided_slice %36 {offsets = [0, 1, 1, 0], sizes = [2, 8, 8, 8], strides = [1, 1, 1, 1]} : vector<2x10x10x8xf32> to vector<2x8x8x8xf32>
    %118 = tpu.concatenate %114, %115, %116, %117 in 3 : vector<2x8x8x8xf32>, vector<2x8x8x8xf32>, vector<2x8x8x8xf32>, vector<2x8x8x8xf32> -> vector<2x8x8x32xf32>
    %119 = vector.shape_cast %118 : vector<2x8x8x32xf32> to vector<128x32xf32>
    %120 = arith.truncf %119 : vector<128x32xf32> to vector<128x32xbf16>
    %c3 = arith.constant 3 : index
    %c0_27 = arith.constant 0 : index
    %c0_28 = arith.constant 0 : index
    %121 = vector.load %arg3[%c3, %c0_27, %c0_28] : memref<4x32x4xbf16, #tpu.memory_space<vmem>>, vector<1x32x4xbf16>
    %122 = vector.shape_cast %121 : vector<1x32x4xbf16> to vector<32x4xbf16>
    %cst_29 = arith.constant dense<0.000000e+00> : vector<128x4xf32>
    %123 = tpu.matmul %120, %122, %cst_29 {dimension_numbers = #tpu.dot_dimension_numbers<[1], [0], [0], [1], [0, 0, 1, 1], [], []>} : vector<128x32xbf16>, vector<32x4xbf16>, vector<128x4xf32> -> vector<128x4xf32>
    %cst_30 = arith.constant dense<0.000000e+00> : vector<4xf32>
    %124 = vector.multi_reduction <add>, %123, %cst_30 [0] : vector<128x4xf32> to vector<4xf32>
    %125 = vector.shape_cast %124 : vector<4xf32> to vector<1x4xf32>
    %126 = arith.addf %101, %125 : vector<1x4xf32>
    %127 = arith.mulf %123, %123 : vector<128x4xf32>
    %cst_31 = arith.constant dense<0.000000e+00> : vector<4xf32>
    %128 = vector.multi_reduction <add>, %127, %cst_31 [0] : vector<128x4xf32> to vector<4xf32>
    %129 = vector.shape_cast %128 : vector<4xf32> to vector<1x4xf32>
    %130 = arith.addf %105, %129 : vector<1x4xf32>
    %131 = vector.extract_strided_slice %0 {offsets = [0, 0, 0, 0, 0], sizes = [2, 1, 9, 9, 4], strides = [1, 1, 1, 1, 1]} : vector<2x4x9x9x4xf32> to vector<2x1x9x9x4xf32>
    %132 = vector.shape_cast %131 : vector<2x1x9x9x4xf32> to vector<2x9x9x4xf32>
    %133 = vector.extract_strided_slice %132 {offsets = [0, 1, 1, 0], sizes = [2, 8, 8, 4], strides = [1, 1, 1, 1]} : vector<2x9x9x4xf32> to vector<2x8x8x4xf32>
    %134 = vector.shape_cast %133 : vector<2x8x8x4xf32> to vector<128x4xf32>
    %135 = tpu.concatenate %134, %123 in 1 : vector<128x4xf32>, vector<128x4xf32> -> vector<128x8xf32>
    %136 = tpu.transpose %135, [1, 0] : vector<128x8xf32> -> vector<8x128xf32>
    %137 = vector.extract_strided_slice %136 {offsets = [0, 0], sizes = [8, 64], strides = [1, 1]} : vector<8x128xf32> to vector<8x64xf32>
    %138 = vector.extract_strided_slice %136 {offsets = [0, 64], sizes = [8, 64], strides = [1, 1]} : vector<8x128xf32> to vector<8x64xf32>
    %139 = tpu.concatenate %62, %87, %112, %137 in 1 : vector<8x64xf32>, vector<8x64xf32>, vector<8x64xf32>, vector<8x64xf32> -> vector<8x256xf32>
    %c0_32 = arith.constant 0 : index
    %c0_33 = arith.constant 0 : index
    %c0_34 = arith.constant 0 : index
    %140 = vector.load %arg4[%c0_32, %c0_33, %c0_34] : memref<2x8x256xf32, #tpu.memory_space<vmem>>, vector<1x8x256xf32>
    %141 = vector.shape_cast %140 : vector<1x8x256xf32> to vector<8x256xf32>
    %142 = vector.shape_cast %139 : vector<8x256xf32> to vector<1x8x256xf32>
    tpu.vector_store %arg4[%c0_32, %c0_33, %c0_34], %142 {strides = array<i32>} : memref<2x8x256xf32, #tpu.memory_space<vmem>>, vector<1x8x256xf32>,
    %143 = tpu.concatenate %63, %88, %113, %138 in 1 : vector<8x64xf32>, vector<8x64xf32>, vector<8x64xf32>, vector<8x64xf32> -> vector<8x256xf32>
    %c1_35 = arith.constant 1 : index
    %c0_36 = arith.constant 0 : index
    %c0_37 = arith.constant 0 : index
    %144 = vector.load %arg4[%c1_35, %c0_36, %c0_37] : memref<2x8x256xf32, #tpu.memory_space<vmem>>, vector<1x8x256xf32>
    %145 = vector.shape_cast %144 : vector<1x8x256xf32> to vector<8x256xf32>
    %146 = vector.shape_cast %143 : vector<8x256xf32> to vector<1x8x256xf32>
    tpu.vector_store %arg4[%c1_35, %c0_36, %c0_37], %146 {strides = array<i32>} : memref<2x8x256xf32, #tpu.memory_space<vmem>>, vector<1x8x256xf32>,
    %147 = tpu.concatenate %126, %130 in 0 : vector<1x4xf32>, vector<1x4xf32> -> vector<2x4xf32>
    %148 = vector.shape_cast %147 : vector<2x4xf32> to vector<1x2x4xf32>
    %c0_38 = arith.constant 0 : index
    %c0_39 = arith.constant 0 : index
    %c0_40 = arith.constant 0 : index
    %149 = vector.load %arg5[%c0_38, %c0_39, %c0_40] : memref<1x2x4xf32, #tpu.memory_space<vmem>>, vector<1x2x4xf32>
    tpu.vector_store %arg5[%c0_38, %c0_39, %c0_40], %148 {strides = array<i32>} : memref<1x2x4xf32, #tpu.memory_space<vmem>>, vector<1x2x4xf32>,
    return
  }
  func.func @transform_0(%arg0: i32) -> (i32, i32, i32, i32, i32) {
    %c0_i32 = arith.constant 0 : i32
    %c0_i32_0 = arith.constant 0 : i32
    %c0_i32_1 = arith.constant 0 : i32
    %c0_i32_2 = arith.constant 0 : i32
    %c0_i32_3 = arith.constant 0 : i32
    return %arg0, %c0_i32, %c0_i32_0, %c0_i32_1, %c0_i32_2 : i32, i32, i32, i32, i32
  }
  func.func @transform_1(%arg0: i32) -> (i32, i32) {
    %c0_i32 = arith.constant 0 : i32
    %c0_i32_0 = arith.constant 0 : i32
    %c0_i32_1 = arith.constant 0 : i32
    return %c0_i32, %c0_i32_0 : i32, i32
  }
  func.func @transform_2(%arg0: i32) -> (i32, i32, i32) {
    %c0_i32 = arith.constant 0 : i32
    %c0_i32_0 = arith.constant 0 : i32
    %c0_i32_1 = arith.constant 0 : i32
    %c0_i32_2 = arith.constant 0 : i32
    return %c0_i32, %c0_i32_0, %c0_i32_1 : i32, i32, i32
  }
  func.func @transform_3(%arg0: i32) -> (i32, i32, i32) {
    %c0_i32 = arith.constant 0 : i32
    %c0_i32_0 = arith.constant 0 : i32
    %c0_i32_1 = arith.constant 0 : i32
    return %arg0, %c0_i32, %c0_i32_0 : i32, i32, i32
  }
  func.func @transform_4(%arg0: i32) -> (i32, i32, i32) {
    %c0_i32 = arith.constant 0 : i32
    %c0_i32_0 = arith.constant 0 : i32
    %c0_i32_1 = arith.constant 0 : i32
    return %arg0, %c0_i32, %c0_i32_0 : i32, i32, i32
  }
}

</mosaic_0001>

<llo_original>
// kernel: unet_innermost_forward.1
$region0: #{unet_innermost_forward.1}
  #allocation0 [shape = 'u32[]', space=smem, size = 0x4, offset = 0x4, fixed_abs, tag = 'smem constant byte address 0x4 - core index']
  #allocation1 [shape = 'u32[144,128]{1,0:T(1,128)}', space=vmem, size = 0x12000, scoped, tag = 'internal scratch']
  %s0 = inlined_call_operand.vmem [shape: f32[2,4,9,9,4], index: 0, kind: input, shape index: {}]
  %s1 = inlined_call_operand.vmem [shape: bf16[64,8], index: 1, kind: input, shape index: {}]
  %s2 = inlined_call_operand.vmem [shape: bf16[4,32,4], index: 2, kind: input, shape index: {}]
  %s3 = inlined_call_operand.vmem [shape: f32[2,8,256], index: 3, kind: output, shape index: {0}]
  %s4 = inlined_call_operand.vmem [shape: f32[1,2,4], index: 4, kind: output, shape index: {1}]
  %5 = xla_tuple %s3, %s4
  %s6 = sld [smem:[#allocation0]]
  $region30: #{unet_innermost_forward.1} parent=0
    _
  %s8 = ssub.s32 1, %s6
  %s9 = scalar_select 0, %s8, %s6
  // Predicated region
  $region2: #{unet_innermost_forward.1} parent=0 // pred_check
    _
  $region3: #{unet_innermost_forward.1} parent=0 // pred_check_branch
    %11 = sbr.rel (0) target = $region5
  $region4: #{unet_innermost_forward.1} parent=0 // pred_region
    _
  $region5: #{unet_innermost_forward.1} parent=0 // pred_fallthru
    _
  // Predicated region
  $region6: #{unet_innermost_forward.1} parent=0 // pred_check
    _
  $region7: #{unet_innermost_forward.1} parent=0 // pred_check_branch
    %13 = sbr.rel (0) target = $region9
  $region8: #{unet_innermost_forward.1} parent=0 // pred_region
    _
  $region9: #{unet_innermost_forward.1} parent=0 // pred_fallthru
    _
  // Predicated region
  $region10: #{unet_innermost_forward.1} parent=0 // pred_check
    _
  $region11: #{unet_innermost_forward.1} parent=0 // pred_check_branch
    %15 = sbr.rel (0) target = $region13
  $region12: #{unet_innermost_forward.1} parent=0 // pred_region
    _
  $region13: #{unet_innermost_forward.1} parent=0 // pred_fallthru
    _
  %v17 = vld [vmem:[%s0] sm:$0xff]
  %v18 = vld [vmem:[%s0 + $0x8] sm:$0x1]
  %v19 = vld [vmem:[%s0 + $0x10] sm:$0xff]
  %v20 = vld [vmem:[%s0 + $0x18] sm:$0x1]
  %v21 = vld [vmem:[%s0 + $0x20] sm:$0xff]
  %v22 = vld [vmem:[%s0 + $0x28] sm:$0x1]
  %v23 = vld [vmem:[%s0 + $0x30] sm:$0xff]
  %v24 = vld [vmem:[%s0 + $0x38] sm:$0x1]
  %v25 = vld [vmem:[%s0 + $0x40] sm:$0xff]
  %v26 = vld [vmem:[%s0 + $0x48] sm:$0x1]
  %v27 = vld [vmem:[%s0 + $0x50] sm:$0xff]
  %v28 = vld [vmem:[%s0 + $0x58] sm:$0x1]
  %v29 = vld [vmem:[%s0 + $0x60] sm:$0xff]
  %v30 = vld [vmem:[%s0 + $0x68] sm:$0x1]
  %v31 = vld [vmem:[%s0 + $0x70] sm:$0xff]
  %v32 = vld [vmem:[%s0 + $0x78] sm:$0x1]
  %v33 = vld [vmem:[%s0 + $0x80] sm:$0xff]
  %v34 = vld [vmem:[%s0 + $0x88] sm:$0x1]
  %v35 = vld [vmem:[%s0 + $0x90] sm:$0xff]
  %v36 = vld [vmem:[%s0 + $0x98] sm:$0x1]
  %v37 = vld [vmem:[%s0 + $0xa0] sm:$0xff]
  %v38 = vld [vmem:[%s0 + $0xa8] sm:$0x1]
  %v39 = vld [vmem:[%s0 + $0xb0] sm:$0xff]
  %v40 = vld [vmem:[%s0 + $0xb8] sm:$0x1]
  %v41 = vld [vmem:[%s0 + $0xc0] sm:$0xff]
  %v42 = vld [vmem:[%s0 + $0xc8] sm:$0x1]
  %v43 = vld [vmem:[%s0 + $0xd0] sm:$0xff]
  %v44 = vld [vmem:[%s0 + $0xd8] sm:$0x1]
  %v45 = vld [vmem:[%s0 + $0xe0] sm:$0xff]
  %v46 = vld [vmem:[%s0 + $0xe8] sm:$0x1]
  %v47 = vld [vmem:[%s0 + $0xf0] sm:$0xff]
  %v48 = vld [vmem:[%s0 + $0xf8] sm:$0x1]
  %v49 = vld [vmem:[%s0 + $0x100] sm:$0xff]
  %v50 = vld [vmem:[%s0 + $0x108] sm:$0x1]
  %v51 = vld [vmem:[%s0 + $0x110] sm:$0xff]
  %v52 = vld [vmem:[%s0 + $0x118] sm:$0x1]
  %v53 = vld [vmem:[%s0 + $0x120] sm:$0xff]
  %v54 = vld [vmem:[%s0 + $0x128] sm:$0x1]
  %v55 = vld [vmem:[%s0 + $0x130] sm:$0xff]
  %v56 = vld [vmem:[%s0 + $0x138] sm:$0x1]
  %v57 = vld [vmem:[%s0 + $0x140] sm:$0xff]
  %v58 = vld [vmem:[%s0 + $0x148] sm:$0x1]
  %v59 = vld [vmem:[%s0 + $0x150] sm:$0xff]
  %v60 = vld [vmem:[%s0 + $0x158] sm:$0x1]
  %v61 = vld [vmem:[%s0 + $0x160] sm:$0xff]
  %v62 = vld [vmem:[%s0 + $0x168] sm:$0x1]
  %v63 = vld [vmem:[%s0 + $0x170] sm:$0xff]
  %v64 = vld [vmem:[%s0 + $0x178] sm:$0x1]
  %v65 = vld [vmem:[%s0 + $0x180] sm:$0xff]
  %v66 = vld [vmem:[%s0 + $0x188] sm:$0x1]
  %v67 = vld [vmem:[%s0 + $0x190] sm:$0xff]
  %v68 = vld [vmem:[%s0 + $0x198] sm:$0x1]
  %v69 = vld [vmem:[%s0 + $0x1a0] sm:$0xff]
  %v70 = vld [vmem:[%s0 + $0x1a8] sm:$0x1]
  %v71 = vld [vmem:[%s0 + $0x1b0] sm:$0xff]
  %v72 = vld [vmem:[%s0 + $0x1b8] sm:$0x1]
  %v73 = vld [vmem:[%s0 + $0x1c0] sm:$0xff]
  %v74 = vld [vmem:[%s0 + $0x1c8] sm:$0x1]
  %v75 = vld [vmem:[%s0 + $0x1d0] sm:$0xff]
  %v76 = vld [vmem:[%s0 + $0x1d8] sm:$0x1]
  %v77 = vld [vmem:[%s0 + $0x1e0] sm:$0xff]
  %v78 = vld [vmem:[%s0 + $0x1e8] sm:$0x1]
  %v79 = vld [vmem:[%s0 + $0x1f0] sm:$0xff]
  %v80 = vld [vmem:[%s0 + $0x1f8] sm:$0x1]
  %v81 = vld [vmem:[%s0 + $0x200] sm:$0xff]
  %v82 = vld [vmem:[%s0 + $0x208] sm:$0x1]
  %v83 = vld [vmem:[%s0 + $0x210] sm:$0xff]
  %v84 = vld [vmem:[%s0 + $0x218] sm:$0x1]
  %v85 = vld [vmem:[%s0 + $0x220] sm:$0xff]
  %v86 = vld [vmem:[%s0 + $0x228] sm:$0x1]
  %v87 = vld [vmem:[%s0 + $0x230] sm:$0xff]
  %v88 = vld [vmem:[%s0 + $0x238] sm:$0x1]
  %v89 = vld [vmem:[%s0 + $0x240] sm:$0xff]
  %v90 = vld [vmem:[%s0 + $0x248] sm:$0x1]
  %v91 = vld [vmem:[%s0 + $0x250] sm:$0xff]
  %v92 = vld [vmem:[%s0 + $0x258] sm:$0x1]
  %v93 = vld [vmem:[%s0 + $0x260] sm:$0xff]
  %v94 = vld [vmem:[%s0 + $0x268] sm:$0x1]
  %v95 = vld [vmem:[%s0 + $0x270] sm:$0xff]
  %v96 = vld [vmem:[%s0 + $0x278] sm:$0x1]
  %v97 = vld [vmem:[%s0 + $0x280] sm:$0xff]
  %v98 = vld [vmem:[%s0 + $0x288] sm:$0x1]
  %v99 = vld [vmem:[%s0 + $0x290] sm:$0xff]
  %v100 = vld [vmem:[%s0 + $0x298] sm:$0x1]
  %v101 = vld [vmem:[%s0 + $0x2a0] sm:$0xff]
  %v102 = vld [vmem:[%s0 + $0x2a8] sm:$0x1]
  %v103 = vld [vmem:[%s0 + $0x2b0] sm:$0xff]
  %v104 = vld [vmem:[%s0 + $0x2b8] sm:$0x1]
  %v105 = vld [vmem:[%s0 + $0x2c0] sm:$0xff]
  %v106 = vld [vmem:[%s0 + $0x2c8] sm:$0x1]
  %v107 = vld [vmem:[%s0 + $0x2d0] sm:$0xff]
  %v108 = vld [vmem:[%s0 + $0x2d8] sm:$0x1]
  %v109 = vld [vmem:[%s0 + $0x2e0] sm:$0xff]
  %v110 = vld [vmem:[%s0 + $0x2e8] sm:$0x1]
  %v111 = vld [vmem:[%s0 + $0x2f0] sm:$0xff]
  %v112 = vld [vmem:[%s0 + $0x2f8] sm:$0x1]
  %v113 = vld [vmem:[%s0 + $0x300] sm:$0xff]
  %v114 = vld [vmem:[%s0 + $0x308] sm:$0x1]
  %v115 = vld [vmem:[%s0 + $0x310] sm:$0xff]
  %v116 = vld [vmem:[%s0 + $0x318] sm:$0x1]
  %v117 = vld [vmem:[%s0 + $0x320] sm:$0xff]
  %v118 = vld [vmem:[%s0 + $0x328] sm:$0x1]
  %v119 = vld [vmem:[%s0 + $0x330] sm:$0xff]
  %v120 = vld [vmem:[%s0 + $0x338] sm:$0x1]
  %v121 = vld [vmem:[%s0 + $0x340] sm:$0xff]
  %v122 = vld [vmem:[%s0 + $0x348] sm:$0x1]
  %v123 = vld [vmem:[%s0 + $0x350] sm:$0xff]
  %v124 = vld [vmem:[%s0 + $0x358] sm:$0x1]
  %v125 = vld [vmem:[%s0 + $0x360] sm:$0xff]
  %v126 = vld [vmem:[%s0 + $0x368] sm:$0x1]
  %v127 = vld [vmem:[%s0 + $0x370] sm:$0xff]
  %v128 = vld [vmem:[%s0 + $0x378] sm:$0x1]
  %v129 = vld [vmem:[%s0 + $0x380] sm:$0xff]
  %v130 = vld [vmem:[%s0 + $0x388] sm:$0x1]
  %v131 = vld [vmem:[%s0 + $0x390] sm:$0xff]
  %v132 = vld [vmem:[%s0 + $0x398] sm:$0x1]
  %v133 = vld [vmem:[%s0 + $0x3a0] sm:$0xff]
  %v134 = vld [vmem:[%s0 + $0x3a8] sm:$0x1]
  %v135 = vld [vmem:[%s0 + $0x3b0] sm:$0xff]
  %v136 = vld [vmem:[%s0 + $0x3b8] sm:$0x1]
  %v137 = vld [vmem:[%s0 + $0x3c0] sm:$0xff]
  %v138 = vld [vmem:[%s0 + $0x3c8] sm:$0x1]
  %v139 = vld [vmem:[%s0 + $0x3d0] sm:$0xff]
  %v140 = vld [vmem:[%s0 + $0x3d8] sm:$0x1]
  %v141 = vld [vmem:[%s0 + $0x3e0] sm:$0xff]
  %v142 = vld [vmem:[%s0 + $0x3e8] sm:$0x1]
  %v143 = vld [vmem:[%s0 + $0x3f0] sm:$0xff]
  %v144 = vld [vmem:[%s0 + $0x3f8] sm:$0x1]
  %v145 = vld [vmem:[%s0 + $0x400] sm:$0xff]
  %v146 = vld [vmem:[%s0 + $0x408] sm:$0x1]
  %v147 = vld [vmem:[%s0 + $0x410] sm:$0xff]
  %v148 = vld [vmem:[%s0 + $0x418] sm:$0x1]
  %v149 = vld [vmem:[%s0 + $0x420] sm:$0xff]
  %v150 = vld [vmem:[%s0 + $0x428] sm:$0x1]
  %v151 = vld [vmem:[%s0 + $0x430] sm:$0xff]
  %v152 = vld [vmem:[%s0 + $0x438] sm:$0x1]
  %v153 = vld [vmem:[%s0 + $0x440] sm:$0xff]
  %v154 = vld [vmem:[%s0 + $0x448] sm:$0x1]
  %v155 = vld [vmem:[%s0 + $0x450] sm:$0xff]
  %v156 = vld [vmem:[%s0 + $0x458] sm:$0x1]
  %v157 = vld [vmem:[%s0 + $0x460] sm:$0xff]
  %v158 = vld [vmem:[%s0 + $0x468] sm:$0x1]
  %v159 = vld [vmem:[%s0 + $0x470] sm:$0xff]
  %v160 = vld [vmem:[%s0 + $0x478] sm:$0x1]
  %vm193 = vcmask 1046528
  %v194 = vrot.slane %v17, 1
  %v195 = vrot.slane %v18, 1
  %v196 = vsel %vm193, %v194, %v195
  %v197 = vrot.slane %v19, 1
  %v198 = vrot.slane %v20, 1
  %v199 = vsel %vm193, %v197, %v198
  %v200 = vrot.slane %v21, 1
  %v201 = vrot.slane %v22, 1
  %v202 = vsel %vm193, %v200, %v201
  %v203 = vrot.slane %v23, 1
  %v204 = vrot.slane %v24, 1
  %v205 = vsel %vm193, %v203, %v204
  %v206 = vrot.slane %v25, 1
  %v207 = vrot.slane %v26, 1
  %v208 = vsel %vm193, %v206, %v207
  %v209 = vrot.slane %v27, 1
  %v210 = vrot.slane %v28, 1
  %v211 = vsel %vm193, %v209, %v210
  %v212 = vrot.slane %v29, 1
  %v213 = vrot.slane %v30, 1
  %v214 = vsel %vm193, %v212, %v213
  %v215 = vrot.slane %v31, 1
  %v216 = vrot.slane %v32, 1
  %v217 = vsel %vm193, %v215, %v216
  %v218 = vrot.slane %v89, 1
  %v219 = vrot.slane %v90, 1
  %v220 = vsel %vm193, %v218, %v219
  %v221 = vrot.slane %v91, 1
  %v222 = vrot.slane %v92, 1
  %v223 = vsel %vm193, %v221, %v222
  %v224 = vrot.slane %v93, 1
  %v225 = vrot.slane %v94, 1
  %v226 = vsel %vm193, %v224, %v225
  %v227 = vrot.slane %v95, 1
  %v228 = vrot.slane %v96, 1
  %v229 = vsel %vm193, %v227, %v228
  %v230 = vrot.slane %v97, 1
  %v231 = vrot.slane %v98, 1
  %v232 = vsel %vm193, %v230, %v231
  %v233 = vrot.slane %v99, 1
  %v234 = vrot.slane %v100, 1
  %v235 = vsel %vm193, %v233, %v234
  %v236 = vrot.slane %v101, 1
  %v237 = vrot.slane %v102, 1
  %v238 = vsel %vm193, %v236, %v237
  %v239 = vrot.slane %v103, 1
  %v240 = vrot.slane %v104, 1
  %v241 = vsel %vm193, %v239, %v240
  %242 = vrot.lane.b32.xlu0 %v196, 4
  %v243 = vpop.permute.xlu0 %242
  %244 = vrot.lane.b32.xlu0 %v199, 4
  %v245 = vpop.permute.xlu0 %244
  %246 = vrot.lane.b32.xlu0 %v202, 4
  %v247 = vpop.permute.xlu0 %246
  %248 = vrot.lane.b32.xlu0 %v205, 4
  %v249 = vpop.permute.xlu0 %248
  %250 = vrot.lane.b32.xlu0 %v208, 4
  %v251 = vpop.permute.xlu0 %250
  %252 = vrot.lane.b32.xlu0 %v211, 4
  %v253 = vpop.permute.xlu0 %252
  %254 = vrot.lane.b32.xlu0 %v214, 4
  %v255 = vpop.permute.xlu0 %254
  %256 = vrot.lane.b32.xlu0 %v217, 4
  %v257 = vpop.permute.xlu0 %256
  %258 = vrot.lane.b32.xlu0 %v220, 4
  %v259 = vpop.permute.xlu0 %258
  %260 = vrot.lane.b32.xlu0 %v223, 4
  %v261 = vpop.permute.xlu0 %260
  %262 = vrot.lane.b32.xlu0 %v226, 4
  %v263 = vpop.permute.xlu0 %262
  %264 = vrot.lane.b32.xlu0 %v229, 4
  %v265 = vpop.permute.xlu0 %264
  %266 = vrot.lane.b32.xlu0 %v232, 4
  %v267 = vpop.permute.xlu0 %266
  %268 = vrot.lane.b32.xlu0 %v235, 4
  %v269 = vpop.permute.xlu0 %268
  %270 = vrot.lane.b32.xlu0 %v238, 4
  %v271 = vpop.permute.xlu0 %270
  %272 = vrot.lane.b32.xlu0 %v241, 4
  %v273 = vpop.permute.xlu0 %272
  %292 = vrot.lane.b32.xlu0 %v19, 8
  %v293 = vpop.permute.xlu0 %292
  %294 = vrot.lane.b32.xlu0 %v21, 8
  %v295 = vpop.permute.xlu0 %294
  %296 = vrot.lane.b32.xlu0 %v23, 8
  %v297 = vpop.permute.xlu0 %296
  %298 = vrot.lane.b32.xlu0 %v25, 8
  %v299 = vpop.permute.xlu0 %298
  %300 = vrot.lane.b32.xlu0 %v27, 8
  %v301 = vpop.permute.xlu0 %300
  %302 = vrot.lane.b32.xlu0 %v29, 8
  %v303 = vpop.permute.xlu0 %302
  %304 = vrot.lane.b32.xlu0 %v31, 8
  %v305 = vpop.permute.xlu0 %304
  %306 = vrot.lane.b32.xlu0 %v33, 8
  %v307 = vpop.permute.xlu0 %306
  %308 = vrot.lane.b32.xlu0 %v91, 8
  %v309 = vpop.permute.xlu0 %308
  %310 = vrot.lane.b32.xlu0 %v93, 8
  %v311 = vpop.permute.xlu0 %310
  %312 = vrot.lane.b32.xlu0 %v95, 8
  %v313 = vpop.permute.xlu0 %312
  %314 = vrot.lane.b32.xlu0 %v97, 8
  %v315 = vpop.permute.xlu0 %314
  %316 = vrot.lane.b32.xlu0 %v99, 8
  %v317 = vpop.permute.xlu0 %316
  %318 = vrot.lane.b32.xlu0 %v101, 8
  %v319 = vpop.permute.xlu0 %318
  %320 = vrot.lane.b32.xlu0 %v103, 8
  %v321 = vpop.permute.xlu0 %320
  %322 = vrot.lane.b32.xlu0 %v105, 8
  %v323 = vpop.permute.xlu0 %322
  %v342 = vrot.slane %v33, 1
  %v343 = vrot.slane %v34, 1
  %v344 = vsel %vm193, %v342, %v343
  %v345 = vrot.slane %v105, 1
  %v346 = vrot.slane %v106, 1
  %v347 = vsel %vm193, %v345, %v346
  %348 = vrot.lane.b32.xlu0 %v199, 12
  %v349 = vpop.permute.xlu0 %348
  %350 = vrot.lane.b32.xlu0 %v202, 12
  %v351 = vpop.permute.xlu0 %350
  %352 = vrot.lane.b32.xlu0 %v205, 12
  %v353 = vpop.permute.xlu0 %352
  %354 = vrot.lane.b32.xlu0 %v208, 12
  %v355 = vpop.permute.xlu0 %354
  %356 = vrot.lane.b32.xlu0 %v211, 12
  %v357 = vpop.permute.xlu0 %356
  %358 = vrot.lane.b32.xlu0 %v214, 12
  %v359 = vpop.permute.xlu0 %358
  %360 = vrot.lane.b32.xlu0 %v217, 12
  %v361 = vpop.permute.xlu0 %360
  %362 = vrot.lane.b32.xlu0 %v344, 12
  %v363 = vpop.permute.xlu0 %362
  %364 = vrot.lane.b32.xlu0 %v223, 12
  %v365 = vpop.permute.xlu0 %364
  %366 = vrot.lane.b32.xlu0 %v226, 12
  %v367 = vpop.permute.xlu0 %366
  %368 = vrot.lane.b32.xlu0 %v229, 12
  %v369 = vpop.permute.xlu0 %368
  %370 = vrot.lane.b32.xlu0 %v232, 12
  %v371 = vpop.permute.xlu0 %370
  %372 = vrot.lane.b32.xlu0 %v235, 12
  %v373 = vpop.permute.xlu0 %372
  %374 = vrot.lane.b32.xlu0 %v238, 12
  %v375 = vpop.permute.xlu0 %374
  %376 = vrot.lane.b32.xlu0 %v241, 12
  %v377 = vpop.permute.xlu0 %376
  %378 = vrot.lane.b32.xlu0 %v347, 12
  %v379 = vpop.permute.xlu0 %378
  %412 = vrot.lane.b32.xlu0 %v35, 16
  %v413 = vpop.permute.xlu0 %412
  %414 = vrot.lane.b32.xlu0 %v37, 16
  %v415 = vpop.permute.xlu0 %414
  %416 = vrot.lane.b32.xlu0 %v39, 16
  %v417 = vpop.permute.xlu0 %416
  %418 = vrot.lane.b32.xlu0 %v41, 16
  %v419 = vpop.permute.xlu0 %418
  %420 = vrot.lane.b32.xlu0 %v43, 16
  %v421 = vpop.permute.xlu0 %420
  %422 = vrot.lane.b32.xlu0 %v45, 16
  %v423 = vpop.permute.xlu0 %422
  %424 = vrot.lane.b32.xlu0 %v47, 16
  %v425 = vpop.permute.xlu0 %424
  %426 = vrot.lane.b32.xlu0 %v49, 16
  %v427 = vpop.permute.xlu0 %426
  %428 = vrot.lane.b32.xlu0 %v107, 16
  %v429 = vpop.permute.xlu0 %428
  %430 = vrot.lane.b32.xlu0 %v109, 16
  %v431 = vpop.permute.xlu0 %430
  %432 = vrot.lane.b32.xlu0 %v111, 16
  %v433 = vpop.permute.xlu0 %432
  %434 = vrot.lane.b32.xlu0 %v113, 16
  %v435 = vpop.permute.xlu0 %434
  %436 = vrot.lane.b32.xlu0 %v115, 16
  %v437 = vpop.permute.xlu0 %436
  %438 = vrot.lane.b32.xlu0 %v117, 16
  %v439 = vpop.permute.xlu0 %438
  %440 = vrot.lane.b32.xlu0 %v119, 16
  %v441 = vpop.permute.xlu0 %440
  %442 = vrot.lane.b32.xlu0 %v121, 16
  %v443 = vpop.permute.xlu0 %442
  %v476 = vrot.slane %v35, 1
  %v477 = vrot.slane %v36, 1
  %v478 = vsel %vm193, %v476, %v477
  %v479 = vrot.slane %v37, 1
  %v480 = vrot.slane %v38, 1
  %v481 = vsel %vm193, %v479, %v480
  %v482 = vrot.slane %v39, 1
  %v483 = vrot.slane %v40, 1
  %v484 = vsel %vm193, %v482, %v483
  %v485 = vrot.slane %v41, 1
  %v486 = vrot.slane %v42, 1
  %v487 = vsel %vm193, %v485, %v486
  %v488 = vrot.slane %v43, 1
  %v489 = vrot.slane %v44, 1
  %v490 = vsel %vm193, %v488, %v489
  %v491 = vrot.slane %v45, 1
  %v492 = vrot.slane %v46, 1
  %v493 = vsel %vm193, %v491, %v492
  %v494 = vrot.slane %v47, 1
  %v495 = vrot.slane %v48, 1
  %v496 = vsel %vm193, %v494, %v495
  %v497 = vrot.slane %v49, 1
  %v498 = vrot.slane %v50, 1
  %v499 = vsel %vm193, %v497, %v498
  %v500 = vrot.slane %v107, 1
  %v501 = vrot.slane %v108, 1
  %v502 = vsel %vm193, %v500, %v501
  %v503 = vrot.slane %v109, 1
  %v504 = vrot.slane %v110, 1
  %v505 = vsel %vm193, %v503, %v504
  %v506 = vrot.slane %v111, 1
  %v507 = vrot.slane %v112, 1
  %v508 = vsel %vm193, %v506, %v507
  %v509 = vrot.slane %v113, 1
  %v510 = vrot.slane %v114, 1
  %v511 = vsel %vm193, %v509, %v510
  %v512 = vrot.slane %v115, 1
  %v513 = vrot.slane %v116, 1
  %v514 = vsel %vm193, %v512, %v513
  %v515 = vrot.slane %v117, 1
  %v516 = vrot.slane %v118, 1
  %v517 = vsel %vm193, %v515, %v516
  %v518 = vrot.slane %v119, 1
  %v519 = vrot.slane %v120, 1
  %v520 = vsel %vm193, %v518, %v519
  %v521 = vrot.slane %v121, 1
  %v522 = vrot.slane %v122, 1
  %v523 = vsel %vm193, %v521, %v522
  %524 = vrot.lane.b32.xlu0 %v478, 20
  %v525 = vpop.permute.xlu0 %524
  %526 = vrot.lane.b32.xlu0 %v481, 20
  %v527 = vpop.permute.xlu0 %526
  %528 = vrot.lane.b32.xlu0 %v484, 20
  %v529 = vpop.permute.xlu0 %528
  %530 = vrot.lane.b32.xlu0 %v487, 20
  %v531 = vpop.permute.xlu0 %530
  %532 = vrot.lane.b32.xlu0 %v490, 20
  %v533 = vpop.permute.xlu0 %532
  %534 = vrot.lane.b32.xlu0 %v493, 20
  %v535 = vpop.permute.xlu0 %534
  %536 = vrot.lane.b32.xlu0 %v496, 20
  %v537 = vpop.permute.xlu0 %536
  %538 = vrot.lane.b32.xlu0 %v499, 20
  %v539 = vpop.permute.xlu0 %538
  %540 = vrot.lane.b32.xlu0 %v502, 20
  %v541 = vpop.permute.xlu0 %540
  %542 = vrot.lane.b32.xlu0 %v505, 20
  %v543 = vpop.permute.xlu0 %542
  %544 = vrot.lane.b32.xlu0 %v508, 20
  %v545 = vpop.permute.xlu0 %544
  %546 = vrot.lane.b32.xlu0 %v511, 20
  %v547 = vpop.permute.xlu0 %546
  %548 = vrot.lane.b32.xlu0 %v514, 20
  %v549 = vpop.permute.xlu0 %548
  %550 = vrot.lane.b32.xlu0 %v517, 20
  %v551 = vpop.permute.xlu0 %550
  %552 = vrot.lane.b32.xlu0 %v520, 20
  %v553 = vpop.permute.xlu0 %552
  %554 = vrot.lane.b32.xlu0 %v523, 20
  %v555 = vpop.permute.xlu0 %554
  %574 = vrot.lane.b32.xlu0 %v37, 24
  %v575 = vpop.permute.xlu0 %574
  %576 = vrot.lane.b32.xlu0 %v39, 24
  %v577 = vpop.permute.xlu0 %576
  %578 = vrot.lane.b32.xlu0 %v41, 24
  %v579 = vpop.permute.xlu0 %578
  %580 = vrot.lane.b32.xlu0 %v43, 24
  %v581 = vpop.permute.xlu0 %580
  %582 = vrot.lane.b32.xlu0 %v45, 24
  %v583 = vpop.permute.xlu0 %582
  %584 = vrot.lane.b32.xlu0 %v47, 24
  %v585 = vpop.permute.xlu0 %584
  %586 = vrot.lane.b32.xlu0 %v49, 24
  %v587 = vpop.permute.xlu0 %586
  %588 = vrot.lane.b32.xlu0 %v51, 24
  %v589 = vpop.permute.xlu0 %588
  %590 = vrot.lane.b32.xlu0 %v109, 24
  %v591 = vpop.permute.xlu0 %590
  %592 = vrot.lane.b32.xlu0 %v111, 24
  %v593 = vpop.permute.xlu0 %592
  %594 = vrot.lane.b32.xlu0 %v113, 24
  %v595 = vpop.permute.xlu0 %594
  %596 = vrot.lane.b32.xlu0 %v115, 24
  %v597 = vpop.permute.xlu0 %596
  %598 = vrot.lane.b32.xlu0 %v117, 24
  %v599 = vpop.permute.xlu0 %598
  %600 = vrot.lane.b32.xlu0 %v119, 24
  %v601 = vpop.permute.xlu0 %600
  %602 = vrot.lane.b32.xlu0 %v121, 24
  %v603 = vpop.permute.xlu0 %602
  %604 = vrot.lane.b32.xlu0 %v123, 24
  %v605 = vpop.permute.xlu0 %604
  %v624 = vrot.slane %v51, 1
  %v625 = vrot.slane %v52, 1
  %v626 = vsel %vm193, %v624, %v625
  %v627 = vrot.slane %v123, 1
  %v628 = vrot.slane %v124, 1
  %v629 = vsel %vm193, %v627, %v628
  %630 = vrot.lane.b32.xlu0 %v481, 28
  %v631 = vpop.permute.xlu0 %630
  %632 = vrot.lane.b32.xlu0 %v484, 28
  %v633 = vpop.permute.xlu0 %632
  %634 = vrot.lane.b32.xlu0 %v487, 28
  %v635 = vpop.permute.xlu0 %634
  %636 = vrot.lane.b32.xlu0 %v490, 28
  %v637 = vpop.permute.xlu0 %636
  %638 = vrot.lane.b32.xlu0 %v493, 28
  %v639 = vpop.permute.xlu0 %638
  %640 = vrot.lane.b32.xlu0 %v496, 28
  %v641 = vpop.permute.xlu0 %640
  %642 = vrot.lane.b32.xlu0 %v499, 28
  %v643 = vpop.permute.xlu0 %642
  %644 = vrot.lane.b32.xlu0 %v626, 28
  %v645 = vpop.permute.xlu0 %644
  %646 = vrot.lane.b32.xlu0 %v505, 28
  %v647 = vpop.permute.xlu0 %646
  %648 = vrot.lane.b32.xlu0 %v508, 28
  %v649 = vpop.permute.xlu0 %648
  %650 = vrot.lane.b32.xlu0 %v511, 28
  %v651 = vpop.permute.xlu0 %650
  %652 = vrot.lane.b32.xlu0 %v514, 28
  %v653 = vpop.permute.xlu0 %652
  %654 = vrot.lane.b32.xlu0 %v517, 28
  %v655 = vpop.permute.xlu0 %654
  %656 = vrot.lane.b32.xlu0 %v520, 28
  %v657 = vpop.permute.xlu0 %656
  %658 = vrot.lane.b32.xlu0 %v523, 28
  %v659 = vpop.permute.xlu0 %658
  %660 = vrot.lane.b32.xlu0 %v629, 28
  %v661 = vpop.permute.xlu0 %660
  %694 = vrot.lane.b32.xlu0 %v53, 32
  %v695 = vpop.permute.xlu0 %694
  %696 = vrot.lane.b32.xlu0 %v55, 32
  %v697 = vpop.permute.xlu0 %696
  %698 = vrot.lane.b32.xlu0 %v57, 32
  %v699 = vpop.permute.xlu0 %698
  %700 = vrot.lane.b32.xlu0 %v59, 32
  %v701 = vpop.permute.xlu0 %700
  %702 = vrot.lane.b32.xlu0 %v61, 32
  %v703 = vpop.permute.xlu0 %702
  %704 = vrot.lane.b32.xlu0 %v63, 32
  %v705 = vpop.permute.xlu0 %704
  %706 = vrot.lane.b32.xlu0 %v65, 32
  %v707 = vpop.permute.xlu0 %706
  %708 = vrot.lane.b32.xlu0 %v67, 32
  %v709 = vpop.permute.xlu0 %708
  %710 = vrot.lane.b32.xlu0 %v125, 32
  %v711 = vpop.permute.xlu0 %710
  %712 = vrot.lane.b32.xlu0 %v127, 32
  %v713 = vpop.permute.xlu0 %712
  %714 = vrot.lane.b32.xlu0 %v129, 32
  %v715 = vpop.permute.xlu0 %714
  %716 = vrot.lane.b32.xlu0 %v131, 32
  %v717 = vpop.permute.xlu0 %716
  %718 = vrot.lane.b32.xlu0 %v133, 32
  %v719 = vpop.permute.xlu0 %718
  %720 = vrot.lane.b32.xlu0 %v135, 32
  %v721 = vpop.permute.xlu0 %720
  %722 = vrot.lane.b32.xlu0 %v137, 32
  %v723 = vpop.permute.xlu0 %722
  %724 = vrot.lane.b32.xlu0 %v139, 32
  %v725 = vpop.permute.xlu0 %724
  %v758 = vrot.slane %v53, 1
  %v759 = vrot.slane %v54, 1
  %v760 = vsel %vm193, %v758, %v759
  %v761 = vrot.slane %v55, 1
  %v762 = vrot.slane %v56, 1
  %v763 = vsel %vm193, %v761, %v762
  %v764 = vrot.slane %v57, 1
  %v765 = vrot.slane %v58, 1
  %v766 = vsel %vm193, %v764, %v765
  %v767 = vrot.slane %v59, 1
  %v768 = vrot.slane %v60, 1
  %v769 = vsel %vm193, %v767, %v768
  %v770 = vrot.slane %v61, 1
  %v771 = vrot.slane %v62, 1
  %v772 = vsel %vm193, %v770, %v771
  %v773 = vrot.slane %v63, 1
  %v774 = vrot.slane %v64, 1
  %v775 = vsel %vm193, %v773, %v774
  %v776 = vrot.slane %v65, 1
  %v777 = vrot.slane %v66, 1
  %v778 = vsel %vm193, %v776, %v777
  %v779 = vrot.slane %v67, 1
  %v780 = vrot.slane %v68, 1
  %v781 = vsel %vm193, %v779, %v780
  %v782 = vrot.slane %v125, 1
  %v783 = vrot.slane %v126, 1
  %v784 = vsel %vm193, %v782, %v783
  %v785 = vrot.slane %v127, 1
  %v786 = vrot.slane %v128, 1
  %v787 = vsel %vm193, %v785, %v786
  %v788 = vrot.slane %v129, 1
  %v789 = vrot.slane %v130, 1
  %v790 = vsel %vm193, %v788, %v789
  %v791 = vrot.slane %v131, 1
  %v792 = vrot.slane %v132, 1
  %v793 = vsel %vm193, %v791, %v792
  %v794 = vrot.slane %v133, 1
  %v795 = vrot.slane %v134, 1
  %v796 = vsel %vm193, %v794, %v795
  %v797 = vrot.slane %v135, 1
  %v798 = vrot.slane %v136, 1
  %v799 = vsel %vm193, %v797, %v798
  %v800 = vrot.slane %v137, 1
  %v801 = vrot.slane %v138, 1
  %v802 = vsel %vm193, %v800, %v801
  %v803 = vrot.slane %v139, 1
  %v804 = vrot.slane %v140, 1
  %v805 = vsel %vm193, %v803, %v804
  %806 = vrot.lane.b32.xlu0 %v760, 36
  %v807 = vpop.permute.xlu0 %806
  %808 = vrot.lane.b32.xlu0 %v763, 36
  %v809 = vpop.permute.xlu0 %808
  %810 = vrot.lane.b32.xlu0 %v766, 36
  %v811 = vpop.permute.xlu0 %810
  %812 = vrot.lane.b32.xlu0 %v769, 36
  %v813 = vpop.permute.xlu0 %812
  %814 = vrot.lane.b32.xlu0 %v772, 36
  %v815 = vpop.permute.xlu0 %814
  %816 = vrot.lane.b32.xlu0 %v775, 36
  %v817 = vpop.permute.xlu0 %816
  %818 = vrot.lane.b32.xlu0 %v778, 36
  %v819 = vpop.permute.xlu0 %818
  %820 = vrot.lane.b32.xlu0 %v781, 36
  %v821 = vpop.permute.xlu0 %820
  %822 = vrot.lane.b32.xlu0 %v784, 36
  %v823 = vpop.permute.xlu0 %822
  %824 = vrot.lane.b32.xlu0 %v787, 36
  %v825 = vpop.permute.xlu0 %824
  %826 = vrot.lane.b32.xlu0 %v790, 36
  %v827 = vpop.permute.xlu0 %826
  %828 = vrot.lane.b32.xlu0 %v793, 36
  %v829 = vpop.permute.xlu0 %828
  %830 = vrot.lane.b32.xlu0 %v796, 36
  %v831 = vpop.permute.xlu0 %830
  %832 = vrot.lane.b32.xlu0 %v799, 36
  %v833 = vpop.permute.xlu0 %832
  %834 = vrot.lane.b32.xlu0 %v802, 36
  %v835 = vpop.permute.xlu0 %834
  %836 = vrot.lane.b32.xlu0 %v805, 36
  %v837 = vpop.permute.xlu0 %836
  %856 = vrot.lane.b32.xlu0 %v55, 40
  %v857 = vpop.permute.xlu0 %856
  %858 = vrot.lane.b32.xlu0 %v57, 40
  %v859 = vpop.permute.xlu0 %858
  %860 = vrot.lane.b32.xlu0 %v59, 40
  %v861 = vpop.permute.xlu0 %860
  %862 = vrot.lane.b32.xlu0 %v61, 40
  %v863 = vpop.permute.xlu0 %862
  %864 = vrot.lane.b32.xlu0 %v63, 40
  %v865 = vpop.permute.xlu0 %864
  %866 = vrot.lane.b32.xlu0 %v65, 40
  %v867 = vpop.permute.xlu0 %866
  %868 = vrot.lane.b32.xlu0 %v67, 40
  %v869 = vpop.permute.xlu0 %868
  %870 = vrot.lane.b32.xlu0 %v69, 40
  %v871 = vpop.permute.xlu0 %870
  %872 = vrot.lane.b32.xlu0 %v127, 40
  %v873 = vpop.permute.xlu0 %872
  %874 = vrot.lane.b32.xlu0 %v129, 40
  %v875 = vpop.permute.xlu0 %874
  %876 = vrot.lane.b32.xlu0 %v131, 40
  %v877 = vpop.permute.xlu0 %876
  %878 = vrot.lane.b32.xlu0 %v133, 40
  %v879 = vpop.permute.xlu0 %878
  %880 = vrot.lane.b32.xlu0 %v135, 40
  %v881 = vpop.permute.xlu0 %880
  %882 = vrot.lane.b32.xlu0 %v137, 40
  %v883 = vpop.permute.xlu0 %882
  %884 = vrot.lane.b32.xlu0 %v139, 40
  %v885 = vpop.permute.xlu0 %884
  %886 = vrot.lane.b32.xlu0 %v141, 40
  %v887 = vpop.permute.xlu0 %886
  %v906 = vrot.slane %v69, 1
  %v907 = vrot.slane %v70, 1
  %v908 = vsel %vm193, %v906, %v907
  %v909 = vrot.slane %v141, 1
  %v910 = vrot.slane %v142, 1
  %v911 = vsel %vm193, %v909, %v910
  %912 = vrot.lane.b32.xlu0 %v763, 44
  %v913 = vpop.permute.xlu0 %912
  %914 = vrot.lane.b32.xlu0 %v766, 44
  %v915 = vpop.permute.xlu0 %914
  %916 = vrot.lane.b32.xlu0 %v769, 44
  %v917 = vpop.permute.xlu0 %916
  %918 = vrot.lane.b32.xlu0 %v772, 44
  %v919 = vpop.permute.xlu0 %918
  %920 = vrot.lane.b32.xlu0 %v775, 44
  %v921 = vpop.permute.xlu0 %920
  %922 = vrot.lane.b32.xlu0 %v778, 44
  %v923 = vpop.permute.xlu0 %922
  %924 = vrot.lane.b32.xlu0 %v781, 44
  %v925 = vpop.permute.xlu0 %924
  %926 = vrot.lane.b32.xlu0 %v908, 44
  %v927 = vpop.permute.xlu0 %926
  %928 = vrot.lane.b32.xlu0 %v787, 44
  %v929 = vpop.permute.xlu0 %928
  %930 = vrot.lane.b32.xlu0 %v790, 44
  %v931 = vpop.permute.xlu0 %930
  %932 = vrot.lane.b32.xlu0 %v793, 44
  %v933 = vpop.permute.xlu0 %932
  %934 = vrot.lane.b32.xlu0 %v796, 44
  %v935 = vpop.permute.xlu0 %934
  %936 = vrot.lane.b32.xlu0 %v799, 44
  %v937 = vpop.permute.xlu0 %936
  %938 = vrot.lane.b32.xlu0 %v802, 44
  %v939 = vpop.permute.xlu0 %938
  %940 = vrot.lane.b32.xlu0 %v805, 44
  %v941 = vpop.permute.xlu0 %940
  %942 = vrot.lane.b32.xlu0 %v911, 44
  %v943 = vpop.permute.xlu0 %942
  %976 = vrot.lane.b32.xlu0 %v71, 48
  %v977 = vpop.permute.xlu0 %976
  %978 = vrot.lane.b32.xlu0 %v73, 48
  %v979 = vpop.permute.xlu0 %978
  %980 = vrot.lane.b32.xlu0 %v75, 48
  %v981 = vpop.permute.xlu0 %980
  %982 = vrot.lane.b32.xlu0 %v77, 48
  %v983 = vpop.permute.xlu0 %982
  %984 = vrot.lane.b32.xlu0 %v79, 48
  %v985 = vpop.permute.xlu0 %984
  %986 = vrot.lane.b32.xlu0 %v81, 48
  %v987 = vpop.permute.xlu0 %986
  %988 = vrot.lane.b32.xlu0 %v83, 48
  %v989 = vpop.permute.xlu0 %988
  %990 = vrot.lane.b32.xlu0 %v85, 48
  %v991 = vpop.permute.xlu0 %990
  %992 = vrot.lane.b32.xlu0 %v143, 48
  %v993 = vpop.permute.xlu0 %992
  %994 = vrot.lane.b32.xlu0 %v145, 48
  %v995 = vpop.permute.xlu0 %994
  %996 = vrot.lane.b32.xlu0 %v147, 48
  %v997 = vpop.permute.xlu0 %996
  %998 = vrot.lane.b32.xlu0 %v149, 48
  %v999 = vpop.permute.xlu0 %998
  %1000 = vrot.lane.b32.xlu0 %v151, 48
  %v1001 = vpop.permute.xlu0 %1000
  %1002 = vrot.lane.b32.xlu0 %v153, 48
  %v1003 = vpop.permute.xlu0 %1002
  %1004 = vrot.lane.b32.xlu0 %v155, 48
  %v1005 = vpop.permute.xlu0 %1004
  %1006 = vrot.lane.b32.xlu0 %v157, 48
  %v1007 = vpop.permute.xlu0 %1006
  %v1040 = vrot.slane %v71, 1
  %v1041 = vrot.slane %v72, 1
  %v1042 = vsel %vm193, %v1040, %v1041
  %v1043 = vrot.slane %v73, 1
  %v1044 = vrot.slane %v74, 1
  %v1045 = vsel %vm193, %v1043, %v1044
  %v1046 = vrot.slane %v75, 1
  %v1047 = vrot.slane %v76, 1
  %v1048 = vsel %vm193, %v1046, %v1047
  %v1049 = vrot.slane %v77, 1
  %v1050 = vrot.slane %v78, 1
  %v1051 = vsel %vm193, %v1049, %v1050
  %v1052 = vrot.slane %v79, 1
  %v1053 = vrot.slane %v80, 1
  %v1054 = vsel %vm193, %v1052, %v1053
  %v1055 = vrot.slane %v81, 1
  %v1056 = vrot.slane %v82, 1
  %v1057 = vsel %vm193, %v1055, %v1056
  %v1058 = vrot.slane %v83, 1
  %v1059 = vrot.slane %v84, 1
  %v1060 = vsel %vm193, %v1058, %v1059
  %v1061 = vrot.slane %v85, 1
  %v1062 = vrot.slane %v86, 1
  %v1063 = vsel %vm193, %v1061, %v1062
  %v1064 = vrot.slane %v143, 1
  %v1065 = vrot.slane %v144, 1
  %v1066 = vsel %vm193, %v1064, %v1065
  %v1067 = vrot.slane %v145, 1
  %v1068 = vrot.slane %v146, 1
  %v1069 = vsel %vm193, %v1067, %v1068
  %v1070 = vrot.slane %v147, 1
  %v1071 = vrot.slane %v148, 1
  %v1072 = vsel %vm193, %v1070, %v1071
  %v1073 = vrot.slane %v149, 1
  %v1074 = vrot.slane %v150, 1
  %v1075 = vsel %vm193, %v1073, %v1074
  %v1076 = vrot.slane %v151, 1
  %v1077 = vrot.slane %v152, 1
  %v1078 = vsel %vm193, %v1076, %v1077
  %v1079 = vrot.slane %v153, 1
  %v1080 = vrot.slane %v154, 1
  %v1081 = vsel %vm193, %v1079, %v1080
  %v1082 = vrot.slane %v155, 1
  %v1083 = vrot.slane %v156, 1
  %v1084 = vsel %vm193, %v1082, %v1083
  %v1085 = vrot.slane %v157, 1
  %v1086 = vrot.slane %v158, 1
  %v1087 = vsel %vm193, %v1085, %v1086
  %1088 = vrot.lane.b32.xlu0 %v1042, 52
  %v1089 = vpop.permute.xlu0 %1088
  %1090 = vrot.lane.b32.xlu0 %v1045, 52
  %v1091 = vpop.permute.xlu0 %1090
  %1092 = vrot.lane.b32.xlu0 %v1048, 52
  %v1093 = vpop.permute.xlu0 %1092
  %1094 = vrot.lane.b32.xlu0 %v1051, 52
  %v1095 = vpop.permute.xlu0 %1094
  %1096 = vrot.lane.b32.xlu0 %v1054, 52
  %v1097 = vpop.permute.xlu0 %1096
  %1098 = vrot.lane.b32.xlu0 %v1057, 52
  %v1099 = vpop.permute.xlu0 %1098
  %1100 = vrot.lane.b32.xlu0 %v1060, 52
  %v1101 = vpop.permute.xlu0 %1100
  %1102 = vrot.lane.b32.xlu0 %v1063, 52
  %v1103 = vpop.permute.xlu0 %1102
  %1104 = vrot.lane.b32.xlu0 %v1066, 52
  %v1105 = vpop.permute.xlu0 %1104
  %1106 = vrot.lane.b32.xlu0 %v1069, 52
  %v1107 = vpop.permute.xlu0 %1106
  %1108 = vrot.lane.b32.xlu0 %v1072, 52
  %v1109 = vpop.permute.xlu0 %1108
  %1110 = vrot.lane.b32.xlu0 %v1075, 52
  %v1111 = vpop.permute.xlu0 %1110
  %1112 = vrot.lane.b32.xlu0 %v1078, 52
  %v1113 = vpop.permute.xlu0 %1112
  %1114 = vrot.lane.b32.xlu0 %v1081, 52
  %v1115 = vpop.permute.xlu0 %1114
  %1116 = vrot.lane.b32.xlu0 %v1084, 52
  %v1117 = vpop.permute.xlu0 %1116
  %1118 = vrot.lane.b32.xlu0 %v1087, 52
  %v1119 = vpop.permute.xlu0 %1118
  %1138 = vrot.lane.b32.xlu0 %v73, 56
  %v1139 = vpop.permute.xlu0 %1138
  %1140 = vrot.lane.b32.xlu0 %v75, 56
  %v1141 = vpop.permute.xlu0 %1140
  %1142 = vrot.lane.b32.xlu0 %v77, 56
  %v1143 = vpop.permute.xlu0 %1142
  %1144 = vrot.lane.b32.xlu0 %v79, 56
  %v1145 = vpop.permute.xlu0 %1144
  %1146 = vrot.lane.b32.xlu0 %v81, 56
  %v1147 = vpop.permute.xlu0 %1146
  %1148 = vrot.lane.b32.xlu0 %v83, 56
  %v1149 = vpop.permute.xlu0 %1148
  %1150 = vrot.lane.b32.xlu0 %v85, 56
  %v1151 = vpop.permute.xlu0 %1150
  %1152 = vrot.lane.b32.xlu0 %v87, 56
  %v1153 = vpop.permute.xlu0 %1152
  %1154 = vrot.lane.b32.xlu0 %v145, 56
  %v1155 = vpop.permute.xlu0 %1154
  %1156 = vrot.lane.b32.xlu0 %v147, 56
  %v1157 = vpop.permute.xlu0 %1156
  %1158 = vrot.lane.b32.xlu0 %v149, 56
  %v1159 = vpop.permute.xlu0 %1158
  %1160 = vrot.lane.b32.xlu0 %v151, 56
  %v1161 = vpop.permute.xlu0 %1160
  %1162 = vrot.lane.b32.xlu0 %v153, 56
  %v1163 = vpop.permute.xlu0 %1162
  %1164 = vrot.lane.b32.xlu0 %v155, 56
  %v1165 = vpop.permute.xlu0 %1164
  %1166 = vrot.lane.b32.xlu0 %v157, 56
  %v1167 = vpop.permute.xlu0 %1166
  %1168 = vrot.lane.b32.xlu0 %v159, 56
  %v1169 = vpop.permute.xlu0 %1168
  %v1188 = vrot.slane %v87, 1
  %v1189 = vrot.slane %v88, 1
  %v1190 = vsel %vm193, %v1188, %v1189
  %v1191 = vrot.slane %v159, 1
  %v1192 = vrot.slane %v160, 1
  %v1193 = vsel %vm193, %v1191, %v1192
  %1194 = vrot.lane.b32.xlu0 %v1045, 60
  %v1195 = vpop.permute.xlu0 %1194
  %1196 = vrot.lane.b32.xlu0 %v1048, 60
  %v1197 = vpop.permute.xlu0 %1196
  %1198 = vrot.lane.b32.xlu0 %v1051, 60
  %v1199 = vpop.permute.xlu0 %1198
  %1200 = vrot.lane.b32.xlu0 %v1054, 60
  %v1201 = vpop.permute.xlu0 %1200
  %1202 = vrot.lane.b32.xlu0 %v1057, 60
  %v1203 = vpop.permute.xlu0 %1202
  %1204 = vrot.lane.b32.xlu0 %v1060, 60
  %v1205 = vpop.permute.xlu0 %1204
  %1206 = vrot.lane.b32.xlu0 %v1063, 60
  %v1207 = vpop.permute.xlu0 %1206
  %1208 = vrot.lane.b32.xlu0 %v1190, 60
  %v1209 = vpop.permute.xlu0 %1208
  %1210 = vrot.lane.b32.xlu0 %v1069, 60
  %v1211 = vpop.permute.xlu0 %1210
  %1212 = vrot.lane.b32.xlu0 %v1072, 60
  %v1213 = vpop.permute.xlu0 %1212
  %1214 = vrot.lane.b32.xlu0 %v1075, 60
  %v1215 = vpop.permute.xlu0 %1214
  %1216 = vrot.lane.b32.xlu0 %v1078, 60
  %v1217 = vpop.permute.xlu0 %1216
  %1218 = vrot.lane.b32.xlu0 %v1081, 60
  %v1219 = vpop.permute.xlu0 %1218
  %1220 = vrot.lane.b32.xlu0 %v1084, 60
  %v1221 = vpop.permute.xlu0 %1220
  %1222 = vrot.lane.b32.xlu0 %v1087, 60
  %v1223 = vpop.permute.xlu0 %1222
  %1224 = vrot.lane.b32.xlu0 %v1193, 60
  %v1225 = vpop.permute.xlu0 %1224
  %vm1242 = vcmask 31744
  %v1243 = vsel %vm1242, %v17, %v243
  %v1244 = vsel %vm1242, %v19, %v245
  %v1245 = vsel %vm1242, %v21, %v247
  %v1246 = vsel %vm1242, %v23, %v249
  %v1247 = vsel %vm1242, %v25, %v251
  %v1248 = vsel %vm1242, %v27, %v253
  %v1249 = vsel %vm1242, %v29, %v255
  %v1250 = vsel %vm1242, %v31, %v257
  %v1251 = vsel %vm1242, %v89, %v259
  %v1252 = vsel %vm1242, %v91, %v261
  %v1253 = vsel %vm1242, %v93, %v263
  %v1254 = vsel %vm1242, %v95, %v265
  %v1255 = vsel %vm1242, %v97, %v267
  %v1256 = vsel %vm1242, %v99, %v269
  %v1257 = vsel %vm1242, %v101, %v271
  %v1258 = vsel %vm1242, %v103, %v273
  %vm1259 = vcmask 64512
  %v1260 = vsel %vm1259, %v1243, %v293
  %v1261 = vsel %vm1259, %v1244, %v295
  %v1262 = vsel %vm1259, %v1245, %v297
  %v1263 = vsel %vm1259, %v1246, %v299
  %v1264 = vsel %vm1259, %v1247, %v301
  %v1265 = vsel %vm1259, %v1248, %v303
  %v1266 = vsel %vm1259, %v1249, %v305
  %v1267 = vsel %vm1259, %v1250, %v307
  %v1268 = vsel %vm1259, %v1251, %v309
  %v1269 = vsel %vm1259, %v1252, %v311
  %v1270 = vsel %vm1259, %v1253, %v313
  %v1271 = vsel %vm1259, %v1254, %v315
  %v1272 = vsel %vm1259, %v1255, %v317
  %v1273 = vsel %vm1259, %v1256, %v319
  %v1274 = vsel %vm1259, %v1257, %v321
  %v1275 = vsel %vm1259, %v1258, %v323
  %vm1276 = vcmask 97280
  %v1277 = vsel %vm1276, %v1260, %v349
  %v1278 = vsel %vm1276, %v1261, %v351
  %v1279 = vsel %vm1276, %v1262, %v353
  %v1280 = vsel %vm1276, %v1263, %v355
  %v1281 = vsel %vm1276, %v1264, %v357
  %v1282 = vsel %vm1276, %v1265, %v359
  %v1283 = vsel %vm1276, %v1266, %v361
  %v1284 = vsel %vm1276, %v1267, %v363
  %v1285 = vsel %vm1276, %v1268, %v365
  %v1286 = vsel %vm1276, %v1269, %v367
  %v1287 = vsel %vm1276, %v1270, %v369
  %v1288 = vsel %vm1276, %v1271, %v371
  %v1289 = vsel %vm1276, %v1272, %v373
  %v1290 = vsel %vm1276, %v1273, %v375
  %v1291 = vsel %vm1276, %v1274, %v377
  %v1292 = vsel %vm1276, %v1275, %v379
  %vm1293 = vcmask 130048
  %v1294 = vsel %vm1293, %v1277, %v413
  %v1295 = vsel %vm1293, %v1278, %v415
  %v1296 = vsel %vm1293, %v1279, %v417
  %v1297 = vsel %vm1293, %v1280, %v419
  %v1298 = vsel %vm1293, %v1281, %v421
  %v1299 = vsel %vm1293, %v1282, %v423
  %v1300 = vsel %vm1293, %v1283, %v425
  %v1301 = vsel %vm1293, %v1284, %v427
  %v1302 = vsel %vm1293, %v1285, %v429
  %v1303 = vsel %vm1293, %v1286, %v431
  %v1304 = vsel %vm1293, %v1287, %v433
  %v1305 = vsel %vm1293, %v1288, %v435
  %v1306 = vsel %vm1293, %v1289, %v437
  %v1307 = vsel %vm1293, %v1290, %v439
  %v1308 = vsel %vm1293, %v1291, %v441
  %v1309 = vsel %vm1293, %v1292, %v443
  %vm1310 = vcmask 162816
  %v1311 = vsel %vm1310, %v1294, %v525
  %v1312 = vsel %vm1310, %v1295, %v527
  %v1313 = vsel %vm1310, %v1296, %v529
  %v1314 = vsel %vm1310, %v1297, %v531
  %v1315 = vsel %vm1310, %v1298, %v533
  %v1316 = vsel %vm1310, %v1299, %v535
  %v1317 = vsel %vm1310, %v1300, %v537
  %v1318 = vsel %vm1310, %v1301, %v539
  %v1319 = vsel %vm1310, %v1302, %v541
  %v1320 = vsel %vm1310, %v1303, %v543
  %v1321 = vsel %vm1310, %v1304, %v545
  %v1322 = vsel %vm1310, %v1305, %v547
  %v1323 = vsel %vm1310, %v1306, %v549
  %v1324 = vsel %vm1310, %v1307, %v551
  %v1325 = vsel %vm1310, %v1308, %v553
  %v1326 = vsel %vm1310, %v1309, %v555
  %vm1327 = vcmask 195584
  %v1328 = vsel %vm1327, %v1311, %v575
  %v1329 = vsel %vm1327, %v1312, %v577
  %v1330 = vsel %vm1327, %v1313, %v579
  %v1331 = vsel %vm1327, %v1314, %v581
  %v1332 = vsel %vm1327, %v1315, %v583
  %v1333 = vsel %vm1327, %v1316, %v585
  %v1334 = vsel %vm1327, %v1317, %v587
  %v1335 = vsel %vm1327, %v1318, %v589
  %v1336 = vsel %vm1327, %v1319, %v591
  %v1337 = vsel %vm1327, %v1320, %v593
  %v1338 = vsel %vm1327, %v1321, %v595
  %v1339 = vsel %vm1327, %v1322, %v597
  %v1340 = vsel %vm1327, %v1323, %v599
  %v1341 = vsel %vm1327, %v1324, %v601
  %v1342 = vsel %vm1327, %v1325, %v603
  %v1343 = vsel %vm1327, %v1326, %v605
  %vm1344 = vcmask 228352
  %v1345 = vsel %vm1344, %v1328, %v631
  %v1346 = vsel %vm1344, %v1329, %v633
  %v1347 = vsel %vm1344, %v1330, %v635
  %v1348 = vsel %vm1344, %v1331, %v637
  %v1349 = vsel %vm1344, %v1332, %v639
  %v1350 = vsel %vm1344, %v1333, %v641
  %v1351 = vsel %vm1344, %v1334, %v643
  %v1352 = vsel %vm1344, %v1335, %v645
  %v1353 = vsel %vm1344, %v1336, %v647
  %v1354 = vsel %vm1344, %v1337, %v649
  %v1355 = vsel %vm1344, %v1338, %v651
  %v1356 = vsel %vm1344, %v1339, %v653
  %v1357 = vsel %vm1344, %v1340, %v655
  %v1358 = vsel %vm1344, %v1341, %v657
  %v1359 = vsel %vm1344, %v1342, %v659
  %v1360 = vsel %vm1344, %v1343, %v661
  %vm1361 = vcmask 261120
  %v1362 = vsel %vm1361, %v1345, %v695
  %v1363 = vsel %vm1361, %v1346, %v697
  %v1364 = vsel %vm1361, %v1347, %v699
  %v1365 = vsel %vm1361, %v1348, %v701
  %v1366 = vsel %vm1361, %v1349, %v703
  %v1367 = vsel %vm1361, %v1350, %v705
  %v1368 = vsel %vm1361, %v1351, %v707
  %v1369 = vsel %vm1361, %v1352, %v709
  %v1370 = vsel %vm1361, %v1353, %v711
  %v1371 = vsel %vm1361, %v1354, %v713
  %v1372 = vsel %vm1361, %v1355, %v715
  %v1373 = vsel %vm1361, %v1356, %v717
  %v1374 = vsel %vm1361, %v1357, %v719
  %v1375 = vsel %vm1361, %v1358, %v721
  %v1376 = vsel %vm1361, %v1359, %v723
  %v1377 = vsel %vm1361, %v1360, %v725
  %vm1378 = vcmask 293888
  %v1379 = vsel %vm1378, %v1362, %v807
  %v1380 = vsel %vm1378, %v1363, %v809
  %v1381 = vsel %vm1378, %v1364, %v811
  %v1382 = vsel %vm1378, %v1365, %v813
  %v1383 = vsel %vm1378, %v1366, %v815
  %v1384 = vsel %vm1378, %v1367, %v817
  %v1385 = vsel %vm1378, %v1368, %v819
  %v1386 = vsel %vm1378, %v1369, %v821
  %v1387 = vsel %vm1378, %v1370, %v823
  %v1388 = vsel %vm1378, %v1371, %v825
  %v1389 = vsel %vm1378, %v1372, %v827
  %v1390 = vsel %vm1378, %v1373, %v829
  %v1391 = vsel %vm1378, %v1374, %v831
  %v1392 = vsel %vm1378, %v1375, %v833
  %v1393 = vsel %vm1378, %v1376, %v835
  %v1394 = vsel %vm1378, %v1377, %v837
  %vm1395 = vcmask 326656
  %v1396 = vsel %vm1395, %v1379, %v857
  %v1397 = vsel %vm1395, %v1380, %v859
  %v1398 = vsel %vm1395, %v1381, %v861
  %v1399 = vsel %vm1395, %v1382, %v863
  %v1400 = vsel %vm1395, %v1383, %v865
  %v1401 = vsel %vm1395, %v1384, %v867
  %v1402 = vsel %vm1395, %v1385, %v869
  %v1403 = vsel %vm1395, %v1386, %v871
  %v1404 = vsel %vm1395, %v1387, %v873
  %v1405 = vsel %vm1395, %v1388, %v875
  %v1406 = vsel %vm1395, %v1389, %v877
  %v1407 = vsel %vm1395, %v1390, %v879
  %v1408 = vsel %vm1395, %v1391, %v881
  %v1409 = vsel %vm1395, %v1392, %v883
  %v1410 = vsel %vm1395, %v1393, %v885
  %v1411 = vsel %vm1395, %v1394, %v887
  %vm1412 = vcmask 359424
  %v1413 = vsel %vm1412, %v1396, %v913
  %v1414 = vsel %vm1412, %v1397, %v915
  %v1415 = vsel %vm1412, %v1398, %v917
  %v1416 = vsel %vm1412, %v1399, %v919
  %v1417 = vsel %vm1412, %v1400, %v921
  %v1418 = vsel %vm1412, %v1401, %v923
  %v1419 = vsel %vm1412, %v1402, %v925
  %v1420 = vsel %vm1412, %v1403, %v927
  %v1421 = vsel %vm1412, %v1404, %v929
  %v1422 = vsel %vm1412, %v1405, %v931
  %v1423 = vsel %vm1412, %v1406, %v933
  %v1424 = vsel %vm1412, %v1407, %v935
  %v1425 = vsel %vm1412, %v1408, %v937
  %v1426 = vsel %vm1412, %v1409, %v939
  %v1427 = vsel %vm1412, %v1410, %v941
  %v1428 = vsel %vm1412, %v1411, %v943
  %vm1429 = vcmask 392192
  %v1430 = vsel %vm1429, %v1413, %v977
  %v1431 = vsel %vm1429, %v1414, %v979
  %v1432 = vsel %vm1429, %v1415, %v981
  %v1433 = vsel %vm1429, %v1416, %v983
  %v1434 = vsel %vm1429, %v1417, %v985
  %v1435 = vsel %vm1429, %v1418, %v987
  %v1436 = vsel %vm1429, %v1419, %v989
  %v1437 = vsel %vm1429, %v1420, %v991
  %v1438 = vsel %vm1429, %v1421, %v993
  %v1439 = vsel %vm1429, %v1422, %v995
  %v1440 = vsel %vm1429, %v1423, %v997
  %v1441 = vsel %vm1429, %v1424, %v999
  %v1442 = vsel %vm1429, %v1425, %v1001
  %v1443 = vsel %vm1429, %v1426, %v1003
  %v1444 = vsel %vm1429, %v1427, %v1005
  %v1445 = vsel %vm1429, %v1428, %v1007
  %vm1446 = vcmask 424960
  %v1447 = vsel %vm1446, %v1430, %v1089
  %v1448 = vsel %vm1446, %v1431, %v1091
  %v1449 = vsel %vm1446, %v1432, %v1093
  %v1450 = vsel %vm1446, %v1433, %v1095
  %v1451 = vsel %vm1446, %v1434, %v1097
  %v1452 = vsel %vm1446, %v1435, %v1099
  %v1453 = vsel %vm1446, %v1436, %v1101
  %v1454 = vsel %vm1446, %v1437, %v1103
  %v1455 = vsel %vm1446, %v1438, %v1105
  %v1456 = vsel %vm1446, %v1439, %v1107
  %v1457 = vsel %vm1446, %v1440, %v1109
  %v1458 = vsel %vm1446, %v1441, %v1111
  %v1459 = vsel %vm1446, %v1442, %v1113
  %v1460 = vsel %vm1446, %v1443, %v1115
  %v1461 = vsel %vm1446, %v1444, %v1117
  %v1462 = vsel %vm1446, %v1445, %v1119
  %vm1463 = vcmask 457728
  %v1464 = vsel %vm1463, %v1447, %v1139
  %v1465 = vsel %vm1463, %v1448, %v1141
  %v1466 = vsel %vm1463, %v1449, %v1143
  %v1467 = vsel %vm1463, %v1450, %v1145
  %v1468 = vsel %vm1463, %v1451, %v1147
  %v1469 = vsel %vm1463, %v1452, %v1149
  %v1470 = vsel %vm1463, %v1453, %v1151
  %v1471 = vsel %vm1463, %v1454, %v1153
  %v1472 = vsel %vm1463, %v1455, %v1155
  %v1473 = vsel %vm1463, %v1456, %v1157
  %v1474 = vsel %vm1463, %v1457, %v1159
  %v1475 = vsel %vm1463, %v1458, %v1161
  %v1476 = vsel %vm1463, %v1459, %v1163
  %v1477 = vsel %vm1463, %v1460, %v1165
  %v1478 = vsel %vm1463, %v1461, %v1167
  %v1479 = vsel %vm1463, %v1462, %v1169
  %vm1480 = vcmask 490496
  %v1481 = vsel %vm1480, %v1464, %v1195
  %v1482 = vsel %vm1480, %v1465, %v1197
  %v1483 = vsel %vm1480, %v1466, %v1199
  %v1484 = vsel %vm1480, %v1467, %v1201
  %v1485 = vsel %vm1480, %v1468, %v1203
  %v1486 = vsel %vm1480, %v1469, %v1205
  %v1487 = vsel %vm1480, %v1470, %v1207
  %v1488 = vsel %vm1480, %v1471, %v1209
  %v1489 = vsel %vm1480, %v1472, %v1211
  %v1490 = vsel %vm1480, %v1473, %v1213
  %v1491 = vsel %vm1480, %v1474, %v1215
  %v1492 = vsel %vm1480, %v1475, %v1217
  %v1493 = vsel %vm1480, %v1476, %v1219
  %v1494 = vsel %vm1480, %v1477, %v1221
  %v1495 = vsel %vm1480, %v1478, %v1223
  %v1496 = vsel %vm1480, %v1479, %v1225
  %v1497 = vpack.c.bf16 %v1482, %v1481
  %v1498 = vpack.c.bf16 %v1484, %v1483
  %v1499 = vpack.c.bf16 %v1486, %v1485
  %v1500 = vpack.c.bf16 %v1488, %v1487
  %v1501 = vpack.c.bf16 %v1490, %v1489
  %v1502 = vpack.c.bf16 %v1492, %v1491
  %v1503 = vpack.c.bf16 %v1494, %v1493
  %v1504 = vpack.c.bf16 %v1496, %v1495
  %v1505 = vld [vmem:[%s1] sm:$0xf]
  %v1506 = vld [vmem:[%s1 + $0x4] sm:$0xf]
  %v1507 = vld [vmem:[%s1 + $0x8] sm:$0xf]
  %v1508 = vld [vmem:[%s1 + $0xc] sm:$0xf]
  %v1509 = vld [vmem:[%s1 + $0x10] sm:$0xf]
  %v1510 = vld [vmem:[%s1 + $0x14] sm:$0xf]
  %v1511 = vld [vmem:[%s1 + $0x18] sm:$0xf]
  %v1512 = vld [vmem:[%s1 + $0x1c] sm:$0xf]
  %v1521 = vunpack.c.l.b16 %v1505
  %v1522 = vunpack.c.l.b16 %v1506
  %v1523 = vunpack.c.l.b16 %v1507
  %v1524 = vunpack.c.l.b16 %v1508
  %v1525 = vunpack.c.l.b16 %v1509
  %v1526 = vunpack.c.l.b16 %v1510
  %v1527 = vunpack.c.l.b16 %v1511
  %v1528 = vunpack.c.l.b16 %v1512
  %v1529 = vpack.c.b16 %v1522, %v1521
  %v1530 = vpack.c.b16 %v1524, %v1523
  %v1531 = vpack.c.b16 %v1526, %v1525
  %v1532 = vpack.c.b16 %v1528, %v1527
  %vm1537 = vcmask 523264
  %v1539 = vsel %vm1537, %v1497, 0
  %v1542 = vsel %vm1537, %v1498, 0
  %v1545 = vsel %vm1537, %v1499, 0
  %v1548 = vsel %vm1537, %v1500, 0
  %v1551 = vsel %vm1537, %v1501, 0
  %v1554 = vsel %vm1537, %v1502, 0
  %v1557 = vsel %vm1537, %v1503, 0
  %v1560 = vsel %vm1537, %v1504, 0
  %1562 = vmatprep.subr.bf16.mxu0 0
  %1563 = vmatpush1.bf16.msra.mxu0 %v1529
  %1564 = vmatprep.subr.bf16.mxu0 0
  %1565 = vmatpush1.bf16.msra.mxu0 %v1530
  %1566 = vmatprep.subr.bf16.mxu0 0
  %1567 = vmatpush1.bf16.msra.mxu0 %v1531
  %1568 = vmatprep.subr.bf16.mxu0 0
  %1569 = vmatpush1.bf16.msra.mxu0 %v1532
  %1570 = vmatprep.subr.bf16.mxu0 0
  %1571 = vmatpush1.bf16.msra.mxu0 0
  %1572 = vmatprep.subr.bf16.mxu0 0
  %1573 = vmatpush1.bf16.msra.mxu0 0
  %1574 = vmatprep.subr.bf16.mxu0 0
  %1575 = vmatpush1.bf16.msra.mxu0 0
  %1576 = vmatprep.subr.bf16.mxu0 0
  %1577 = vmatpush1.bf16.msra.mxu0 0
  %1578 = vmatprep.subr.bf16.mxu0 0
  %1579 = vmatpush1.bf16.msra.mxu0 0
  %1580 = vmatprep.subr.bf16.mxu0 0
  %1581 = vmatpush1.bf16.msra.mxu0 0
  %1582 = vmatprep.subr.bf16.mxu0 0
  %1583 = vmatpush1.bf16.msra.mxu0 0
  %1584 = vmatprep.subr.bf16.mxu0 0
  %1585 = vmatpush1.bf16.msra.mxu0 0
  %1586 = vmatprep.subr.bf16.mxu0 0
  %1587 = vmatpush1.bf16.msra.mxu0 0
  %1588 = vmatprep.subr.bf16.mxu0 0
  %1589 = vmatpush1.bf16.msra.mxu0 0
  %1590 = vmatprep.subr.bf16.mxu0 0
  %1591 = vmatpush1.bf16.msra.mxu0 0
  %1592 = vmatprep.subr.bf16.mxu0 0
  %1593 = vmatpush1.bf16.msra.mxu0 0
  %1594 = vmatprep.mubr.bf16.mxu0 0
  %1595 = vmatmul.mubr.bf16.gmra.mrb[0].mxu0 %v1539
  %v1596 = vpop.f32.mrb[0].mxu0
  %v1597 = vadd.f32 0.0, %v1596
  %v1598 = vpop.f32.mrb[0].mxu0
  %v1599 = vpop.f32.mrb[0].mxu0
  %v1600 = vadd.f32 0.0, %v1599
  %v1601 = vpop.f32.mrb[0].mxu0
  %1602 = vmatprep.mubr.bf16.mxu0 0
  %1603 = vmatmul.mubr.bf16.gmra.mrb[0].mxu0 %v1542
  %v1604 = vpop.f32.mrb[0].mxu0
  %v1605 = vadd.f32 0.0, %v1604
  %v1606 = vpop.f32.mrb[0].mxu0
  %v1607 = vpop.f32.mrb[0].mxu0
  %v1608 = vadd.f32 0.0, %v1607
  %v1609 = vpop.f32.mrb[0].mxu0
  %1610 = vmatprep.mubr.bf16.mxu0 0
  %1611 = vmatmul.mubr.bf16.gmra.mrb[0].mxu0 %v1545
  %v1612 = vpop.f32.mrb[0].mxu0
  %v1613 = vadd.f32 0.0, %v1612
  %v1614 = vpop.f32.mrb[0].mxu0
  %v1615 = vpop.f32.mrb[0].mxu0
  %v1616 = vadd.f32 0.0, %v1615
  %v1617 = vpop.f32.mrb[0].mxu0
  %1618 = vmatprep.mubr.bf16.mxu0 0
  %1619 = vmatmul.mubr.bf16.gmra.mrb[0].mxu0 %v1548
  %v1620 = vpop.f32.mrb[0].mxu0
  %v1621 = vadd.f32 0.0, %v1620
  %v1622 = vpop.f32.mrb[0].mxu0
  %v1623 = vpop.f32.mrb[0].mxu0
  %v1624 = vadd.f32 0.0, %v1623
  %v1625 = vpop.f32.mrb[0].mxu0
  %1626 = vmatprep.mubr.bf16.mxu0 0
  %1627 = vmatmul.mubr.bf16.gmra.mrb[0].mxu0 %v1551
  %v1628 = vpop.f32.mrb[0].mxu0
  %v1629 = vadd.f32 0.0, %v1628
  %v1630 = vpop.f32.mrb[0].mxu0
  %v1631 = vpop.f32.mrb[0].mxu0
  %v1632 = vadd.f32 0.0, %v1631
  %v1633 = vpop.f32.mrb[0].mxu0
  %1634 = vmatprep.mubr.bf16.mxu0 0
  %1635 = vmatmul.mubr.bf16.gmra.mrb[0].mxu0 %v1554
  %v1636 = vpop.f32.mrb[0].mxu0
  %v1637 = vadd.f32 0.0, %v1636
  %v1638 = vpop.f32.mrb[0].mxu0
  %v1639 = vpop.f32.mrb[0].mxu0
  %v1640 = vadd.f32 0.0, %v1639
  %v1641 = vpop.f32.mrb[0].mxu0
  %1642 = vmatprep.mubr.bf16.mxu0 0
  %1643 = vmatmul.mubr.bf16.gmra.mrb[0].mxu0 %v1557
  %v1644 = vpop.f32.mrb[0].mxu0
  %v1645 = vadd.f32 0.0, %v1644
  %v1646 = vpop.f32.mrb[0].mxu0
  %v1647 = vpop.f32.mrb[0].mxu0
  %v1648 = vadd.f32 0.0, %v1647
  %v1649 = vpop.f32.mrb[0].mxu0
  %1650 = vmatprep.mubr.bf16.mxu0 0
  %1651 = vmatmul.mubr.bf16.gmra.mrb[0].mxu0 %v1560
  %v1652 = vpop.f32.mrb[0].mxu0
  %v1653 = vadd.f32 0.0, %v1652
  %v1654 = vpop.f32.mrb[0].mxu0
  %v1655 = vpop.f32.mrb[0].mxu0
  %v1656 = vadd.f32 0.0, %v1655
  %v1657 = vpop.f32.mrb[0].mxu0
  %1658 = vdwg.mxu0
  %v1659 = vmax.f32 %v1597, 0.0
  %v1660 = vmax.f32 %v1600, 0.0
  %v1661 = vmax.f32 %v1605, 0.0
  %v1662 = vmax.f32 %v1608, 0.0
  %v1663 = vmax.f32 %v1613, 0.0
  %v1664 = vmax.f32 %v1616, 0.0
  %v1665 = vmax.f32 %v1621, 0.0
  %v1666 = vmax.f32 %v1624, 0.0
  %v1667 = vmax.f32 %v1629, 0.0
  %v1668 = vmax.f32 %v1632, 0.0
  %v1669 = vmax.f32 %v1637, 0.0
  %v1670 = vmax.f32 %v1640, 0.0
  %v1671 = vmax.f32 %v1645, 0.0
  %v1672 = vmax.f32 %v1648, 0.0
  %v1673 = vmax.f32 %v1653, 0.0
  %v1674 = vmax.f32 %v1656, 0.0
  %v1691 = vrot.slane %v1659, 7
  %v1692 = vrot.slane %v1660, 7
  %v1693 = vrot.slane %v1661, 7
  %v1694 = vrot.slane %v1662, 7
  %v1695 = vrot.slane %v1663, 7
  %v1696 = vrot.slane %v1664, 7
  %v1697 = vrot.slane %v1665, 7
  %v1698 = vrot.slane %v1666, 7
  %v1699 = vrot.slane %v1667, 7
  %v1700 = vrot.slane %v1668, 7
  %v1701 = vrot.slane %v1669, 7
  %v1702 = vrot.slane %v1670, 7
  %v1703 = vrot.slane %v1671, 7
  %v1704 = vrot.slane %v1672, 7
  %v1705 = vrot.slane %v1673, 7
  %v1706 = vrot.slane %v1674, 7
  %vm1723 = vcmask 1040384
  %v1724 = vsel %vm1723, 0.0, %v1691
  %v1725 = vsel %vm1723, 0.0, %v1692
  %v1726 = vsel %vm1723, 0.0, %v1693
  %v1727 = vsel %vm1723, 0.0, %v1694
  %v1728 = vsel %vm1723, 0.0, %v1695
  %v1729 = vsel %vm1723, 0.0, %v1696
  %v1730 = vsel %vm1723, 0.0, %v1697
  %v1731 = vsel %vm1723, 0.0, %v1698
  %v1732 = vsel %vm1723, 0.0, %v1699
  %v1733 = vsel %vm1723, 0.0, %v1700
  %v1734 = vsel %vm1723, 0.0, %v1701
  %v1735 = vsel %vm1723, 0.0, %v1702
  %v1736 = vsel %vm1723, 0.0, %v1703
  %v1737 = vsel %vm1723, 0.0, %v1704
  %v1738 = vsel %vm1723, 0.0, %v1705
  %v1739 = vsel %vm1723, 0.0, %v1706
  %v1740 = vsel %vm1723, %v1691, 0.0
  %v1741 = vsel %vm1723, %v1692, 0.0
  %v1742 = vsel %vm1723, %v1693, 0.0
  %v1743 = vsel %vm1723, %v1694, 0.0
  %v1744 = vsel %vm1723, %v1695, 0.0
  %v1745 = vsel %vm1723, %v1696, 0.0
  %v1746 = vsel %vm1723, %v1697, 0.0
  %v1747 = vsel %vm1723, %v1698, 0.0
  %v1748 = vsel %vm1723, %v1699, 0.0
  %v1749 = vsel %vm1723, %v1700, 0.0
  %v1750 = vsel %vm1723, %v1701, 0.0
  %v1751 = vsel %vm1723, %v1702, 0.0
  %v1752 = vsel %vm1723, %v1703, 0.0
  %v1753 = vsel %vm1723, %v1704, 0.0
  %v1754 = vsel %vm1723, %v1705, 0.0
  %v1755 = vsel %vm1723, %v1706, 0.0
  %v1772 = vrot.slane %v1724, 7
  %v1773 = vrot.slane %v1725, 7
  %v1774 = vrot.slane %v1726, 7
  %v1775 = vrot.slane %v1727, 7
  %v1776 = vrot.slane %v1728, 7
  %v1777 = vrot.slane %v1729, 7
  %v1778 = vrot.slane %v1730, 7
  %v1779 = vrot.slane %v1731, 7
  %v1780 = vrot.slane %v1732, 7
  %v1781 = vrot.slane %v1733, 7
  %v1782 = vrot.slane %v1734, 7
  %v1783 = vrot.slane %v1735, 7
  %v1784 = vrot.slane %v1736, 7
  %v1785 = vrot.slane %v1737, 7
  %v1786 = vrot.slane %v1738, 7
  %v1787 = vrot.slane %v1739, 7
  %1788 = vrot.lane.b32.xlu0 %v1772, 8
  %v1789 = vpop.permute.xlu0 %1788
  %1790 = vrot.lane.b32.xlu0 %v1773, 8
  %v1791 = vpop.permute.xlu0 %1790
  %1792 = vrot.lane.b32.xlu0 %v1774, 8
  %v1793 = vpop.permute.xlu0 %1792
  %1794 = vrot.lane.b32.xlu0 %v1775, 8
  %v1795 = vpop.permute.xlu0 %1794
  %1796 = vrot.lane.b32.xlu0 %v1776, 8
  %v1797 = vpop.permute.xlu0 %1796
  %1798 = vrot.lane.b32.xlu0 %v1777, 8
  %v1799 = vpop.permute.xlu0 %1798
  %1800 = vrot.lane.b32.xlu0 %v1778, 8
  %v1801 = vpop.permute.xlu0 %1800
  %1802 = vrot.lane.b32.xlu0 %v1779, 8
  %v1803 = vpop.permute.xlu0 %1802
  %1804 = vrot.lane.b32.xlu0 %v1780, 8
  %v1805 = vpop.permute.xlu0 %1804
  %1806 = vrot.lane.b32.xlu0 %v1781, 8
  %v1807 = vpop.permute.xlu0 %1806
  %1808 = vrot.lane.b32.xlu0 %v1782, 8
  %v1809 = vpop.permute.xlu0 %1808
  %1810 = vrot.lane.b32.xlu0 %v1783, 8
  %v1811 = vpop.permute.xlu0 %1810
  %1812 = vrot.lane.b32.xlu0 %v1784, 8
  %v1813 = vpop.permute.xlu0 %1812
  %1814 = vrot.lane.b32.xlu0 %v1785, 8
  %v1815 = vpop.permute.xlu0 %1814
  %1816 = vrot.lane.b32.xlu0 %v1786, 8
  %v1817 = vpop.permute.xlu0 %1816
  %1818 = vrot.lane.b32.xlu0 %v1787, 8
  %v1819 = vpop.permute.xlu0 %1818
  %1851 = vrot.lane.b32.xlu0 0.0, 16
  %v1852 = vpop.permute.xlu0 %1851
  %1853 = vrot.lane.b32.xlu0 %v1724, 16
  %v1854 = vpop.permute.xlu0 %1853
  %1855 = vrot.lane.b32.xlu0 %v1740, 16
  %v1856 = vpop.permute.xlu0 %1855
  %1857 = vrot.lane.b32.xlu0 %v1725, 16
  %v1858 = vpop.permute.xlu0 %1857
  %1859 = vrot.lane.b32.xlu0 %v1741, 16
  %v1860 = vpop.permute.xlu0 %1859
  %1861 = vrot.lane.b32.xlu0 %v1726, 16
  %v1862 = vpop.permute.xlu0 %1861
  %1863 = vrot.lane.b32.xlu0 %v1742, 16
  %v1864 = vpop.permute.xlu0 %1863
  %1865 = vrot.lane.b32.xlu0 %v1727, 16
  %v1866 = vpop.permute.xlu0 %1865
  %1867 = vrot.lane.b32.xlu0 %v1743, 16
  %v1868 = vpop.permute.xlu0 %1867
  %1869 = vrot.lane.b32.xlu0 %v1728, 16
  %v1870 = vpop.permute.xlu0 %1869
  %1871 = vrot.lane.b32.xlu0 %v1744, 16
  %v1872 = vpop.permute.xlu0 %1871
  %1873 = vrot.lane.b32.xlu0 %v1729, 16
  %v1874 = vpop.permute.xlu0 %1873
  %1875 = vrot.lane.b32.xlu0 %v1745, 16
  %v1876 = vpop.permute.xlu0 %1875
  %1877 = vrot.lane.b32.xlu0 %v1730, 16
  %v1878 = vpop.permute.xlu0 %1877
  %1879 = vrot.lane.b32.xlu0 %v1746, 16
  %v1880 = vpop.permute.xlu0 %1879
  %1881 = vrot.lane.b32.xlu0 %v1732, 16
  %v1882 = vpop.permute.xlu0 %1881
  %1883 = vrot.lane.b32.xlu0 %v1748, 16
  %v1884 = vpop.permute.xlu0 %1883
  %1885 = vrot.lane.b32.xlu0 %v1733, 16
  %v1886 = vpop.permute.xlu0 %1885
  %1887 = vrot.lane.b32.xlu0 %v1749, 16
  %v1888 = vpop.permute.xlu0 %1887
  %1889 = vrot.lane.b32.xlu0 %v1734, 16
  %v1890 = vpop.permute.xlu0 %1889
  %1891 = vrot.lane.b32.xlu0 %v1750, 16
  %v1892 = vpop.permute.xlu0 %1891
  %1893 = vrot.lane.b32.xlu0 %v1735, 16
  %v1894 = vpop.permute.xlu0 %1893
  %1895 = vrot.lane.b32.xlu0 %v1751, 16
  %v1896 = vpop.permute.xlu0 %1895
  %1897 = vrot.lane.b32.xlu0 %v1736, 16
  %v1898 = vpop.permute.xlu0 %1897
  %1899 = vrot.lane.b32.xlu0 %v1752, 16
  %v1900 = vpop.permute.xlu0 %1899
  %1901 = vrot.lane.b32.xlu0 %v1737, 16
  %v1902 = vpop.permute.xlu0 %1901
  %1903 = vrot.lane.b32.xlu0 %v1753, 16
  %v1904 = vpop.permute.xlu0 %1903
  %1905 = vrot.lane.b32.xlu0 %v1738, 16
  %v1906 = vpop.permute.xlu0 %1905
  %1907 = vrot.lane.b32.xlu0 %v1754, 16
  %v1908 = vpop.permute.xlu0 %1907
  %v1938 = vrot.slane 0.0, 7
  %1939 = vrot.lane.b32.xlu0 %v1938, 24
  %v1940 = vpop.permute.xlu0 %1939
  %1941 = vrot.lane.b32.xlu0 %v1772, 24
  %v1942 = vpop.permute.xlu0 %1941
  %1943 = vrot.lane.b32.xlu0 %v1773, 24
  %v1944 = vpop.permute.xlu0 %1943
  %1945 = vrot.lane.b32.xlu0 %v1774, 24
  %v1946 = vpop.permute.xlu0 %1945
  %1947 = vrot.lane.b32.xlu0 %v1775, 24
  %v1948 = vpop.permute.xlu0 %1947
  %1949 = vrot.lane.b32.xlu0 %v1776, 24
  %v1950 = vpop.permute.xlu0 %1949
  %1951 = vrot.lane.b32.xlu0 %v1777, 24
  %v1952 = vpop.permute.xlu0 %1951
  %1953 = vrot.lane.b32.xlu0 %v1778, 24
  %v1954 = vpop.permute.xlu0 %1953
  %1955 = vrot.lane.b32.xlu0 %v1780, 24
  %v1956 = vpop.permute.xlu0 %1955
  %1957 = vrot.lane.b32.xlu0 %v1781, 24
  %v1958 = vpop.permute.xlu0 %1957
  %1959 = vrot.lane.b32.xlu0 %v1782, 24
  %v1960 = vpop.permute.xlu0 %1959
  %1961 = vrot.lane.b32.xlu0 %v1783, 24
  %v1962 = vpop.permute.xlu0 %1961
  %1963 = vrot.lane.b32.xlu0 %v1784, 24
  %v1964 = vpop.permute.xlu0 %1963
  %1965 = vrot.lane.b32.xlu0 %v1785, 24
  %v1966 = vpop.permute.xlu0 %1965
  %1967 = vrot.lane.b32.xlu0 %v1786, 24
  %v1968 = vpop.permute.xlu0 %1967
  %v1984 = vsel %vm1259, %v1724, %v1789
  %v1985 = vsel %vm1259, %v1740, %v1789
  %v1986 = vsel %vm1259, %v1725, %v1791
  %v1987 = vsel %vm1259, %v1741, %v1791
  %v1988 = vsel %vm1259, %v1726, %v1793
  %v1989 = vsel %vm1259, %v1742, %v1793
  %v1990 = vsel %vm1259, %v1727, %v1795
  %v1991 = vsel %vm1259, %v1743, %v1795
  %v1992 = vsel %vm1259, %v1728, %v1797
  %v1993 = vsel %vm1259, %v1744, %v1797
  %v1994 = vsel %vm1259, %v1729, %v1799
  %v1995 = vsel %vm1259, %v1745, %v1799
  %v1996 = vsel %vm1259, %v1730, %v1801
  %v1997 = vsel %vm1259, %v1746, %v1801
  %v1998 = vsel %vm1259, %v1731, %v1803
  %v1999 = vsel %vm1259, %v1747, %v1803
  %v2000 = vsel %vm1259, %v1732, %v1805
  %v2001 = vsel %vm1259, %v1748, %v1805
  %v2002 = vsel %vm1259, %v1733, %v1807
  %v2003 = vsel %vm1259, %v1749, %v1807
  %v2004 = vsel %vm1259, %v1734, %v1809
  %v2005 = vsel %vm1259, %v1750, %v1809
  %v2006 = vsel %vm1259, %v1735, %v1811
  %v2007 = vsel %vm1259, %v1751, %v1811
  %v2008 = vsel %vm1259, %v1736, %v1813
  %v2009 = vsel %vm1259, %v1752, %v1813
  %v2010 = vsel %vm1259, %v1737, %v1815
  %v2011 = vsel %vm1259, %v1753, %v1815
  %v2012 = vsel %vm1259, %v1738, %v1817
  %v2013 = vsel %vm1259, %v1754, %v1817
  %v2014 = vsel %vm1259, %v1739, %v1819
  %v2015 = vsel %vm1259, %v1755, %v1819
  %v2016 = vsel %vm1293, %v1984, %v1852
  %v2017 = vsel %vm1293, %v1985, %v1852
  %v2018 = vsel %vm1293, %v1986, %v1854
  %v2019 = vsel %vm1293, %v1987, %v1856
  %v2020 = vsel %vm1293, %v1988, %v1858
  %v2021 = vsel %vm1293, %v1989, %v1860
  %v2022 = vsel %vm1293, %v1990, %v1862
  %v2023 = vsel %vm1293, %v1991, %v1864
  %v2024 = vsel %vm1293, %v1992, %v1866
  %v2025 = vsel %vm1293, %v1993, %v1868
  %v2026 = vsel %vm1293, %v1994, %v1870
  %v2027 = vsel %vm1293, %v1995, %v1872
  %v2028 = vsel %vm1293, %v1996, %v1874
  %v2029 = vsel %vm1293, %v1997, %v1876
  %v2030 = vsel %vm1293, %v1998, %v1878
  %v2031 = vsel %vm1293, %v1999, %v1880
  %v2032 = vsel %vm1293, %v2000, %v1852
  %v2033 = vsel %vm1293, %v2001, %v1852
  %v2034 = vsel %vm1293, %v2002, %v1882
  %v2035 = vsel %vm1293, %v2003, %v1884
  %v2036 = vsel %vm1293, %v2004, %v1886
  %v2037 = vsel %vm1293, %v2005, %v1888
  %v2038 = vsel %vm1293, %v2006, %v1890
  %v2039 = vsel %vm1293, %v2007, %v1892
  %v2040 = vsel %vm1293, %v2008, %v1894
  %v2041 = vsel %vm1293, %v2009, %v1896
  %v2042 = vsel %vm1293, %v2010, %v1898
  %v2043 = vsel %vm1293, %v2011, %v1900
  %v2044 = vsel %vm1293, %v2012, %v1902
  %v2045 = vsel %vm1293, %v2013, %v1904
  %v2046 = vsel %vm1293, %v2014, %v1906
  %v2047 = vsel %vm1293, %v2015, %v1908
  %v2048 = vsel %vm1327, %v2016, %v1940
  %v2049 = vsel %vm1327, %v2017, %v1940
  %v2050 = vsel %vm1327, %v2018, %v1942
  %v2051 = vsel %vm1327, %v2019, %v1942
  %v2052 = vsel %vm1327, %v2020, %v1944
  %v2053 = vsel %vm1327, %v2021, %v1944
  %v2054 = vsel %vm1327, %v2022, %v1946
  %v2055 = vsel %vm1327, %v2023, %v1946
  %v2056 = vsel %vm1327, %v2024, %v1948
  %v2057 = vsel %vm1327, %v2025, %v1948
  %v2058 = vsel %vm1327, %v2026, %v1950
  %v2059 = vsel %vm1327, %v2027, %v1950
  %v2060 = vsel %vm1327, %v2028, %v1952
  %v2061 = vsel %vm1327, %v2029, %v1952
  %v2062 = vsel %vm1327, %v2030, %v1954
  %v2063 = vsel %vm1327, %v2031, %v1954
  %v2064 = vsel %vm1327, %v2032, %v1940
  %v2065 = vsel %vm1327, %v2033, %v1940
  %v2066 = vsel %vm1327, %v2034, %v1956
  %v2067 = vsel %vm1327, %v2035, %v1956
  %v2068 = vsel %vm1327, %v2036, %v1958
  %v2069 = vsel %vm1327, %v2037, %v1958
  %v2070 = vsel %vm1327, %v2038, %v1960
  %v2071 = vsel %vm1327, %v2039, %v1960
  %v2072 = vsel %vm1327, %v2040, %v1962
  %v2073 = vsel %vm1327, %v2041, %v1962
  %v2074 = vsel %vm1327, %v2042, %v1964
  %v2075 = vsel %vm1327, %v2043, %v1964
  %v2076 = vsel %vm1327, %v2044, %v1966
  %v2077 = vsel %vm1327, %v2045, %v1966
  %v2078 = vsel %vm1327, %v2046, %v1968
  %v2079 = vsel %vm1327, %v2047, %v1968
  %v2112 = vrot.slane %v2048, 1
  %v2113 = vrot.slane %v2049, 1
  %v2114 = vsel %vm193, %v2112, %v2113
  %v2115 = vrot.slane %v2050, 1
  %v2116 = vrot.slane %v2051, 1
  %v2117 = vsel %vm193, %v2115, %v2116
  %v2118 = vrot.slane %v2052, 1
  %v2119 = vrot.slane %v2053, 1
  %v2120 = vsel %vm193, %v2118, %v2119
  %v2121 = vrot.slane %v2054, 1
  %v2122 = vrot.slane %v2055, 1
  %v2123 = vsel %vm193, %v2121, %v2122
  %v2124 = vrot.slane %v2056, 1
  %v2125 = vrot.slane %v2057, 1
  %v2126 = vsel %vm193, %v2124, %v2125
  %v2127 = vrot.slane %v2058, 1
  %v2128 = vrot.slane %v2059, 1
  %v2129 = vsel %vm193, %v2127, %v2128
  %v2130 = vrot.slane %v2060, 1
  %v2131 = vrot.slane %v2061, 1
  %v2132 = vsel %vm193, %v2130, %v2131
  %v2133 = vrot.slane %v2062, 1
  %v2134 = vrot.slane %v2063, 1
  %v2135 = vsel %vm193, %v2133, %v2134
  %v2136 = vrot.slane %v2064, 1
  %v2137 = vrot.slane %v2065, 1
  %v2138 = vsel %vm193, %v2136, %v2137
  %v2139 = vrot.slane %v2066, 1
  %v2140 = vrot.slane %v2067, 1
  %v2141 = vsel %vm193, %v2139, %v2140
  %v2142 = vrot.slane %v2068, 1
  %v2143 = vrot.slane %v2069, 1
  %v2144 = vsel %vm193, %v2142, %v2143
  %v2145 = vrot.slane %v2070, 1
  %v2146 = vrot.slane %v2071, 1
  %v2147 = vsel %vm193, %v2145, %v2146
  %v2148 = vrot.slane %v2072, 1
  %v2149 = vrot.slane %v2073, 1
  %v2150 = vsel %vm193, %v2148, %v2149
  %v2151 = vrot.slane %v2074, 1
  %v2152 = vrot.slane %v2075, 1
  %v2153 = vsel %vm193, %v2151, %v2152
  %v2154 = vrot.slane %v2076, 1
  %v2155 = vrot.slane %v2077, 1
  %v2156 = vsel %vm193, %v2154, %v2155
  %v2157 = vrot.slane %v2078, 1
  %v2158 = vrot.slane %v2079, 1
  %v2159 = vsel %vm193, %v2157, %v2158
  %v2176 = vpack.c.bf16 %v2117, %v2114
  %v2177 = vpack.c.bf16 %v2123, %v2120
  %v2178 = vpack.c.bf16 %v2129, %v2126
  %v2179 = vpack.c.bf16 %v2135, %v2132
  %v2180 = vpack.c.bf16 %v2141, %v2138
  %v2181 = vpack.c.bf16 %v2147, %v2144
  %v2182 = vpack.c.bf16 %v2153, %v2150
  %v2183 = vpack.c.bf16 %v2159, %v2156
  %v2184 = vld [vmem:[%s2] sm:$0xf]
  %v2185 = vld [vmem:[%s2 + $0x4] sm:$0xf]
  %v2186 = vld [vmem:[%s2 + $0x8] sm:$0xf]
  %v2187 = vld [vmem:[%s2 + $0xc] sm:$0xf]
  %v2192 = vunpack.c.l.b16 %v2184
  %v2193 = vunpack.c.l.b16 %v2185
  %v2194 = vunpack.c.l.b16 %v2186
  %v2195 = vunpack.c.l.b16 %v2187
  %v2196 = vpack.c.b16 %v2193, %v2192
  %v2197 = vpack.c.b16 %v2195, %v2194
  %v2201 = vsel %vm1361, %v2176, 0
  %v2204 = vsel %vm1361, %v2177, 0
  %v2207 = vsel %vm1361, %v2178, 0
  %v2210 = vsel %vm1361, %v2179, 0
  %v2213 = vsel %vm1361, %v2180, 0
  %v2216 = vsel %vm1361, %v2181, 0
  %v2219 = vsel %vm1361, %v2182, 0
  %v2222 = vsel %vm1361, %v2183, 0
  %2224 = vmatprep.subr.bf16.mxu0 0
  %2225 = vmatpush1.bf16.msra.mxu0 %v2196
  %2226 = vmatprep.subr.bf16.mxu0 0
  %2227 = vmatpush1.bf16.msra.mxu0 %v2197
  %2228 = vmatprep.subr.bf16.mxu0 0
  %2229 = vmatpush1.bf16.msra.mxu0 0
  %2230 = vmatprep.subr.bf16.mxu0 0
  %2231 = vmatpush1.bf16.msra.mxu0 0
  %2232 = vmatprep.subr.bf16.mxu0 0
  %2233 = vmatpush1.bf16.msra.mxu0 0
  %2234 = vmatprep.subr.bf16.mxu0 0
  %2235 = vmatpush1.bf16.msra.mxu0 0
  %2236 = vmatprep.subr.bf16.mxu0 0
  %2237 = vmatpush1.bf16.msra.mxu0 0
  %2238 = vmatprep.subr.bf16.mxu0 0
  %2239 = vmatpush1.bf16.msra.mxu0 0
  %2240 = vmatprep.subr.bf16.mxu0 0
  %2241 = vmatpush1.bf16.msra.mxu0 0
  %2242 = vmatprep.subr.bf16.mxu0 0
  %2243 = vmatpush1.bf16.msra.mxu0 0
  %2244 = vmatprep.subr.bf16.mxu0 0
  %2245 = vmatpush1.bf16.msra.mxu0 0
  %2246 = vmatprep.subr.bf16.mxu0 0
  %2247 = vmatpush1.bf16.msra.mxu0 0
  %2248 = vmatprep.subr.bf16.mxu0 0
  %2249 = vmatpush1.bf16.msra.mxu0 0
  %2250 = vmatprep.subr.bf16.mxu0 0
  %2251 = vmatpush1.bf16.msra.mxu0 0
  %2252 = vmatprep.subr.bf16.mxu0 0
  %2253 = vmatpush1.bf16.msra.mxu0 0
  %2254 = vmatprep.subr.bf16.mxu0 0
  %2255 = vmatpush1.bf16.msra.mxu0 0
  %2256 = vmatprep.mubr.bf16.mxu0 0
  %2257 = vmatmul.mubr.bf16.gmra.mrb[0].mxu0 %v2201
  %v2258 = vpop.f32.mrb[0].mxu0
  %v2259 = vadd.f32 0.0, %v2258
  %v2260 = vpop.f32.mrb[0].mxu0
  %v2261 = vpop.f32.mrb[0].mxu0
  %v2262 = vadd.f32 0.0, %v2261
  %v2263 = vpop.f32.mrb[0].mxu0
  %2264 = vmatprep.mubr.bf16.mxu0 0
  %2265 = vmatmul.mubr.bf16.gmra.mrb[0].mxu0 %v2204
  %v2266 = vpop.f32.mrb[0].mxu0
  %v2267 = vadd.f32 0.0, %v2266
  %v2268 = vpop.f32.mrb[0].mxu0
  %v2269 = vpop.f32.mrb[0].mxu0
  %v2270 = vadd.f32 0.0, %v2269
  %v2271 = vpop.f32.mrb[0].mxu0
  %2272 = vmatprep.mubr.bf16.mxu0 0
  %2273 = vmatmul.mubr.bf16.gmra.mrb[0].mxu0 %v2207
  %v2274 = vpop.f32.mrb[0].mxu0
  %v2275 = vadd.f32 0.0, %v2274
  %v2276 = vpop.f32.mrb[0].mxu0
  %v2277 = vpop.f32.mrb[0].mxu0
  %v2278 = vadd.f32 0.0, %v2277
  %v2279 = vpop.f32.mrb[0].mxu0
  %2280 = vmatprep.mubr.bf16.mxu0 0
  %2281 = vmatmul.mubr.bf16.gmra.mrb[0].mxu0 %v2210
  %v2282 = vpop.f32.mrb[0].mxu0
  %v2283 = vadd.f32 0.0, %v2282
  %v2284 = vpop.f32.mrb[0].mxu0
  %v2285 = vpop.f32.mrb[0].mxu0
  %v2286 = vadd.f32 0.0, %v2285
  %v2287 = vpop.f32.mrb[0].mxu0
  %2288 = vmatprep.mubr.bf16.mxu0 0
  %2289 = vmatmul.mubr.bf16.gmra.mrb[0].mxu0 %v2213
  %v2290 = vpop.f32.mrb[0].mxu0
  %v2291 = vadd.f32 0.0, %v2290
  %v2292 = vpop.f32.mrb[0].mxu0
  %v2293 = vpop.f32.mrb[0].mxu0
  %v2294 = vadd.f32 0.0, %v2293
  %v2295 = vpop.f32.mrb[0].mxu0
  %2296 = vmatprep.mubr.bf16.mxu0 0
  %2297 = vmatmul.mubr.bf16.gmra.mrb[0].mxu0 %v2216
  %v2298 = vpop.f32.mrb[0].mxu0
  %v2299 = vadd.f32 0.0, %v2298
  %v2300 = vpop.f32.mrb[0].mxu0
  %v2301 = vpop.f32.mrb[0].mxu0
  %v2302 = vadd.f32 0.0, %v2301
  %v2303 = vpop.f32.mrb[0].mxu0
  %2304 = vmatprep.mubr.bf16.mxu0 0
  %2305 = vmatmul.mubr.bf16.gmra.mrb[0].mxu0 %v2219
  %v2306 = vpop.f32.mrb[0].mxu0
  %v2307 = vadd.f32 0.0, %v2306
  %v2308 = vpop.f32.mrb[0].mxu0
  %v2309 = vpop.f32.mrb[0].mxu0
  %v2310 = vadd.f32 0.0, %v2309
  %v2311 = vpop.f32.mrb[0].mxu0
  %2312 = vmatprep.mubr.bf16.mxu0 0
  %2313 = vmatmul.mubr.bf16.gmra.mrb[0].mxu0 %v2222
  %v2314 = vpop.f32.mrb[0].mxu0
  %v2315 = vadd.f32 0.0, %v2314
  %v2316 = vpop.f32.mrb[0].mxu0
  %v2317 = vpop.f32.mrb[0].mxu0
  %v2318 = vadd.f32 0.0, %v2317
  %v2319 = vpop.f32.mrb[0].mxu0
  %2320 = vdwg.mxu0
  %v2321 = vsel %vm1242, %v2259, 0.0
  %v2322 = vsel %vm1242, %v2262, 0.0
  %v2323 = vadd.f32 %v2321, %v2322
  %v2324 = vsel %vm1242, %v2267, 0.0
  %v2325 = vadd.f32 %v2323, %v2324
  %v2326 = vsel %vm1242, %v2270, 0.0
  %v2327 = vadd.f32 %v2325, %v2326
  %v2328 = vsel %vm1242, %v2275, 0.0
  %v2329 = vadd.f32 %v2327, %v2328
  %v2330 = vsel %vm1242, %v2278, 0.0
  %v2331 = vadd.f32 %v2329, %v2330
  %v2332 = vsel %vm1242, %v2283, 0.0
  %v2333 = vadd.f32 %v2331, %v2332
  %v2334 = vsel %vm1242, %v2286, 0.0
  %v2335 = vadd.f32 %v2333, %v2334
  %v2336 = vsel %vm1242, %v2291, 0.0
  %v2337 = vadd.f32 %v2335, %v2336
  %v2338 = vsel %vm1242, %v2294, 0.0
  %v2339 = vadd.f32 %v2337, %v2338
  %v2340 = vsel %vm1242, %v2299, 0.0
  %v2341 = vadd.f32 %v2339, %v2340
  %v2342 = vsel %vm1242, %v2302, 0.0
  %v2343 = vadd.f32 %v2341, %v2342
  %v2344 = vsel %vm1242, %v2307, 0.0
  %v2345 = vadd.f32 %v2343, %v2344
  %v2346 = vsel %vm1242, %v2310, 0.0
  %v2347 = vadd.f32 %v2345, %v2346
  %v2348 = vsel %vm1242, %v2315, 0.0
  %v2349 = vadd.f32 %v2347, %v2348
  %v2350 = vsel %vm1242, %v2318, 0.0
  %v2351 = vadd.f32 %v2349, %v2350
  %v2352 = vrot.slane %v2351, 4
  %v2353 = vadd.f32 %v2351, %v2352
  %v2354 = vrot.slane %v2353, 2
  %v2355 = vadd.f32 %v2353, %v2354
  %v2356 = vrot.slane %v2355, 1
  %v2357 = vadd.f32 %v2355, %v2356
  %v2358 = vadd.f32 %v2357, 0.0
  %v2359 = vmul.f32 %v2259, %v2259
  %v2360 = vmul.f32 %v2262, %v2262
  %v2361 = vmul.f32 %v2267, %v2267
  %v2362 = vmul.f32 %v2270, %v2270
  %v2363 = vmul.f32 %v2275, %v2275
  %v2364 = vmul.f32 %v2278, %v2278
  %v2365 = vmul.f32 %v2283, %v2283
  %v2366 = vmul.f32 %v2286, %v2286
  %v2367 = vmul.f32 %v2291, %v2291
  %v2368 = vmul.f32 %v2294, %v2294
  %v2369 = vmul.f32 %v2299, %v2299
  %v2370 = vmul.f32 %v2302, %v2302
  %v2371 = vmul.f32 %v2307, %v2307
  %v2372 = vmul.f32 %v2310, %v2310
  %v2373 = vmul.f32 %v2315, %v2315
  %v2374 = vmul.f32 %v2318, %v2318
  %v2375 = vsel %vm1242, %v2359, 0.0
  %v2376 = vsel %vm1242, %v2360, 0.0
  %v2377 = vadd.f32 %v2375, %v2376
  %v2378 = vsel %vm1242, %v2361, 0.0
  %v2379 = vadd.f32 %v2377, %v2378
  %v2380 = vsel %vm1242, %v2362, 0.0
  %v2381 = vadd.f32 %v2379, %v2380
  %v2382 = vsel %vm1242, %v2363, 0.0
  %v2383 = vadd.f32 %v2381, %v2382
  %v2384 = vsel %vm1242, %v2364, 0.0
  %v2385 = vadd.f32 %v2383, %v2384
  %v2386 = vsel %vm1242, %v2365, 0.0
  %v2387 = vadd.f32 %v2385, %v2386
  %v2388 = vsel %vm1242, %v2366, 0.0
  %v2389 = vadd.f32 %v2387, %v2388
  %v2390 = vsel %vm1242, %v2367, 0.0
  %v2391 = vadd.f32 %v2389, %v2390
  %v2392 = vsel %vm1242, %v2368, 0.0
  %v2393 = vadd.f32 %v2391, %v2392
  %v2394 = vsel %vm1242, %v2369, 0.0
  %v2395 = vadd.f32 %v2393, %v2394
  %v2396 = vsel %vm1242, %v2370, 0.0
  %v2397 = vadd.f32 %v2395, %v2396
  %v2398 = vsel %vm1242, %v2371, 0.0
  %v2399 = vadd.f32 %v2397, %v2398
  %v2400 = vsel %vm1242, %v2372, 0.0
  %v2401 = vadd.f32 %v2399, %v2400
  %v2402 = vsel %vm1242, %v2373, 0.0
  %v2403 = vadd.f32 %v2401, %v2402
  %v2404 = vsel %vm1242, %v2374, 0.0
  %v2405 = vadd.f32 %v2403, %v2404
  %v2406 = vrot.slane %v2405, 4
  %v2407 = vadd.f32 %v2405, %v2406
  %v2408 = vrot.slane %v2407, 2
  %v2409 = vadd.f32 %v2407, %v2408
  %v2410 = vrot.slane %v2409, 1
  %v2411 = vadd.f32 %v2409, %v2410
  %v2412 = vadd.f32 %v2411, 0.0
  %2429 = vrot.lane.b32.xlu0 %v2259, 4
  %v2430 = vpop.permute.xlu0 %2429
  %2431 = vrot.lane.b32.xlu0 %v2262, 4
  %v2432 = vpop.permute.xlu0 %2431
  %2433 = vrot.lane.b32.xlu0 %v2267, 4
  %v2434 = vpop.permute.xlu0 %2433
  %2435 = vrot.lane.b32.xlu0 %v2270, 4
  %v2436 = vpop.permute.xlu0 %2435
  %2437 = vrot.lane.b32.xlu0 %v2275, 4
  %v2438 = vpop.permute.xlu0 %2437
  %2439 = vrot.lane.b32.xlu0 %v2278, 4
  %v2440 = vpop.permute.xlu0 %2439
  %2441 = vrot.lane.b32.xlu0 %v2283, 4
  %v2442 = vpop.permute.xlu0 %2441
  %2443 = vrot.lane.b32.xlu0 %v2286, 4
  %v2444 = vpop.permute.xlu0 %2443
  %2445 = vrot.lane.b32.xlu0 %v2291, 4
  %v2446 = vpop.permute.xlu0 %2445
  %2447 = vrot.lane.b32.xlu0 %v2294, 4
  %v2448 = vpop.permute.xlu0 %2447
  %2449 = vrot.lane.b32.xlu0 %v2299, 4
  %v2450 = vpop.permute.xlu0 %2449
  %2451 = vrot.lane.b32.xlu0 %v2302, 4
  %v2452 = vpop.permute.xlu0 %2451
  %2453 = vrot.lane.b32.xlu0 %v2307, 4
  %v2454 = vpop.permute.xlu0 %2453
  %2455 = vrot.lane.b32.xlu0 %v2310, 4
  %v2456 = vpop.permute.xlu0 %2455
  %2457 = vrot.lane.b32.xlu0 %v2315, 4
  %v2458 = vpop.permute.xlu0 %2457
  %2459 = vrot.lane.b32.xlu0 %v2318, 4
  %v2460 = vpop.permute.xlu0 %2459
  %v2477 = vsel %vm1242, %v71, %v2430
  %v2478 = vsel %vm1242, %v73, %v2432
  %v2479 = vsel %vm1242, %v75, %v2434
  %v2480 = vsel %vm1242, %v77, %v2436
  %v2481 = vsel %vm1242, %v79, %v2438
  %v2482 = vsel %vm1242, %v81, %v2440
  %v2483 = vsel %vm1242, %v83, %v2442
  %v2484 = vsel %vm1242, %v85, %v2444
  %v2485 = vsel %vm1242, %v143, %v2446
  %v2486 = vsel %vm1242, %v145, %v2448
  %v2487 = vsel %vm1242, %v147, %v2450
  %v2488 = vsel %vm1242, %v149, %v2452
  %v2489 = vsel %vm1242, %v151, %v2454
  %v2490 = vsel %vm1242, %v153, %v2456
  %v2491 = vsel %vm1242, %v155, %v2458
  %v2492 = vsel %vm1242, %v157, %v2460
  %2493 = vxpose.xlu0.b32.start [1/16] %v2477, 128
  %2494 = vxpose.xlu0.b32.cont [2/16] %v2478, 128
  %2495 = vxpose.xlu0.b32.cont [3/16] %v2479, 128
  %2496 = vxpose.xlu0.b32.cont [4/16] %v2480, 128
  %2497 = vxpose.xlu0.b32.cont [5/16] %v2481, 128
  %2498 = vxpose.xlu0.b32.cont [6/16] %v2482, 128
  %2499 = vxpose.xlu0.b32.cont [7/16] %v2483, 128
  %2500 = vxpose.xlu0.b32.cont [8/16] %v2484, 128
  %2501 = vxpose.xlu0.b32.cont [9/16] %v2485, 128
  %2502 = vxpose.xlu0.b32.cont [10/16] %v2486, 128
  %2503 = vxpose.xlu0.b32.cont [11/16] %v2487, 128
  %2504 = vxpose.xlu0.b32.cont [12/16] %v2488, 128
  %2505 = vxpose.xlu0.b32.cont [13/16] %v2489, 128
  %2506 = vxpose.xlu0.b32.cont [14/16] %v2490, 128
  %2507 = vxpose.xlu0.b32.cont [15/16] %v2491, 128
  %2508 = vxpose.xlu0.b32.end [16/16] %v2492, 128
  %v2509 = vpop.trf.xlu0
  %v2510 = vpop.trf.xlu0
  %v2511 = vpop.trf.xlu0
  %v2512 = vpop.trf.xlu0
  %v2513 = vpop.trf.xlu0
  %v2514 = vpop.trf.xlu0
  %v2515 = vpop.trf.xlu0
  %v2516 = vpop.trf.xlu0
  %v2517 = vpop.trf.xlu0
  %v2518 = vpop.trf.xlu0
  %v2519 = vpop.trf.xlu0
  %v2520 = vpop.trf.xlu0
  %v2521 = vpop.trf.xlu0
  %v2522 = vpop.trf.xlu0
  %v2523 = vpop.trf.xlu0
  %v2524 = vpop.trf.xlu0
  %v2527 = vrot.slane %v1740, 7
  %v2528 = vsel %vm1723, %v1772, %v2527
  %v2529 = vrot.slane %v1741, 7
  %v2530 = vsel %vm1723, %v1773, %v2529
  %v2531 = vrot.slane %v1742, 7
  %v2532 = vsel %vm1723, %v1774, %v2531
  %v2533 = vrot.slane %v1743, 7
  %v2534 = vsel %vm1723, %v1775, %v2533
  %v2535 = vrot.slane %v1744, 7
  %v2536 = vsel %vm1723, %v1776, %v2535
  %v2537 = vrot.slane %v1745, 7
  %v2538 = vsel %vm1723, %v1777, %v2537
  %v2539 = vrot.slane %v1746, 7
  %v2540 = vsel %vm1723, %v1778, %v2539
  %v2541 = vrot.slane %v1747, 7
  %v2542 = vsel %vm1723, %v1779, %v2541
  %v2543 = vrot.slane %v1748, 7
  %v2544 = vsel %vm1723, %v1780, %v2543
  %v2545 = vrot.slane %v1749, 7
  %v2546 = vsel %vm1723, %v1781, %v2545
  %v2547 = vrot.slane %v1750, 7
  %v2548 = vsel %vm1723, %v1782, %v2547
  %v2549 = vrot.slane %v1751, 7
  %v2550 = vsel %vm1723, %v1783, %v2549
  %v2551 = vrot.slane %v1752, 7
  %v2552 = vsel %vm1723, %v1784, %v2551
  %v2553 = vrot.slane %v1753, 7
  %v2554 = vsel %vm1723, %v1785, %v2553
  %v2555 = vrot.slane %v1754, 7
  %v2556 = vsel %vm1723, %v1786, %v2555
  %v2557 = vrot.slane %v1755, 7
  %v2558 = vsel %vm1723, %v1787, %v2557
  %2559 = vrot.lane.b32.xlu0 %v2528, 8
  %v2560 = vpop.permute.xlu0 %2559
  %2561 = vrot.lane.b32.xlu0 %v2530, 8
  %v2562 = vpop.permute.xlu0 %2561
  %2563 = vrot.lane.b32.xlu0 %v2532, 8
  %v2564 = vpop.permute.xlu0 %2563
  %2565 = vrot.lane.b32.xlu0 %v2534, 8
  %v2566 = vpop.permute.xlu0 %2565
  %2567 = vrot.lane.b32.xlu0 %v2536, 8
  %v2568 = vpop.permute.xlu0 %2567
  %2569 = vrot.lane.b32.xlu0 %v2538, 8
  %v2570 = vpop.permute.xlu0 %2569
  %2571 = vrot.lane.b32.xlu0 %v2540, 8
  %v2572 = vpop.permute.xlu0 %2571
  %2573 = vrot.lane.b32.xlu0 %v2542, 8
  %v2574 = vpop.permute.xlu0 %2573
  %2575 = vrot.lane.b32.xlu0 %v2544, 8
  %v2576 = vpop.permute.xlu0 %2575
  %2577 = vrot.lane.b32.xlu0 %v2546, 8
  %v2578 = vpop.permute.xlu0 %2577
  %2579 = vrot.lane.b32.xlu0 %v2548, 8
  %v2580 = vpop.permute.xlu0 %2579
  %2581 = vrot.lane.b32.xlu0 %v2550, 8
  %v2582 = vpop.permute.xlu0 %2581
  %2583 = vrot.lane.b32.xlu0 %v2552, 8
  %v2584 = vpop.permute.xlu0 %2583
  %2585 = vrot.lane.b32.xlu0 %v2554, 8
  %v2586 = vpop.permute.xlu0 %2585
  %2587 = vrot.lane.b32.xlu0 %v2556, 8
  %v2588 = vpop.permute.xlu0 %2587
  %2589 = vrot.lane.b32.xlu0 %v2558, 8
  %v2590 = vpop.permute.xlu0 %2589
  %v2607 = vsel %vm1723, %v1938, %v1938
  %2608 = vrot.lane.b32.xlu0 %v2607, 24
  %v2609 = vpop.permute.xlu0 %2608
  %2610 = vrot.lane.b32.xlu0 %v2528, 24
  %v2611 = vpop.permute.xlu0 %2610
  %2612 = vrot.lane.b32.xlu0 %v2530, 24
  %v2613 = vpop.permute.xlu0 %2612
  %2614 = vrot.lane.b32.xlu0 %v2532, 24
  %v2615 = vpop.permute.xlu0 %2614
  %2616 = vrot.lane.b32.xlu0 %v2534, 24
  %v2617 = vpop.permute.xlu0 %2616
  %2618 = vrot.lane.b32.xlu0 %v2536, 24
  %v2619 = vpop.permute.xlu0 %2618
  %2620 = vrot.lane.b32.xlu0 %v2538, 24
  %v2621 = vpop.permute.xlu0 %2620
  %2622 = vrot.lane.b32.xlu0 %v2540, 24
  %v2623 = vpop.permute.xlu0 %2622
  %2624 = vrot.lane.b32.xlu0 %v2544, 24
  %v2625 = vpop.permute.xlu0 %2624
  %2626 = vrot.lane.b32.xlu0 %v2546, 24
  %v2627 = vpop.permute.xlu0 %2626
  %2628 = vrot.lane.b32.xlu0 %v2548, 24
  %v2629 = vpop.permute.xlu0 %2628
  %2630 = vrot.lane.b32.xlu0 %v2550, 24
  %v2631 = vpop.permute.xlu0 %2630
  %2632 = vrot.lane.b32.xlu0 %v2552, 24
  %v2633 = vpop.permute.xlu0 %2632
  %2634 = vrot.lane.b32.xlu0 %v2554, 24
  %v2635 = vpop.permute.xlu0 %2634
  %2636 = vrot.lane.b32.xlu0 %v2556, 24
  %v2637 = vpop.permute.xlu0 %2636
  %v2653 = vsel %vm1259, %v1740, %v2560
  %v2654 = vsel %vm1259, %v1741, %v2562
  %v2655 = vsel %vm1259, %v1742, %v2564
  %v2656 = vsel %vm1259, %v1743, %v2566
  %v2657 = vsel %vm1259, %v1744, %v2568
  %v2658 = vsel %vm1259, %v1745, %v2570
  %v2659 = vsel %vm1259, %v1746, %v2572
  %v2660 = vsel %vm1259, %v1747, %v2574
  %v2661 = vsel %vm1259, %v1748, %v2576
  %v2662 = vsel %vm1259, %v1749, %v2578
  %v2663 = vsel %vm1259, %v1750, %v2580
  %v2664 = vsel %vm1259, %v1751, %v2582
  %v2665 = vsel %vm1259, %v1752, %v2584
  %v2666 = vsel %vm1259, %v1753, %v2586
  %v2667 = vsel %vm1259, %v1754, %v2588
  %v2668 = vsel %vm1259, %v1755, %v2590
  %v2669 = vsel %vm1293, %v2653, %v1852
  %v2670 = vsel %vm1293, %v2654, %v1856
  %v2671 = vsel %vm1293, %v2655, %v1860
  %v2672 = vsel %vm1293, %v2656, %v1864
  %v2673 = vsel %vm1293, %v2657, %v1868
  %v2674 = vsel %vm1293, %v2658, %v1872
  %v2675 = vsel %vm1293, %v2659, %v1876
  %v2676 = vsel %vm1293, %v2660, %v1880
  %v2677 = vsel %vm1293, %v2661, %v1852
  %v2678 = vsel %vm1293, %v2662, %v1884
  %v2679 = vsel %vm1293, %v2663, %v1888
  %v2680 = vsel %vm1293, %v2664, %v1892
  %v2681 = vsel %vm1293, %v2665, %v1896
  %v2682 = vsel %vm1293, %v2666, %v1900
  %v2683 = vsel %vm1293, %v2667, %v1904
  %v2684 = vsel %vm1293, %v2668, %v1908
  %v2685 = vsel %vm1327, %v2669, %v2609
  %v2686 = vsel %vm1327, %v2670, %v2611
  %v2687 = vsel %vm1327, %v2671, %v2613
  %v2688 = vsel %vm1327, %v2672, %v2615
  %v2689 = vsel %vm1327, %v2673, %v2617
  %v2690 = vsel %vm1327, %v2674, %v2619
  %v2691 = vsel %vm1327, %v2675, %v2621
  %v2692 = vsel %vm1327, %v2676, %v2623
  %v2693 = vsel %vm1327, %v2677, %v2609
  %v2694 = vsel %vm1327, %v2678, %v2625
  %v2695 = vsel %vm1327, %v2679, %v2627
  %v2696 = vsel %vm1327, %v2680, %v2629
  %v2697 = vsel %vm1327, %v2681, %v2631
  %v2698 = vsel %vm1327, %v2682, %v2633
  %v2699 = vsel %vm1327, %v2683, %v2635
  %v2700 = vsel %vm1327, %v2684, %v2637
  %vm2717 = vcmask 1045504
  %v2718 = vrot.slane %v2048, 2
  %v2719 = vrot.slane %v2685, 2
  %v2720 = vsel %vm2717, %v2718, %v2719
  %v2721 = vrot.slane %v2050, 2
  %v2722 = vrot.slane %v2686, 2
  %v2723 = vsel %vm2717, %v2721, %v2722
  %v2724 = vrot.slane %v2052, 2
  %v2725 = vrot.slane %v2687, 2
  %v2726 = vsel %vm2717, %v2724, %v2725
  %v2727 = vrot.slane %v2054, 2
  %v2728 = vrot.slane %v2688, 2
  %v2729 = vsel %vm2717, %v2727, %v2728
  %v2730 = vrot.slane %v2056, 2
  %v2731 = vrot.slane %v2689, 2
  %v2732 = vsel %vm2717, %v2730, %v2731
  %v2733 = vrot.slane %v2058, 2
  %v2734 = vrot.slane %v2690, 2
  %v2735 = vsel %vm2717, %v2733, %v2734
  %v2736 = vrot.slane %v2060, 2
  %v2737 = vrot.slane %v2691, 2
  %v2738 = vsel %vm2717, %v2736, %v2737
  %v2739 = vrot.slane %v2062, 2
  %v2740 = vrot.slane %v2692, 2
  %v2741 = vsel %vm2717, %v2739, %v2740
  %v2742 = vrot.slane %v2064, 2
  %v2743 = vrot.slane %v2693, 2
  %v2744 = vsel %vm2717, %v2742, %v2743
  %v2745 = vrot.slane %v2066, 2
  %v2746 = vrot.slane %v2694, 2
  %v2747 = vsel %vm2717, %v2745, %v2746
  %v2748 = vrot.slane %v2068, 2
  %v2749 = vrot.slane %v2695, 2
  %v2750 = vsel %vm2717, %v2748, %v2749
  %v2751 = vrot.slane %v2070, 2
  %v2752 = vrot.slane %v2696, 2
  %v2753 = vsel %vm2717, %v2751, %v2752
  %v2754 = vrot.slane %v2072, 2
  %v2755 = vrot.slane %v2697, 2
  %v2756 = vsel %vm2717, %v2754, %v2755
  %v2757 = vrot.slane %v2074, 2
  %v2758 = vrot.slane %v2698, 2
  %v2759 = vsel %vm2717, %v2757, %v2758
  %v2760 = vrot.slane %v2076, 2
  %v2761 = vrot.slane %v2699, 2
  %v2762 = vsel %vm2717, %v2760, %v2761
  %v2763 = vrot.slane %v2078, 2
  %v2764 = vrot.slane %v2700, 2
  %v2765 = vsel %vm2717, %v2763, %v2764
  %v2782 = vpack.c.bf16 %v2723, %v2720
  %v2783 = vpack.c.bf16 %v2729, %v2726
  %v2784 = vpack.c.bf16 %v2735, %v2732
  %v2785 = vpack.c.bf16 %v2741, %v2738
  %v2786 = vpack.c.bf16 %v2747, %v2744
  %v2787 = vpack.c.bf16 %v2753, %v2750
  %v2788 = vpack.c.bf16 %v2759, %v2756
  %v2789 = vpack.c.bf16 %v2765, %v2762
  %s2790 = scalar_lea.vmem %s2, 16
  %v2791 = vld [vmem:[%s2790] sm:$0xf]
  %v2792 = vld [vmem:[%s2790 + $0x4] sm:$0xf]
  %v2793 = vld [vmem:[%s2790 + $0x8] sm:$0xf]
  %v2794 = vld [vmem:[%s2790 + $0xc] sm:$0xf]
  %v2799 = vunpack.c.l.b16 %v2791
  %v2800 = vunpack.c.l.b16 %v2792
  %v2801 = vunpack.c.l.b16 %v2793
  %v2802 = vunpack.c.l.b16 %v2794
  %v2803 = vpack.c.b16 %v2800, %v2799
  %v2804 = vpack.c.b16 %v2802, %v2801
  %v2808 = vsel %vm1361, %v2782, 0
  %v2811 = vsel %vm1361, %v2783, 0
  %v2814 = vsel %vm1361, %v2784, 0
  %v2817 = vsel %vm1361, %v2785, 0
  %v2820 = vsel %vm1361, %v2786, 0
  %v2823 = vsel %vm1361, %v2787, 0
  %v2826 = vsel %vm1361, %v2788, 0
  %v2829 = vsel %vm1361, %v2789, 0
  %2831 = vmatprep.subr.bf16.mxu0 0
  %2832 = vmatpush1.bf16.msra.mxu0 %v2803
  %2833 = vmatprep.subr.bf16.mxu0 0
  %2834 = vmatpush1.bf16.msra.mxu0 %v2804
  %2835 = vmatprep.subr.bf16.mxu0 0
  %2836 = vmatpush1.bf16.msra.mxu0 0
  %2837 = vmatprep.subr.bf16.mxu0 0
  %2838 = vmatpush1.bf16.msra.mxu0 0
  %2839 = vmatprep.subr.bf16.mxu0 0
  %2840 = vmatpush1.bf16.msra.mxu0 0
  %2841 = vmatprep.subr.bf16.mxu0 0
  %2842 = vmatpush1.bf16.msra.mxu0 0
  %2843 = vmatprep.subr.bf16.mxu0 0
  %2844 = vmatpush1.bf16.msra.mxu0 0
  %2845 = vmatprep.subr.bf16.mxu0 0
  %2846 = vmatpush1.bf16.msra.mxu0 0
  %2847 = vmatprep.subr.bf16.mxu0 0
  %2848 = vmatpush1.bf16.msra.mxu0 0
  %2849 = vmatprep.subr.bf16.mxu0 0
  %2850 = vmatpush1.bf16.msra.mxu0 0
  %2851 = vmatprep.subr.bf16.mxu0 0
  %2852 = vmatpush1.bf16.msra.mxu0 0
  %2853 = vmatprep.subr.bf16.mxu0 0
  %2854 = vmatpush1.bf16.msra.mxu0 0
  %2855 = vmatprep.subr.bf16.mxu0 0
  %2856 = vmatpush1.bf16.msra.mxu0 0
  %2857 = vmatprep.subr.bf16.mxu0 0
  %2858 = vmatpush1.bf16.msra.mxu0 0
  %2859 = vmatprep.subr.bf16.mxu0 0
  %2860 = vmatpush1.bf16.msra.mxu0 0
  %2861 = vmatprep.subr.bf16.mxu0 0
  %2862 = vmatpush1.bf16.msra.mxu0 0
  %2863 = vmatprep.mubr.bf16.mxu0 0
  %2864 = vmatmul.mubr.bf16.gmra.mrb[0].mxu0 %v2808
  %v2865 = vpop.f32.mrb[0].mxu0
  %v2866 = vadd.f32 0.0, %v2865
  %v2867 = vpop.f32.mrb[0].mxu0
  %v2868 = vpop.f32.mrb[0].mxu0
  %v2869 = vadd.f32 0.0, %v2868
  %v2870 = vpop.f32.mrb[0].mxu0
  %2871 = vmatprep.mubr.bf16.mxu0 0
  %2872 = vmatmul.mubr.bf16.gmra.mrb[0].mxu0 %v2811
  %v2873 = vpop.f32.mrb[0].mxu0
  %v2874 = vadd.f32 0.0, %v2873
  %v2875 = vpop.f32.mrb[0].mxu0
  %v2876 = vpop.f32.mrb[0].mxu0
  %v2877 = vadd.f32 0.0, %v2876
  %v2878 = vpop.f32.mrb[0].mxu0
  %2879 = vmatprep.mubr.bf16.mxu0 0
  %2880 = vmatmul.mubr.bf16.gmra.mrb[0].mxu0 %v2814
  %v2881 = vpop.f32.mrb[0].mxu0
  %v2882 = vadd.f32 0.0, %v2881
  %v2883 = vpop.f32.mrb[0].mxu0
  %v2884 = vpop.f32.mrb[0].mxu0
  %v2885 = vadd.f32 0.0, %v2884
  %v2886 = vpop.f32.mrb[0].mxu0
  %2887 = vmatprep.mubr.bf16.mxu0 0
  %2888 = vmatmul.mubr.bf16.gmra.mrb[0].mxu0 %v2817
  %v2889 = vpop.f32.mrb[0].mxu0
  %v2890 = vadd.f32 0.0, %v2889
  %v2891 = vpop.f32.mrb[0].mxu0
  %v2892 = vpop.f32.mrb[0].mxu0
  %v2893 = vadd.f32 0.0, %v2892
  %v2894 = vpop.f32.mrb[0].mxu0
  %2895 = vmatprep.mubr.bf16.mxu0 0
  %2896 = vmatmul.mubr.bf16.gmra.mrb[0].mxu0 %v2820
  %v2897 = vpop.f32.mrb[0].mxu0
  %v2898 = vadd.f32 0.0, %v2897
  %v2899 = vpop.f32.mrb[0].mxu0
  %v2900 = vpop.f32.mrb[0].mxu0
  %v2901 = vadd.f32 0.0, %v2900
  %v2902 = vpop.f32.mrb[0].mxu0
  %2903 = vmatprep.mubr.bf16.mxu0 0
  %2904 = vmatmul.mubr.bf16.gmra.mrb[0].mxu0 %v2823
  %v2905 = vpop.f32.mrb[0].mxu0
  %v2906 = vadd.f32 0.0, %v2905
  %v2907 = vpop.f32.mrb[0].mxu0
  %v2908 = vpop.f32.mrb[0].mxu0
  %v2909 = vadd.f32 0.0, %v2908
  %v2910 = vpop.f32.mrb[0].mxu0
  %2911 = vmatprep.mubr.bf16.mxu0 0
  %2912 = vmatmul.mubr.bf16.gmra.mrb[0].mxu0 %v2826
  %v2913 = vpop.f32.mrb[0].mxu0
  %v2914 = vadd.f32 0.0, %v2913
  %v2915 = vpop.f32.mrb[0].mxu0
  %v2916 = vpop.f32.mrb[0].mxu0
  %v2917 = vadd.f32 0.0, %v2916
  %v2918 = vpop.f32.mrb[0].mxu0
  %2919 = vmatprep.mubr.bf16.mxu0 0
  %2920 = vmatmul.mubr.bf16.gmra.mrb[0].mxu0 %v2829
  %v2921 = vpop.f32.mrb[0].mxu0
  %v2922 = vadd.f32 0.0, %v2921
  %v2923 = vpop.f32.mrb[0].mxu0
  %v2924 = vpop.f32.mrb[0].mxu0
  %v2925 = vadd.f32 0.0, %v2924
  %v2926 = vpop.f32.mrb[0].mxu0
  %2927 = vdwg.mxu0
  %v2928 = vsel %vm1242, %v2866, 0.0
  %v2929 = vsel %vm1242, %v2869, 0.0
  %v2930 = vadd.f32 %v2928, %v2929
  %v2931 = vsel %vm1242, %v2874, 0.0
  %v2932 = vadd.f32 %v2930, %v2931
  %v2933 = vsel %vm1242, %v2877, 0.0
  %v2934 = vadd.f32 %v2932, %v2933
  %v2935 = vsel %vm1242, %v2882, 0.0
  %v2936 = vadd.f32 %v2934, %v2935
  %v2937 = vsel %vm1242, %v2885, 0.0
  %v2938 = vadd.f32 %v2936, %v2937
  %v2939 = vsel %vm1242, %v2890, 0.0
  %v2940 = vadd.f32 %v2938, %v2939
  %v2941 = vsel %vm1242, %v2893, 0.0
  %v2942 = vadd.f32 %v2940, %v2941
  %v2943 = vsel %vm1242, %v2898, 0.0
  %v2944 = vadd.f32 %v2942, %v2943
  %v2945 = vsel %vm1242, %v2901, 0.0
  %v2946 = vadd.f32 %v2944, %v2945
  %v2947 = vsel %vm1242, %v2906, 0.0
  %v2948 = vadd.f32 %v2946, %v2947
  %v2949 = vsel %vm1242, %v2909, 0.0
  %v2950 = vadd.f32 %v2948, %v2949
  %v2951 = vsel %vm1242, %v2914, 0.0
  %v2952 = vadd.f32 %v2950, %v2951
  %v2953 = vsel %vm1242, %v2917, 0.0
  %v2954 = vadd.f32 %v2952, %v2953
  %v2955 = vsel %vm1242, %v2922, 0.0
  %v2956 = vadd.f32 %v2954, %v2955
  %v2957 = vsel %vm1242, %v2925, 0.0
  %v2958 = vadd.f32 %v2956, %v2957
  %v2959 = vrot.slane %v2958, 4
  %v2960 = vadd.f32 %v2958, %v2959
  %v2961 = vrot.slane %v2960, 2
  %v2962 = vadd.f32 %v2960, %v2961
  %v2963 = vrot.slane %v2962, 1
  %v2964 = vadd.f32 %v2962, %v2963
  %v2965 = vadd.f32 %v2358, %v2964
  %v2966 = vmul.f32 %v2866, %v2866
  %v2967 = vmul.f32 %v2869, %v2869
  %v2968 = vmul.f32 %v2874, %v2874
  %v2969 = vmul.f32 %v2877, %v2877
  %v2970 = vmul.f32 %v2882, %v2882
  %v2971 = vmul.f32 %v2885, %v2885
  %v2972 = vmul.f32 %v2890, %v2890
  %v2973 = vmul.f32 %v2893, %v2893
  %v2974 = vmul.f32 %v2898, %v2898
  %v2975 = vmul.f32 %v2901, %v2901
  %v2976 = vmul.f32 %v2906, %v2906
  %v2977 = vmul.f32 %v2909, %v2909
  %v2978 = vmul.f32 %v2914, %v2914
  %v2979 = vmul.f32 %v2917, %v2917
  %v2980 = vmul.f32 %v2922, %v2922
  %v2981 = vmul.f32 %v2925, %v2925
  %v2982 = vsel %vm1242, %v2966, 0.0
  %v2983 = vsel %vm1242, %v2967, 0.0
  %v2984 = vadd.f32 %v2982, %v2983
  %v2985 = vsel %vm1242, %v2968, 0.0
  %v2986 = vadd.f32 %v2984, %v2985
  %v2987 = vsel %vm1242, %v2969, 0.0
  %v2988 = vadd.f32 %v2986, %v2987
  %v2989 = vsel %vm1242, %v2970, 0.0
  %v2990 = vadd.f32 %v2988, %v2989
  %v2991 = vsel %vm1242, %v2971, 0.0
  %v2992 = vadd.f32 %v2990, %v2991
  %v2993 = vsel %vm1242, %v2972, 0.0
  %v2994 = vadd.f32 %v2992, %v2993
  %v2995 = vsel %vm1242, %v2973, 0.0
  %v2996 = vadd.f32 %v2994, %v2995
  %v2997 = vsel %vm1242, %v2974, 0.0
  %v2998 = vadd.f32 %v2996, %v2997
  %v2999 = vsel %vm1242, %v2975, 0.0
  %v3000 = vadd.f32 %v2998, %v2999
  %v3001 = vsel %vm1242, %v2976, 0.0
  %v3002 = vadd.f32 %v3000, %v3001
  %v3003 = vsel %vm1242, %v2977, 0.0
  %v3004 = vadd.f32 %v3002, %v3003
  %v3005 = vsel %vm1242, %v2978, 0.0
  %v3006 = vadd.f32 %v3004, %v3005
  %v3007 = vsel %vm1242, %v2979, 0.0
  %v3008 = vadd.f32 %v3006, %v3007
  %v3009 = vsel %vm1242, %v2980, 0.0
  %v3010 = vadd.f32 %v3008, %v3009
  %v3011 = vsel %vm1242, %v2981, 0.0
  %v3012 = vadd.f32 %v3010, %v3011
  %v3013 = vrot.slane %v3012, 4
  %v3014 = vadd.f32 %v3012, %v3013
  %v3015 = vrot.slane %v3014, 2
  %v3016 = vadd.f32 %v3014, %v3015
  %v3017 = vrot.slane %v3016, 1
  %v3018 = vadd.f32 %v3016, %v3017
  %v3019 = vadd.f32 %v2412, %v3018
  %3052 = vrot.lane.b32.xlu0 %v2866, 4
  %v3053 = vpop.permute.xlu0 %3052
  %3054 = vrot.lane.b32.xlu0 %v2869, 4
  %v3055 = vpop.permute.xlu0 %3054
  %3056 = vrot.lane.b32.xlu0 %v2874, 4
  %v3057 = vpop.permute.xlu0 %3056
  %3058 = vrot.lane.b32.xlu0 %v2877, 4
  %v3059 = vpop.permute.xlu0 %3058
  %3060 = vrot.lane.b32.xlu0 %v2882, 4
  %v3061 = vpop.permute.xlu0 %3060
  %3062 = vrot.lane.b32.xlu0 %v2885, 4
  %v3063 = vpop.permute.xlu0 %3062
  %3064 = vrot.lane.b32.xlu0 %v2890, 4
  %v3065 = vpop.permute.xlu0 %3064
  %3066 = vrot.lane.b32.xlu0 %v2893, 4
  %v3067 = vpop.permute.xlu0 %3066
  %3068 = vrot.lane.b32.xlu0 %v2898, 4
  %v3069 = vpop.permute.xlu0 %3068
  %3070 = vrot.lane.b32.xlu0 %v2901, 4
  %v3071 = vpop.permute.xlu0 %3070
  %3072 = vrot.lane.b32.xlu0 %v2906, 4
  %v3073 = vpop.permute.xlu0 %3072
  %3074 = vrot.lane.b32.xlu0 %v2909, 4
  %v3075 = vpop.permute.xlu0 %3074
  %3076 = vrot.lane.b32.xlu0 %v2914, 4
  %v3077 = vpop.permute.xlu0 %3076
  %3078 = vrot.lane.b32.xlu0 %v2917, 4
  %v3079 = vpop.permute.xlu0 %3078
  %3080 = vrot.lane.b32.xlu0 %v2922, 4
  %v3081 = vpop.permute.xlu0 %3080
  %3082 = vrot.lane.b32.xlu0 %v2925, 4
  %v3083 = vpop.permute.xlu0 %3082
  %v3100 = vsel %vm1242, %v760, %v3053
  %v3101 = vsel %vm1242, %v763, %v3055
  %v3102 = vsel %vm1242, %v766, %v3057
  %v3103 = vsel %vm1242, %v769, %v3059
  %v3104 = vsel %vm1242, %v772, %v3061
  %v3105 = vsel %vm1242, %v775, %v3063
  %v3106 = vsel %vm1242, %v778, %v3065
  %v3107 = vsel %vm1242, %v781, %v3067
  %v3108 = vsel %vm1242, %v784, %v3069
  %v3109 = vsel %vm1242, %v787, %v3071
  %v3110 = vsel %vm1242, %v790, %v3073
  %v3111 = vsel %vm1242, %v793, %v3075
  %v3112 = vsel %vm1242, %v796, %v3077
  %v3113 = vsel %vm1242, %v799, %v3079
  %v3114 = vsel %vm1242, %v802, %v3081
  %v3115 = vsel %vm1242, %v805, %v3083
  %3116 = vxpose.xlu0.b32.start [1/16] %v3100, 128
  %3117 = vxpose.xlu0.b32.cont [2/16] %v3101, 128
  %3118 = vxpose.xlu0.b32.cont [3/16] %v3102, 128
  %3119 = vxpose.xlu0.b32.cont [4/16] %v3103, 128
  %3120 = vxpose.xlu0.b32.cont [5/16] %v3104, 128
  %3121 = vxpose.xlu0.b32.cont [6/16] %v3105, 128
  %3122 = vxpose.xlu0.b32.cont [7/16] %v3106, 128
  %3123 = vxpose.xlu0.b32.cont [8/16] %v3107, 128
  %3124 = vxpose.xlu0.b32.cont [9/16] %v3108, 128
  %3125 = vxpose.xlu0.b32.cont [10/16] %v3109, 128
  %3126 = vxpose.xlu0.b32.cont [11/16] %v3110, 128
  %3127 = vxpose.xlu0.b32.cont [12/16] %v3111, 128
  %3128 = vxpose.xlu0.b32.cont [13/16] %v3112, 128
  %3129 = vxpose.xlu0.b32.cont [14/16] %v3113, 128
  %3130 = vxpose.xlu0.b32.cont [15/16] %v3114, 128
  %3131 = vxpose.xlu0.b32.end [16/16] %v3115, 128
  %v3132 = vpop.trf.xlu0
  %v3133 = vpop.trf.xlu0
  %v3134 = vpop.trf.xlu0
  %v3135 = vpop.trf.xlu0
  %v3136 = vpop.trf.xlu0
  %v3137 = vpop.trf.xlu0
  %v3138 = vpop.trf.xlu0
  %v3139 = vpop.trf.xlu0
  %v3140 = vpop.trf.xlu0
  %v3141 = vpop.trf.xlu0
  %v3142 = vpop.trf.xlu0
  %v3143 = vpop.trf.xlu0
  %v3144 = vpop.trf.xlu0
  %v3145 = vpop.trf.xlu0
  %v3146 = vpop.trf.xlu0
  %v3147 = vpop.trf.xlu0
  %3148 = vrot.lane.b32.xlu0 %v1938, 8
  %v3149 = vpop.permute.xlu0 %3148
  %3151 = vrot.lane.b32.xlu0 %v1731, 16
  %v3152 = vpop.permute.xlu0 %3151
  %3153 = vrot.lane.b32.xlu0 %v1747, 16
  %v3154 = vpop.permute.xlu0 %3153
  %3155 = vrot.lane.b32.xlu0 %v1739, 16
  %v3156 = vpop.permute.xlu0 %3155
  %3157 = vrot.lane.b32.xlu0 %v1755, 16
  %v3158 = vpop.permute.xlu0 %3157
  %3163 = vrot.lane.b32.xlu0 %v1779, 24
  %v3164 = vpop.permute.xlu0 %3163
  %3165 = vrot.lane.b32.xlu0 %v1787, 24
  %v3166 = vpop.permute.xlu0 %3165
  %v3169 = vsel %vm1259, 0.0, %v3149
  %v3170 = vsel %vm1293, %v3169, %v3152
  %v3171 = vsel %vm1293, %v3169, %v3154
  %v3172 = vsel %vm1293, %v3169, %v3156
  %v3173 = vsel %vm1293, %v3169, %v3158
  %v3174 = vsel %vm1327, %v3170, %v3164
  %v3175 = vsel %vm1327, %v3171, %v3164
  %v3176 = vsel %vm1327, %v3172, %v3166
  %v3177 = vsel %vm1327, %v3173, %v3166
  %v3182 = vrot.slane %v3174, 1
  %v3183 = vrot.slane %v3175, 1
  %v3184 = vsel %vm193, %v3182, %v3183
  %v3185 = vrot.slane %v3176, 1
  %v3186 = vrot.slane %v3177, 1
  %v3187 = vsel %vm193, %v3185, %v3186
  %v3190 = vpack.c.bf16 %v2120, %v2117
  %v3191 = vpack.c.bf16 %v2126, %v2123
  %v3192 = vpack.c.bf16 %v2132, %v2129
  %v3193 = vpack.c.bf16 %v3184, %v2135
  %v3194 = vpack.c.bf16 %v2144, %v2141
  %v3195 = vpack.c.bf16 %v2150, %v2147
  %v3196 = vpack.c.bf16 %v2156, %v2153
  %v3197 = vpack.c.bf16 %v3187, %v2159
  %s3198 = scalar_lea.vmem %s2, 32
  %v3199 = vld [vmem:[%s3198] sm:$0xf]
  %v3200 = vld [vmem:[%s3198 + $0x4] sm:$0xf]
  %v3201 = vld [vmem:[%s3198 + $0x8] sm:$0xf]
  %v3202 = vld [vmem:[%s3198 + $0xc] sm:$0xf]
  %v3207 = vunpack.c.l.b16 %v3199
  %v3208 = vunpack.c.l.b16 %v3200
  %v3209 = vunpack.c.l.b16 %v3201
  %v3210 = vunpack.c.l.b16 %v3202
  %v3211 = vpack.c.b16 %v3208, %v3207
  %v3212 = vpack.c.b16 %v3210, %v3209
  %v3216 = vsel %vm1361, %v3190, 0
  %v3219 = vsel %vm1361, %v3191, 0
  %v3222 = vsel %vm1361, %v3192, 0
  %v3225 = vsel %vm1361, %v3193, 0
  %v3228 = vsel %vm1361, %v3194, 0
  %v3231 = vsel %vm1361, %v3195, 0
  %v3234 = vsel %vm1361, %v3196, 0
  %v3237 = vsel %vm1361, %v3197, 0
  %3239 = vmatprep.subr.bf16.mxu0 0
  %3240 = vmatpush1.bf16.msra.mxu0 %v3211
  %3241 = vmatprep.subr.bf16.mxu0 0
  %3242 = vmatpush1.bf16.msra.mxu0 %v3212
  %3243 = vmatprep.subr.bf16.mxu0 0
  %3244 = vmatpush1.bf16.msra.mxu0 0
  %3245 = vmatprep.subr.bf16.mxu0 0
  %3246 = vmatpush1.bf16.msra.mxu0 0
  %3247 = vmatprep.subr.bf16.mxu0 0
  %3248 = vmatpush1.bf16.msra.mxu0 0
  %3249 = vmatprep.subr.bf16.mxu0 0
  %3250 = vmatpush1.bf16.msra.mxu0 0
  %3251 = vmatprep.subr.bf16.mxu0 0
  %3252 = vmatpush1.bf16.msra.mxu0 0
  %3253 = vmatprep.subr.bf16.mxu0 0
  %3254 = vmatpush1.bf16.msra.mxu0 0
  %3255 = vmatprep.subr.bf16.mxu0 0
  %3256 = vmatpush1.bf16.msra.mxu0 0
  %3257 = vmatprep.subr.bf16.mxu0 0
  %3258 = vmatpush1.bf16.msra.mxu0 0
  %3259 = vmatprep.subr.bf16.mxu0 0
  %3260 = vmatpush1.bf16.msra.mxu0 0
  %3261 = vmatprep.subr.bf16.mxu0 0
  %3262 = vmatpush1.bf16.msra.mxu0 0
  %3263 = vmatprep.subr.bf16.mxu0 0
  %3264 = vmatpush1.bf16.msra.mxu0 0
  %3265 = vmatprep.subr.bf16.mxu0 0
  %3266 = vmatpush1.bf16.msra.mxu0 0
  %3267 = vmatprep.subr.bf16.mxu0 0
  %3268 = vmatpush1.bf16.msra.mxu0 0
  %3269 = vmatprep.subr.bf16.mxu0 0
  %3270 = vmatpush1.bf16.msra.mxu0 0
  %3271 = vmatprep.mubr.bf16.mxu0 0
  %3272 = vmatmul.mubr.bf16.gmra.mrb[0].mxu0 %v3216
  %v3273 = vpop.f32.mrb[0].mxu0
  %v3274 = vadd.f32 0.0, %v3273
  %v3275 = vpop.f32.mrb[0].mxu0
  %v3276 = vpop.f32.mrb[0].mxu0
  %v3277 = vadd.f32 0.0, %v3276
  %v3278 = vpop.f32.mrb[0].mxu0
  %3279 = vmatprep.mubr.bf16.mxu0 0
  %3280 = vmatmul.mubr.bf16.gmra.mrb[0].mxu0 %v3219
  %v3281 = vpop.f32.mrb[0].mxu0
  %v3282 = vadd.f32 0.0, %v3281
  %v3283 = vpop.f32.mrb[0].mxu0
  %v3284 = vpop.f32.mrb[0].mxu0
  %v3285 = vadd.f32 0.0, %v3284
  %v3286 = vpop.f32.mrb[0].mxu0
  %3287 = vmatprep.mubr.bf16.mxu0 0
  %3288 = vmatmul.mubr.bf16.gmra.mrb[0].mxu0 %v3222
  %v3289 = vpop.f32.mrb[0].mxu0
  %v3290 = vadd.f32 0.0, %v3289
  %v3291 = vpop.f32.mrb[0].mxu0
  %v3292 = vpop.f32.mrb[0].mxu0
  %v3293 = vadd.f32 0.0, %v3292
  %v3294 = vpop.f32.mrb[0].mxu0
  %3295 = vmatprep.mubr.bf16.mxu0 0
  %3296 = vmatmul.mubr.bf16.gmra.mrb[0].mxu0 %v3225
  %v3297 = vpop.f32.mrb[0].mxu0
  %v3298 = vadd.f32 0.0, %v3297
  %v3299 = vpop.f32.mrb[0].mxu0
  %v3300 = vpop.f32.mrb[0].mxu0
  %v3301 = vadd.f32 0.0, %v3300
  %v3302 = vpop.f32.mrb[0].mxu0
  %3303 = vmatprep.mubr.bf16.mxu0 0
  %3304 = vmatmul.mubr.bf16.gmra.mrb[0].mxu0 %v3228
  %v3305 = vpop.f32.mrb[0].mxu0
  %v3306 = vadd.f32 0.0, %v3305
  %v3307 = vpop.f32.mrb[0].mxu0
  %v3308 = vpop.f32.mrb[0].mxu0
  %v3309 = vadd.f32 0.0, %v3308
  %v3310 = vpop.f32.mrb[0].mxu0
  %3311 = vmatprep.mubr.bf16.mxu0 0
  %3312 = vmatmul.mubr.bf16.gmra.mrb[0].mxu0 %v3231
  %v3313 = vpop.f32.mrb[0].mxu0
  %v3314 = vadd.f32 0.0, %v3313
  %v3315 = vpop.f32.mrb[0].mxu0
  %v3316 = vpop.f32.mrb[0].mxu0
  %v3317 = vadd.f32 0.0, %v3316
  %v3318 = vpop.f32.mrb[0].mxu0
  %3319 = vmatprep.mubr.bf16.mxu0 0
  %3320 = vmatmul.mubr.bf16.gmra.mrb[0].mxu0 %v3234
  %v3321 = vpop.f32.mrb[0].mxu0
  %v3322 = vadd.f32 0.0, %v3321
  %v3323 = vpop.f32.mrb[0].mxu0
  %v3324 = vpop.f32.mrb[0].mxu0
  %v3325 = vadd.f32 0.0, %v3324
  %v3326 = vpop.f32.mrb[0].mxu0
  %3327 = vmatprep.mubr.bf16.mxu0 0
  %3328 = vmatmul.mubr.bf16.gmra.mrb[0].mxu0 %v3237
  %v3329 = vpop.f32.mrb[0].mxu0
  %v3330 = vadd.f32 0.0, %v3329
  %v3331 = vpop.f32.mrb[0].mxu0
  %v3332 = vpop.f32.mrb[0].mxu0
  %v3333 = vadd.f32 0.0, %v3332
  %v3334 = vpop.f32.mrb[0].mxu0
  %3335 = vdwg.mxu0
  %v3336 = vsel %vm1242, %v3274, 0.0
  %v3337 = vsel %vm1242, %v3277, 0.0
  %v3338 = vadd.f32 %v3336, %v3337
  %v3339 = vsel %vm1242, %v3282, 0.0
  %v3340 = vadd.f32 %v3338, %v3339
  %v3341 = vsel %vm1242, %v3285, 0.0
  %v3342 = vadd.f32 %v3340, %v3341
  %v3343 = vsel %vm1242, %v3290, 0.0
  %v3344 = vadd.f32 %v3342, %v3343
  %v3345 = vsel %vm1242, %v3293, 0.0
  %v3346 = vadd.f32 %v3344, %v3345
  %v3347 = vsel %vm1242, %v3298, 0.0
  %v3348 = vadd.f32 %v3346, %v3347
  %v3349 = vsel %vm1242, %v3301, 0.0
  %v3350 = vadd.f32 %v3348, %v3349
  %v3351 = vsel %vm1242, %v3306, 0.0
  %v3352 = vadd.f32 %v3350, %v3351
  %v3353 = vsel %vm1242, %v3309, 0.0
  %v3354 = vadd.f32 %v3352, %v3353
  %v3355 = vsel %vm1242, %v3314, 0.0
  %v3356 = vadd.f32 %v3354, %v3355
  %v3357 = vsel %vm1242, %v3317, 0.0
  %v3358 = vadd.f32 %v3356, %v3357
  %v3359 = vsel %vm1242, %v3322, 0.0
  %v3360 = vadd.f32 %v3358, %v3359
  %v3361 = vsel %vm1242, %v3325, 0.0
  %v3362 = vadd.f32 %v3360, %v3361
  %v3363 = vsel %vm1242, %v3330, 0.0
  %v3364 = vadd.f32 %v3362, %v3363
  %v3365 = vsel %vm1242, %v3333, 0.0
  %v3366 = vadd.f32 %v3364, %v3365
  %v3367 = vrot.slane %v3366, 4
  %v3368 = vadd.f32 %v3366, %v3367
  %v3369 = vrot.slane %v3368, 2
  %v3370 = vadd.f32 %v3368, %v3369
  %v3371 = vrot.slane %v3370, 1
  %v3372 = vadd.f32 %v3370, %v3371
  %v3373 = vadd.f32 %v2965, %v3372
  %v3374 = vmul.f32 %v3274, %v3274
  %v3375 = vmul.f32 %v3277, %v3277
  %v3376 = vmul.f32 %v3282, %v3282
  %v3377 = vmul.f32 %v3285, %v3285
  %v3378 = vmul.f32 %v3290, %v3290
  %v3379 = vmul.f32 %v3293, %v3293
  %v3380 = vmul.f32 %v3298, %v3298
  %v3381 = vmul.f32 %v3301, %v3301
  %v3382 = vmul.f32 %v3306, %v3306
  %v3383 = vmul.f32 %v3309, %v3309
  %v3384 = vmul.f32 %v3314, %v3314
  %v3385 = vmul.f32 %v3317, %v3317
  %v3386 = vmul.f32 %v3322, %v3322
  %v3387 = vmul.f32 %v3325, %v3325
  %v3388 = vmul.f32 %v3330, %v3330
  %v3389 = vmul.f32 %v3333, %v3333
  %v3390 = vsel %vm1242, %v3374, 0.0
  %v3391 = vsel %vm1242, %v3375, 0.0
  %v3392 = vadd.f32 %v3390, %v3391
  %v3393 = vsel %vm1242, %v3376, 0.0
  %v3394 = vadd.f32 %v3392, %v3393
  %v3395 = vsel %vm1242, %v3377, 0.0
  %v3396 = vadd.f32 %v3394, %v3395
  %v3397 = vsel %vm1242, %v3378, 0.0
  %v3398 = vadd.f32 %v3396, %v3397
  %v3399 = vsel %vm1242, %v3379, 0.0
  %v3400 = vadd.f32 %v3398, %v3399
  %v3401 = vsel %vm1242, %v3380, 0.0
  %v3402 = vadd.f32 %v3400, %v3401
  %v3403 = vsel %vm1242, %v3381, 0.0
  %v3404 = vadd.f32 %v3402, %v3403
  %v3405 = vsel %vm1242, %v3382, 0.0
  %v3406 = vadd.f32 %v3404, %v3405
  %v3407 = vsel %vm1242, %v3383, 0.0
  %v3408 = vadd.f32 %v3406, %v3407
  %v3409 = vsel %vm1242, %v3384, 0.0
  %v3410 = vadd.f32 %v3408, %v3409
  %v3411 = vsel %vm1242, %v3385, 0.0
  %v3412 = vadd.f32 %v3410, %v3411
  %v3413 = vsel %vm1242, %v3386, 0.0
  %v3414 = vadd.f32 %v3412, %v3413
  %v3415 = vsel %vm1242, %v3387, 0.0
  %v3416 = vadd.f32 %v3414, %v3415
  %v3417 = vsel %vm1242, %v3388, 0.0
  %v3418 = vadd.f32 %v3416, %v3417
  %v3419 = vsel %vm1242, %v3389, 0.0
  %v3420 = vadd.f32 %v3418, %v3419
  %v3421 = vrot.slane %v3420, 4
  %v3422 = vadd.f32 %v3420, %v3421
  %v3423 = vrot.slane %v3422, 2
  %v3424 = vadd.f32 %v3422, %v3423
  %v3425 = vrot.slane %v3424, 1
  %v3426 = vadd.f32 %v3424, %v3425
  %v3427 = vadd.f32 %v3019, %v3426
  %3444 = vrot.lane.b32.xlu0 %v3274, 4
  %v3445 = vpop.permute.xlu0 %3444
  %3446 = vrot.lane.b32.xlu0 %v3277, 4
  %v3447 = vpop.permute.xlu0 %3446
  %3448 = vrot.lane.b32.xlu0 %v3282, 4
  %v3449 = vpop.permute.xlu0 %3448
  %3450 = vrot.lane.b32.xlu0 %v3285, 4
  %v3451 = vpop.permute.xlu0 %3450
  %3452 = vrot.lane.b32.xlu0 %v3290, 4
  %v3453 = vpop.permute.xlu0 %3452
  %3454 = vrot.lane.b32.xlu0 %v3293, 4
  %v3455 = vpop.permute.xlu0 %3454
  %3456 = vrot.lane.b32.xlu0 %v3298, 4
  %v3457 = vpop.permute.xlu0 %3456
  %3458 = vrot.lane.b32.xlu0 %v3301, 4
  %v3459 = vpop.permute.xlu0 %3458
  %3460 = vrot.lane.b32.xlu0 %v3306, 4
  %v3461 = vpop.permute.xlu0 %3460
  %3462 = vrot.lane.b32.xlu0 %v3309, 4
  %v3463 = vpop.permute.xlu0 %3462
  %3464 = vrot.lane.b32.xlu0 %v3314, 4
  %v3465 = vpop.permute.xlu0 %3464
  %3466 = vrot.lane.b32.xlu0 %v3317, 4
  %v3467 = vpop.permute.xlu0 %3466
  %3468 = vrot.lane.b32.xlu0 %v3322, 4
  %v3469 = vpop.permute.xlu0 %3468
  %3470 = vrot.lane.b32.xlu0 %v3325, 4
  %v3471 = vpop.permute.xlu0 %3470
  %3472 = vrot.lane.b32.xlu0 %v3330, 4
  %v3473 = vpop.permute.xlu0 %3472
  %3474 = vrot.lane.b32.xlu0 %v3333, 4
  %v3475 = vpop.permute.xlu0 %3474
  %v3492 = vsel %vm1242, %v37, %v3445
  %v3493 = vsel %vm1242, %v39, %v3447
  %v3494 = vsel %vm1242, %v41, %v3449
  %v3495 = vsel %vm1242, %v43, %v3451
  %v3496 = vsel %vm1242, %v45, %v3453
  %v3497 = vsel %vm1242, %v47, %v3455
  %v3498 = vsel %vm1242, %v49, %v3457
  %v3499 = vsel %vm1242, %v51, %v3459
  %v3500 = vsel %vm1242, %v109, %v3461
  %v3501 = vsel %vm1242, %v111, %v3463
  %v3502 = vsel %vm1242, %v113, %v3465
  %v3503 = vsel %vm1242, %v115, %v3467
  %v3504 = vsel %vm1242, %v117, %v3469
  %v3505 = vsel %vm1242, %v119, %v3471
  %v3506 = vsel %vm1242, %v121, %v3473
  %v3507 = vsel %vm1242, %v123, %v3475
  %3508 = vxpose.xlu0.b32.start [1/16] %v3492, 128
  %3509 = vxpose.xlu0.b32.cont [2/16] %v3493, 128
  %3510 = vxpose.xlu0.b32.cont [3/16] %v3494, 128
  %3511 = vxpose.xlu0.b32.cont [4/16] %v3495, 128
  %3512 = vxpose.xlu0.b32.cont [5/16] %v3496, 128
  %3513 = vxpose.xlu0.b32.cont [6/16] %v3497, 128
  %3514 = vxpose.xlu0.b32.cont [7/16] %v3498, 128
  %3515 = vxpose.xlu0.b32.cont [8/16] %v3499, 128
  %3516 = vxpose.xlu0.b32.cont [9/16] %v3500, 128
  %3517 = vxpose.xlu0.b32.cont [10/16] %v3501, 128
  %3518 = vxpose.xlu0.b32.cont [11/16] %v3502, 128
  %3519 = vxpose.xlu0.b32.cont [12/16] %v3503, 128
  %3520 = vxpose.xlu0.b32.cont [13/16] %v3504, 128
  %3521 = vxpose.xlu0.b32.cont [14/16] %v3505, 128
  %3522 = vxpose.xlu0.b32.cont [15/16] %v3506, 128
  %3523 = vxpose.xlu0.b32.end [16/16] %v3507, 128
  %v3524 = vpop.trf.xlu0
  %v3525 = vpop.trf.xlu0
  %v3526 = vpop.trf.xlu0
  %v3527 = vpop.trf.xlu0
  %v3528 = vpop.trf.xlu0
  %v3529 = vpop.trf.xlu0
  %v3530 = vpop.trf.xlu0
  %v3531 = vpop.trf.xlu0
  %v3532 = vpop.trf.xlu0
  %v3533 = vpop.trf.xlu0
  %v3534 = vpop.trf.xlu0
  %v3535 = vpop.trf.xlu0
  %v3536 = vpop.trf.xlu0
  %v3537 = vpop.trf.xlu0
  %v3538 = vpop.trf.xlu0
  %v3539 = vpop.trf.xlu0
  %3540 = vrot.lane.b32.xlu0 %v2607, 8
  %v3541 = vpop.permute.xlu0 %3540
  %3543 = vrot.lane.b32.xlu0 %v2542, 24
  %v3544 = vpop.permute.xlu0 %3543
  %3545 = vrot.lane.b32.xlu0 %v2558, 24
  %v3546 = vpop.permute.xlu0 %3545
  %v3549 = vsel %vm1259, 0.0, %v3541
  %v3550 = vsel %vm1293, %v3549, %v3154
  %v3551 = vsel %vm1293, %v3549, %v3158
  %v3552 = vsel %vm1327, %v3550, %v3544
  %v3553 = vsel %vm1327, %v3551, %v3546
  %v3556 = vrot.slane %v3174, 2
  %v3557 = vrot.slane %v3552, 2
  %v3558 = vsel %vm2717, %v3556, %v3557
  %v3559 = vrot.slane %v3176, 2
  %v3560 = vrot.slane %v3553, 2
  %v3561 = vsel %vm2717, %v3559, %v3560
  %v3564 = vpack.c.bf16 %v2726, %v2723
  %v3565 = vpack.c.bf16 %v2732, %v2729
  %v3566 = vpack.c.bf16 %v2738, %v2735
  %v3567 = vpack.c.bf16 %v3558, %v2741
  %v3568 = vpack.c.bf16 %v2750, %v2747
  %v3569 = vpack.c.bf16 %v2756, %v2753
  %v3570 = vpack.c.bf16 %v2762, %v2759
  %v3571 = vpack.c.bf16 %v3561, %v2765
  %s3572 = scalar_lea.vmem %s2, 48
  %v3573 = vld [vmem:[%s3572] sm:$0xf]
  %v3574 = vld [vmem:[%s3572 + $0x4] sm:$0xf]
  %v3575 = vld [vmem:[%s3572 + $0x8] sm:$0xf]
  %v3576 = vld [vmem:[%s3572 + $0xc] sm:$0xf]
  %v3581 = vunpack.c.l.b16 %v3573
  %v3582 = vunpack.c.l.b16 %v3574
  %v3583 = vunpack.c.l.b16 %v3575
  %v3584 = vunpack.c.l.b16 %v3576
  %v3585 = vpack.c.b16 %v3582, %v3581
  %v3586 = vpack.c.b16 %v3584, %v3583
  %v3590 = vsel %vm1361, %v3564, 0
  %v3593 = vsel %vm1361, %v3565, 0
  %v3596 = vsel %vm1361, %v3566, 0
  %v3599 = vsel %vm1361, %v3567, 0
  %v3602 = vsel %vm1361, %v3568, 0
  %v3605 = vsel %vm1361, %v3569, 0
  %v3608 = vsel %vm1361, %v3570, 0
  %v3611 = vsel %vm1361, %v3571, 0
  %3613 = vmatprep.subr.bf16.mxu0 0
  %3614 = vmatpush1.bf16.msra.mxu0 %v3585
  %3615 = vmatprep.subr.bf16.mxu0 0
  %3616 = vmatpush1.bf16.msra.mxu0 %v3586
  %3617 = vmatprep.subr.bf16.mxu0 0
  %3618 = vmatpush1.bf16.msra.mxu0 0
  %3619 = vmatprep.subr.bf16.mxu0 0
  %3620 = vmatpush1.bf16.msra.mxu0 0
  %3621 = vmatprep.subr.bf16.mxu0 0
  %3622 = vmatpush1.bf16.msra.mxu0 0
  %3623 = vmatprep.subr.bf16.mxu0 0
  %3624 = vmatpush1.bf16.msra.mxu0 0
  %3625 = vmatprep.subr.bf16.mxu0 0
  %3626 = vmatpush1.bf16.msra.mxu0 0
  %3627 = vmatprep.subr.bf16.mxu0 0
  %3628 = vmatpush1.bf16.msra.mxu0 0
  %3629 = vmatprep.subr.bf16.mxu0 0
  %3630 = vmatpush1.bf16.msra.mxu0 0
  %3631 = vmatprep.subr.bf16.mxu0 0
  %3632 = vmatpush1.bf16.msra.mxu0 0
  %3633 = vmatprep.subr.bf16.mxu0 0
  %3634 = vmatpush1.bf16.msra.mxu0 0
  %3635 = vmatprep.subr.bf16.mxu0 0
  %3636 = vmatpush1.bf16.msra.mxu0 0
  %3637 = vmatprep.subr.bf16.mxu0 0
  %3638 = vmatpush1.bf16.msra.mxu0 0
  %3639 = vmatprep.subr.bf16.mxu0 0
  %3640 = vmatpush1.bf16.msra.mxu0 0
  %3641 = vmatprep.subr.bf16.mxu0 0
  %3642 = vmatpush1.bf16.msra.mxu0 0
  %3643 = vmatprep.subr.bf16.mxu0 0
  %3644 = vmatpush1.bf16.msra.mxu0 0
  %3645 = vmatprep.mubr.bf16.mxu0 0
  %3646 = vmatmul.mubr.bf16.gmra.mrb[0].mxu0 %v3590
  %v3647 = vpop.f32.mrb[0].mxu0
  %v3648 = vadd.f32 0.0, %v3647
  %v3649 = vpop.f32.mrb[0].mxu0
  %v3650 = vpop.f32.mrb[0].mxu0
  %v3651 = vadd.f32 0.0, %v3650
  %v3652 = vpop.f32.mrb[0].mxu0
  %3653 = vmatprep.mubr.bf16.mxu0 0
  %3654 = vmatmul.mubr.bf16.gmra.mrb[0].mxu0 %v3593
  %v3655 = vpop.f32.mrb[0].mxu0
  %v3656 = vadd.f32 0.0, %v3655
  %v3657 = vpop.f32.mrb[0].mxu0
  %v3658 = vpop.f32.mrb[0].mxu0
  %v3659 = vadd.f32 0.0, %v3658
  %v3660 = vpop.f32.mrb[0].mxu0
  %3661 = vmatprep.mubr.bf16.mxu0 0
  %3662 = vmatmul.mubr.bf16.gmra.mrb[0].mxu0 %v3596
  %v3663 = vpop.f32.mrb[0].mxu0
  %v3664 = vadd.f32 0.0, %v3663
  %v3665 = vpop.f32.mrb[0].mxu0
  %v3666 = vpop.f32.mrb[0].mxu0
  %v3667 = vadd.f32 0.0, %v3666
  %v3668 = vpop.f32.mrb[0].mxu0
  %3669 = vmatprep.mubr.bf16.mxu0 0
  %3670 = vmatmul.mubr.bf16.gmra.mrb[0].mxu0 %v3599
  %v3671 = vpop.f32.mrb[0].mxu0
  %v3672 = vadd.f32 0.0, %v3671
  %v3673 = vpop.f32.mrb[0].mxu0
  %v3674 = vpop.f32.mrb[0].mxu0
  %v3675 = vadd.f32 0.0, %v3674
  %v3676 = vpop.f32.mrb[0].mxu0
  %3677 = vmatprep.mubr.bf16.mxu0 0
  %3678 = vmatmul.mubr.bf16.gmra.mrb[0].mxu0 %v3602
  %v3679 = vpop.f32.mrb[0].mxu0
  %v3680 = vadd.f32 0.0, %v3679
  %v3681 = vpop.f32.mrb[0].mxu0
  %v3682 = vpop.f32.mrb[0].mxu0
  %v3683 = vadd.f32 0.0, %v3682
  %v3684 = vpop.f32.mrb[0].mxu0
  %3685 = vmatprep.mubr.bf16.mxu0 0
  %3686 = vmatmul.mubr.bf16.gmra.mrb[0].mxu0 %v3605
  %v3687 = vpop.f32.mrb[0].mxu0
  %v3688 = vadd.f32 0.0, %v3687
  %v3689 = vpop.f32.mrb[0].mxu0
  %v3690 = vpop.f32.mrb[0].mxu0
  %v3691 = vadd.f32 0.0, %v3690
  %v3692 = vpop.f32.mrb[0].mxu0
  %3693 = vmatprep.mubr.bf16.mxu0 0
  %3694 = vmatmul.mubr.bf16.gmra.mrb[0].mxu0 %v3608
  %v3695 = vpop.f32.mrb[0].mxu0
  %v3696 = vadd.f32 0.0, %v3695
  %v3697 = vpop.f32.mrb[0].mxu0
  %v3698 = vpop.f32.mrb[0].mxu0
  %v3699 = vadd.f32 0.0, %v3698
  %v3700 = vpop.f32.mrb[0].mxu0
  %3701 = vmatprep.mubr.bf16.mxu0 0
  %3702 = vmatmul.mubr.bf16.gmra.mrb[0].mxu0 %v3611
  %v3703 = vpop.f32.mrb[0].mxu0
  %v3704 = vadd.f32 0.0, %v3703
  %v3705 = vpop.f32.mrb[0].mxu0
  %v3706 = vpop.f32.mrb[0].mxu0
  %v3707 = vadd.f32 0.0, %v3706
  %v3708 = vpop.f32.mrb[0].mxu0
  %3709 = vdwg.mxu0
  %v3710 = vsel %vm1242, %v3648, 0.0
  %v3711 = vsel %vm1242, %v3651, 0.0
  %v3712 = vadd.f32 %v3710, %v3711
  %v3713 = vsel %vm1242, %v3656, 0.0
  %v3714 = vadd.f32 %v3712, %v3713
  %v3715 = vsel %vm1242, %v3659, 0.0
  %v3716 = vadd.f32 %v3714, %v3715
  %v3717 = vsel %vm1242, %v3664, 0.0
  %v3718 = vadd.f32 %v3716, %v3717
  %v3719 = vsel %vm1242, %v3667, 0.0
  %v3720 = vadd.f32 %v3718, %v3719
  %v3721 = vsel %vm1242, %v3672, 0.0
  %v3722 = vadd.f32 %v3720, %v3721
  %v3723 = vsel %vm1242, %v3675, 0.0
  %v3724 = vadd.f32 %v3722, %v3723
  %v3725 = vsel %vm1242, %v3680, 0.0
  %v3726 = vadd.f32 %v3724, %v3725
  %v3727 = vsel %vm1242, %v3683, 0.0
  %v3728 = vadd.f32 %v3726, %v3727
  %v3729 = vsel %vm1242, %v3688, 0.0
  %v3730 = vadd.f32 %v3728, %v3729
  %v3731 = vsel %vm1242, %v3691, 0.0
  %v3732 = vadd.f32 %v3730, %v3731
  %v3733 = vsel %vm1242, %v3696, 0.0
  %v3734 = vadd.f32 %v3732, %v3733
  %v3735 = vsel %vm1242, %v3699, 0.0
  %v3736 = vadd.f32 %v3734, %v3735
  %v3737 = vsel %vm1242, %v3704, 0.0
  %v3738 = vadd.f32 %v3736, %v3737
  %v3739 = vsel %vm1242, %v3707, 0.0
  %v3740 = vadd.f32 %v3738, %v3739
  %v3741 = vrot.slane %v3740, 4
  %v3742 = vadd.f32 %v3740, %v3741
  %v3743 = vrot.slane %v3742, 2
  %v3744 = vadd.f32 %v3742, %v3743
  %v3745 = vrot.slane %v3744, 1
  %v3746 = vadd.f32 %v3744, %v3745
  %v3747 = vadd.f32 %v3373, %v3746
  %v3748 = vmul.f32 %v3648, %v3648
  %v3749 = vmul.f32 %v3651, %v3651
  %v3750 = vmul.f32 %v3656, %v3656
  %v3751 = vmul.f32 %v3659, %v3659
  %v3752 = vmul.f32 %v3664, %v3664
  %v3753 = vmul.f32 %v3667, %v3667
  %v3754 = vmul.f32 %v3672, %v3672
  %v3755 = vmul.f32 %v3675, %v3675
  %v3756 = vmul.f32 %v3680, %v3680
  %v3757 = vmul.f32 %v3683, %v3683
  %v3758 = vmul.f32 %v3688, %v3688
  %v3759 = vmul.f32 %v3691, %v3691
  %v3760 = vmul.f32 %v3696, %v3696
  %v3761 = vmul.f32 %v3699, %v3699
  %v3762 = vmul.f32 %v3704, %v3704
  %v3763 = vmul.f32 %v3707, %v3707
  %v3764 = vsel %vm1242, %v3748, 0.0
  %v3765 = vsel %vm1242, %v3749, 0.0
  %v3766 = vadd.f32 %v3764, %v3765
  %v3767 = vsel %vm1242, %v3750, 0.0
  %v3768 = vadd.f32 %v3766, %v3767
  %v3769 = vsel %vm1242, %v3751, 0.0
  %v3770 = vadd.f32 %v3768, %v3769
  %v3771 = vsel %vm1242, %v3752, 0.0
  %v3772 = vadd.f32 %v3770, %v3771
  %v3773 = vsel %vm1242, %v3753, 0.0
  %v3774 = vadd.f32 %v3772, %v3773
  %v3775 = vsel %vm1242, %v3754, 0.0
  %v3776 = vadd.f32 %v3774, %v3775
  %v3777 = vsel %vm1242, %v3755, 0.0
  %v3778 = vadd.f32 %v3776, %v3777
  %v3779 = vsel %vm1242, %v3756, 0.0
  %v3780 = vadd.f32 %v3778, %v3779
  %v3781 = vsel %vm1242, %v3757, 0.0
  %v3782 = vadd.f32 %v3780, %v3781
  %v3783 = vsel %vm1242, %v3758, 0.0
  %v3784 = vadd.f32 %v3782, %v3783
  %v3785 = vsel %vm1242, %v3759, 0.0
  %v3786 = vadd.f32 %v3784, %v3785
  %v3787 = vsel %vm1242, %v3760, 0.0
  %v3788 = vadd.f32 %v3786, %v3787
  %v3789 = vsel %vm1242, %v3761, 0.0
  %v3790 = vadd.f32 %v3788, %v3789
  %v3791 = vsel %vm1242, %v3762, 0.0
  %v3792 = vadd.f32 %v3790, %v3791
  %v3793 = vsel %vm1242, %v3763, 0.0
  %v3794 = vadd.f32 %v3792, %v3793
  %v3795 = vrot.slane %v3794, 4
  %v3796 = vadd.f32 %v3794, %v3795
  %v3797 = vrot.slane %v3796, 2
  %v3798 = vadd.f32 %v3796, %v3797
  %v3799 = vrot.slane %v3798, 1
  %v3800 = vadd.f32 %v3798, %v3799
  %v3801 = vadd.f32 %v3427, %v3800
  %3834 = vrot.lane.b32.xlu0 %v3648, 4
  %v3835 = vpop.permute.xlu0 %3834
  %3836 = vrot.lane.b32.xlu0 %v3651, 4
  %v3837 = vpop.permute.xlu0 %3836
  %3838 = vrot.lane.b32.xlu0 %v3656, 4
  %v3839 = vpop.permute.xlu0 %3838
  %3840 = vrot.lane.b32.xlu0 %v3659, 4
  %v3841 = vpop.permute.xlu0 %3840
  %3842 = vrot.lane.b32.xlu0 %v3664, 4
  %v3843 = vpop.permute.xlu0 %3842
  %3844 = vrot.lane.b32.xlu0 %v3667, 4
  %v3845 = vpop.permute.xlu0 %3844
  %3846 = vrot.lane.b32.xlu0 %v3672, 4
  %v3847 = vpop.permute.xlu0 %3846
  %3848 = vrot.lane.b32.xlu0 %v3675, 4
  %v3849 = vpop.permute.xlu0 %3848
  %3850 = vrot.lane.b32.xlu0 %v3680, 4
  %v3851 = vpop.permute.xlu0 %3850
  %3852 = vrot.lane.b32.xlu0 %v3683, 4
  %v3853 = vpop.permute.xlu0 %3852
  %3854 = vrot.lane.b32.xlu0 %v3688, 4
  %v3855 = vpop.permute.xlu0 %3854
  %3856 = vrot.lane.b32.xlu0 %v3691, 4
  %v3857 = vpop.permute.xlu0 %3856
  %3858 = vrot.lane.b32.xlu0 %v3696, 4
  %v3859 = vpop.permute.xlu0 %3858
  %3860 = vrot.lane.b32.xlu0 %v3699, 4
  %v3861 = vpop.permute.xlu0 %3860
  %3862 = vrot.lane.b32.xlu0 %v3704, 4
  %v3863 = vpop.permute.xlu0 %3862
  %3864 = vrot.lane.b32.xlu0 %v3707, 4
  %v3865 = vpop.permute.xlu0 %3864
  %v3882 = vsel %vm1242, %v199, %v3835
  %v3883 = vsel %vm1242, %v202, %v3837
  %v3884 = vsel %vm1242, %v205, %v3839
  %v3885 = vsel %vm1242, %v208, %v3841
  %v3886 = vsel %vm1242, %v211, %v3843
  %v3887 = vsel %vm1242, %v214, %v3845
  %v3888 = vsel %vm1242, %v217, %v3847
  %v3889 = vsel %vm1242, %v344, %v3849
  %v3890 = vsel %vm1242, %v223, %v3851
  %v3891 = vsel %vm1242, %v226, %v3853
  %v3892 = vsel %vm1242, %v229, %v3855
  %v3893 = vsel %vm1242, %v232, %v3857
  %v3894 = vsel %vm1242, %v235, %v3859
  %v3895 = vsel %vm1242, %v238, %v3861
  %v3896 = vsel %vm1242, %v241, %v3863
  %v3897 = vsel %vm1242, %v347, %v3865
  %3898 = vxpose.xlu0.b32.start [1/16] %v3882, 128
  %3899 = vxpose.xlu0.b32.cont [2/16] %v3883, 128
  %3900 = vxpose.xlu0.b32.cont [3/16] %v3884, 128
  %3901 = vxpose.xlu0.b32.cont [4/16] %v3885, 128
  %3902 = vxpose.xlu0.b32.cont [5/16] %v3886, 128
  %3903 = vxpose.xlu0.b32.cont [6/16] %v3887, 128
  %3904 = vxpose.xlu0.b32.cont [7/16] %v3888, 128
  %3905 = vxpose.xlu0.b32.cont [8/16] %v3889, 128
  %3906 = vxpose.xlu0.b32.cont [9/16] %v3890, 128
  %3907 = vxpose.xlu0.b32.cont [10/16] %v3891, 128
  %3908 = vxpose.xlu0.b32.cont [11/16] %v3892, 128
  %3909 = vxpose.xlu0.b32.cont [12/16] %v3893, 128
  %3910 = vxpose.xlu0.b32.cont [13/16] %v3894, 128
  %3911 = vxpose.xlu0.b32.cont [14/16] %v3895, 128
  %3912 = vxpose.xlu0.b32.cont [15/16] %v3896, 128
  %3913 = vxpose.xlu0.b32.end [16/16] %v3897, 128
  %v3914 = vpop.trf.xlu0
  %v3915 = vpop.trf.xlu0
  %v3916 = vpop.trf.xlu0
  %v3917 = vpop.trf.xlu0
  %v3918 = vpop.trf.xlu0
  %v3919 = vpop.trf.xlu0
  %v3920 = vpop.trf.xlu0
  %v3921 = vpop.trf.xlu0
  %v3922 = vpop.trf.xlu0
  %v3923 = vpop.trf.xlu0
  %v3924 = vpop.trf.xlu0
  %v3925 = vpop.trf.xlu0
  %v3926 = vpop.trf.xlu0
  %v3927 = vpop.trf.xlu0
  %v3928 = vpop.trf.xlu0
  %v3929 = vpop.trf.xlu0
  %3931 = vrot.lane.b32.xlu0 %v3132, 64
  %v3932 = vpop.permute.xlu0 %3931
  %3935 = vrot.lane.b32.xlu0 %v3914, 64
  %v3936 = vpop.permute.xlu0 %3935
  %v3938 = vsel %vm1537, %v2509, %v3932
  %v3939 = vsel %vm1537, %v3524, %v3936
  %3940 = vst [vmem:[%s3] sm:$0xff] %v3938
  %3941 = vst [vmem:[%s3 + $0x8] sm:$0xff] %v3939
  %3943 = vrot.lane.b32.xlu0 %v2509, 64
  %v3944 = vpop.permute.xlu0 %3943
  %3947 = vrot.lane.b32.xlu0 %v3524, 64
  %v3948 = vpop.permute.xlu0 %3947
  %v3950 = vsel %vm1537, %v3944, %v3132
  %v3951 = vsel %vm1537, %v3948, %v3914
  %s3952 = scalar_lea.vmem %s3, 16
  %3953 = vst [vmem:[%s3952] sm:$0xff] %v3950
  %3954 = vst [vmem:[%s3952 + $0x8] sm:$0xff] %v3951
  %v3955 = vsel %vm1723, %v3747, %v3801
  %vm3956 = vcmask 25600
  %3957 = vst.msk [vmem:[%s4] sm:$0x3] %vm3956, %v3955
  // Predicated region
  $region14: #{unet_innermost_forward.1} parent=0 // pred_check
    _
  $region15: #{unet_innermost_forward.1} parent=0 // pred_check_branch
    %3959 = sbr.rel (0) target = $region17
  $region16: #{unet_innermost_forward.1} parent=0 // pred_region
    _
  $region17: #{unet_innermost_forward.1} parent=0 // pred_fallthru
    _
  // Predicated region
  $region18: #{unet_innermost_forward.1} parent=0 // pred_check
    _
  $region19: #{unet_innermost_forward.1} parent=0 // pred_check_branch
    %3961 = sbr.rel (0) target = $region21
  $region20: #{unet_innermost_forward.1} parent=0 // pred_region
    _
  $region21: #{unet_innermost_forward.1} parent=0 // pred_fallthru
    _
  // Predicated region
  $region22: #{unet_innermost_forward.1} parent=0 // pred_check
    _
  $region23: #{unet_innermost_forward.1} parent=0 // pred_check_branch
    %3963 = sbr.rel (0) target = $region25
  $region24: #{unet_innermost_forward.1} parent=0 // pred_region
    _
  $region25: #{unet_innermost_forward.1} parent=0 // pred_fallthru
    _
  // Predicated region
  $region26: #{unet_innermost_forward.1} parent=0 // pred_check
    _
  $region27: #{unet_innermost_forward.1} parent=0 // pred_check_branch
    %3965 = sbr.rel (0) target = $region29
  $region28: #{unet_innermost_forward.1} parent=0 // pred_region
    _
  $region29: #{unet_innermost_forward.1} parent=0 // pred_fallthru
    _

</llo_original>
